<compile_context>
chip_gen: v7x
topology: tpu7x:2x2x1
jax: 0.10.0
libtpu: 0.0.40
codegen_flags: <defaults>
</compile_context>

<pallas_src>
import functools

import jax
import jax.numpy as jnp
from jax import lax
from jax.experimental import pallas as pl
from jax.experimental.pallas import tpu as pltpu

NEG_SLOPE = 0.05
KSIZE = 7
PAD = 3


def _leaky(v):
    return jnp.where(v >= 0, v, NEG_SLOPE * v)


def _round_up(v, m):
    return (v + m - 1) // m * m


def block_kernel(x_hbm, dwk_ref, dwb_ref, w1_ref, b1_ref, w2_ref, gb_ref,
                 o_ref, buf_ref, sem_ref, *, width, ws, rows, rows_chunk,
                 use_mask):
    """One (image, row-tile) per grid step; channels on sublanes.

    x_hbm:   (N, C, (H+6)*WS) f32, HBM (pl.ANY).  Rows padded to stride WS,
             plus 3 zero rows top/bottom (vertical conv padding baked in).
    dwk_ref: (C, 49)   f32  depthwise 7x7 weights, tap t = dy*7 + dx
    dwb_ref: (C, 1)    f32  depthwise bias
    w1_ref:  (4C, C)   bf16 pwconv1 weight (torch layout)
    b1_ref:  (4C, 1)   f32  pwconv1 bias
    w2_ref:  (C, 4C)   bf16 pwconv2 weight with layer-scale gamma folded in
    gb_ref:  (C, 1)    f32  gamma * pwconv2 bias
    o_ref:   (1, C, T*WS) f32 output row tile
    buf_ref: (2, C, (T+6)*WS) f32 double-buffered halo window
    sem_ref: DMA semaphores, one per buffer slot
    """
    C = dwk_ref.shape[0]
    W, WS, T, RC = width, ws, rows, rows_chunk
    BUF_LANES = (T + 2 * PAD) * WS          # halo window, flat, stride WS
    TILE_LANES = T * WS
    WIN = (RC + 2 * PAD) * WS               # per-chunk conv window
    CHUNK = RC * WS

    n = pl.program_id(0)
    r = pl.program_id(1)
    n_r = pl.num_programs(1)
    slot = r % 2

    def tile_copy(row_tile, buf_slot):
        start = row_tile * TILE_LANES
        return pltpu.make_async_copy(
            x_hbm.at[n, :, pl.ds(start, BUF_LANES)],
            buf_ref.at[buf_slot],
            sem_ref.at[buf_slot])

    # Double-buffered manual input DMA.  The chain is primed at the first row
    # tile of every image, so it stays correct if the (parallel) batch axis is
    # split across TensorCores on v7x.
    @pl.when(r == 0)
    def _():
        tile_copy(0, 0).start()

    tile_copy(r, slot).wait()

    @pl.when(r + 1 < n_r)
    def _():
        tile_copy(r + 1, 1 - slot).start()

    dwk = dwk_ref[...]
    dwb = dwb_ref[...]
    w1 = w1_ref[...]
    b1 = b1_ref[...]
    w2 = w2_ref[...]
    gb = gb_ref[...]

    # Horizontal border masks (one per kernel column), hoisted out of the dy
    # loop.  Only needed when the lane padding (WS - W) cannot supply the 3
    # zero columns the 7x7 conv needs at the row ends.
    if use_mask:
        col = lax.rem(lax.broadcasted_iota(jnp.int32, (1, WIN), 1), WS)
        masks = [((col >= (PAD - dx)) & (col < (W + PAD - dx)))
                 .astype(jnp.float32) for dx in range(KSIZE)]
    else:
        masks = [None] * KSIZE

    n_chunks = T // RC
    for q in range(n_chunks):
        base = q * RC                                    # first output row

        # --- depthwise 7x7 conv: 7 lane rolls + 128-aligned row slices ---
        win = buf_ref[slot, :, base * WS:(base + RC + 2 * PAD) * WS]
        acc = jnp.zeros((C, CHUNK), jnp.float32)
        for dx in range(KSIZE):
            shift = (PAD - dx) % WIN
            rolled = win if shift == 0 else pltpu.roll(win, shift, axis=1)
            if use_mask and dx != PAD:
                rolled = rolled * masks[dx]
            for dy in range(KSIZE):
                tap = dy * KSIZE + dx
                seg = rolled[:, dy * WS:dy * WS + CHUNK]
                acc = acc + seg * dwk[:, tap:tap + 1]
        acc = acc + dwb

        # --- act -> pwconv1 -> act -> pwconv2 (gamma folded) -> residual ---
        y = _leaky(acc).astype(jnp.bfloat16)                            # (C, CHUNK)
        h = jnp.dot(w1, y, preferred_element_type=jnp.float32)          # (4C, CHUNK)
        h = _leaky(h + b1).astype(jnp.bfloat16)
        z = jnp.dot(w2, h, preferred_element_type=jnp.float32)          # (C, CHUNK)

        res = buf_ref[slot, :, (PAD + base) * WS:(PAD + base + RC) * WS]
        o_ref[0, :, base * WS:base * WS + CHUNK] = res + z + gb


def _pick_rows_per_tile(H, WS, target_lanes=1024):
    cap = max(1, min(H, max(1, target_lanes // WS)))
    for t in range(cap, 0, -1):
        if H % t == 0:
            return t
    return 1


def _pick_rows_chunk(T, WS, target_lanes=512):
    cap = max(1, min(T, max(1, target_lanes // WS)))
    for rc in range(cap, 0, -1):
        if T % rc == 0:
            return rc
    return 1


@jax.jit
def convnext_block(x_nchw, dw_w, dw_b, w1, b1, w2, b2, gamma):
    """ConvNeXt Block forward; PyTorch parameter layouts; NCHW in / NCHW out."""
    N, C, H, W = x_nchw.shape
    WS = _round_up(W, 128)                      # lane-aligned row stride
    T = _pick_rows_per_tile(H, WS)              # rows per grid tile
    RC = _pick_rows_chunk(T, WS)                # rows per MLP/conv chunk
    nR = H // T
    Hp = H + 2 * PAD
    use_mask = (WS - W) < PAD

    # One padded copy in HBM: 3 zero rows top/bottom (vertical conv padding)
    # and lane padding W -> WS.  A no-op in width when W % 128 == 0.
    x_pad = jnp.pad(x_nchw.astype(jnp.float32),
                    ((0, 0), (0, 0), (PAD, PAD), (0, WS - W)))
    x_flat = x_pad.reshape(N, C, Hp * WS)

    dwk = dw_w.reshape(C, KSIZE * KSIZE).astype(jnp.float32)     # (C, 49)
    dwb = dw_b.reshape(C, 1).astype(jnp.float32)
    w1b = w1.astype(jnp.bfloat16)                                # (4C, C)
    b1c = b1.reshape(4 * C, 1).astype(jnp.float32)
    w2g = (gamma[:, None] * w2).astype(jnp.bfloat16)             # (C, 4C)
    gb = (gamma * b2).reshape(C, 1).astype(jnp.float32)

    kern = functools.partial(block_kernel, width=W, ws=WS, rows=T,
                             rows_chunk=RC, use_mask=use_mask)

    out_flat = pl.pallas_call(
        kern,
        out_shape=jax.ShapeDtypeStruct((N, C, H * WS), jnp.float32),
        grid_spec=pltpu.PrefetchScalarGridSpec(
            num_scalar_prefetch=0,
            grid=(N, nR),
            in_specs=[
                pl.BlockSpec(memory_space=pl.ANY),                   # x (HBM)
                pl.BlockSpec((C, KSIZE * KSIZE), lambda n, r: (0, 0)),
                pl.BlockSpec((C, 1), lambda n, r: (0, 0)),
                pl.BlockSpec((4 * C, C), lambda n, r: (0, 0)),
                pl.BlockSpec((4 * C, 1), lambda n, r: (0, 0)),
                pl.BlockSpec((C, 4 * C), lambda n, r: (0, 0)),
                pl.BlockSpec((C, 1), lambda n, r: (0, 0)),
            ],
            out_specs=pl.BlockSpec((1, C, T * WS), lambda n, r: (n, 0, r)),
            scratch_shapes=[
                pltpu.VMEM((2, C, (T + 2 * PAD) * WS), jnp.float32),
                pltpu.SemaphoreType.DMA((2,)),
            ],
        ),
        compiler_params=pltpu.CompilerParams(
            dimension_semantics=("parallel", "arbitrary"),
            vmem_limit_bytes=48 * 1024 * 1024,   # fits v7x (64 MiB physical)
        ),
    )(x_flat, dwk, dwb, w1b, b1c, w2g, gb)

    out = out_flat.reshape(N, C, H, WS)[:, :, :, :W]
    return out


def reference_block(x, dw_w, dw_b, w1, b1, w2, b2, gamma):
    """Pure-JAX/XLA reference mirroring the PyTorch Block.forward (f32)."""
    N, C, H, W = x.shape
    y = lax.conv_general_dilated(
        x.astype(jnp.float32), dw_w.astype(jnp.float32),
        window_strides=(1, 1), padding=((PAD, PAD), (PAD, PAD)),
        dimension_numbers=("NCHW", "OIHW", "NCHW"), feature_group_count=C)
    y = y + dw_b.reshape(1, C, 1, 1)
    t = _leaky(y)
    h = _leaky(jnp.einsum("nchw,dc->ndhw", t, w1) + b1.reshape(1, 4 * C, 1, 1))
    z = jnp.einsum("ndhw,cd->nchw", h, w2) + b2.reshape(1, C, 1, 1)
    return x + gamma.reshape(1, C, 1, 1) * z


def init_params(dim, key, layer_scale_init_value=1e-6):
    """Deterministic parameters in PyTorch layouts for Block(dim)."""
    ks = jax.random.split(key, 6)
    dw_w = jax.random.normal(ks[0], (dim, 1, KSIZE, KSIZE), jnp.float32) * 0.05
    dw_b = jax.random.normal(ks[1], (dim,), jnp.float32) * 0.02
    w1 = jax.random.normal(ks[2], (4 * dim, dim), jnp.float32) * (dim ** -0.5)
    b1 = jax.random.normal(ks[3], (4 * dim,), jnp.float32) * 0.02
    w2 = jax.random.normal(ks[4], (dim, 4 * dim), jnp.float32) * ((4 * dim) ** -0.5)
    b2 = jax.random.normal(ks[5], (dim,), jnp.float32) * 0.02
    gamma = jnp.full((dim,), layer_scale_init_value, jnp.float32)
    return dw_w, dw_b, w1, b1, w2, b2, gamma


if __name__ == "__main__":
    key = jax.random.PRNGKey(0)
    k1, k2, k3, k4 = jax.random.split(key, 4)

    # Case 1: small PyTorch-like NCHW input (W << 128): lane-padded path, no
    # border masks, 2 row tiles per image, 2 MLP chunks per tile.
    N, C, H, W = 2, 16, 16, 16
    x = jax.random.normal(k1, (N, C, H, W), jnp.float32)
    # Non-trivial layer scale so the MLP branch contributes to the check.
    params = init_params(C, k2, layer_scale_init_value=0.2)
    out = jax.block_until_ready(convnext_block(x, *params))
    ref = reference_block(x, *params)
    assert out.shape == (N, C, H, W)
    assert jnp.allclose(out, ref, atol=2e-2, rtol=2e-2), \
        float(jnp.max(jnp.abs(out - ref)))

    # Case 2: W % 128 == 0: fully lane-dense path with in-kernel border masks.
    N2, C2, H2, W2 = 1, 8, 16, 128
    x2 = jax.random.normal(k3, (N2, C2, H2, W2), jnp.float32)
    params2 = init_params(C2, k4, layer_scale_init_value=0.2)
    out2 = jax.block_until_ready(convnext_block(x2, *params2))
    ref2 = reference_block(x2, *params2)
    assert out2.shape == (N2, C2, H2, W2)
    assert jnp.allclose(out2, ref2, atol=2e-2, rtol=2e-2), \
        float(jnp.max(jnp.abs(out2 - ref2)))

    print("KERNEL_OK")
</pallas_src>

<mosaic_0001>
module attributes {stable_mosaic.version = 11 : i64} {
  func.func @block_kernel(%arg0: i32, %arg1: i32, %arg2: memref<2x16x2816xf32, #tpu.memory_space<any>>, %arg3: memref<16x49xf32, #tpu.memory_space<vmem>>, %arg4: memref<16x1xf32, #tpu.memory_space<vmem>>, %arg5: memref<64x16xbf16, #tpu.memory_space<vmem>>, %arg6: memref<64x1xf32, #tpu.memory_space<vmem>>, %arg7: memref<16x64xbf16, #tpu.memory_space<vmem>>, %arg8: memref<16x1xf32, #tpu.memory_space<vmem>>, %arg9: memref<1x16x1024xf32, #tpu.memory_space<vmem>>, %arg10: memref<2x16x1792xf32, #tpu.memory_space<vmem>>, %arg11: memref<2x!tpu.dma_semaphore, #tpu.memory_space<semaphore_mem>>) attributes {dimension_semantics = [#tpu.dimension_semantics<parallel>, #tpu.dimension_semantics<arbitrary>], iteration_bounds = array<i64: 2, 2>, scalar_prefetch = 0 : i64, scratch_operands = 2 : i64, tpu.core_type = #tpu.core_type<tc>, window_params = [{}, {pipeline_mode = #tpu.pipeline_mode<synchronous>, transform_indices = @transform_1, window_bounds = array<i64: 16, 49>}, {pipeline_mode = #tpu.pipeline_mode<synchronous>, transform_indices = @transform_2, window_bounds = array<i64: 16, 1>}, {pipeline_mode = #tpu.pipeline_mode<synchronous>, transform_indices = @transform_3, window_bounds = array<i64: 64, 16>}, {pipeline_mode = #tpu.pipeline_mode<synchronous>, transform_indices = @transform_4, window_bounds = array<i64: 64, 1>}, {pipeline_mode = #tpu.pipeline_mode<synchronous>, transform_indices = @transform_5, window_bounds = array<i64: 16, 64>}, {pipeline_mode = #tpu.pipeline_mode<synchronous>, transform_indices = @transform_6, window_bounds = array<i64: 16, 1>}, {transform_indices = @transform_7, window_bounds = array<i64: 1, 16, 1024>}]} {
    %c2_i32 = arith.constant 2 : i32
    %c0_i32 = arith.constant 0 : i32
    %0 = arith.cmpi eq, %c2_i32, %c0_i32 : i32
    %c1_i32 = arith.constant 1 : i32
    %1 = arith.select %0, %c1_i32, %c2_i32 : i32
    %2 = arith.remsi %arg1, %1 : i32
    %c0_i32_0 = arith.constant 0 : i32
    %3 = arith.cmpi ne, %2, %c0_i32_0 : i32
    %c0_i32_1 = arith.constant 0 : i32
    %4 = arith.cmpi slt, %2, %c0_i32_1 : i32
    %c0_i32_2 = arith.constant 0 : i32
    %5 = arith.cmpi slt, %1, %c0_i32_2 : i32
    %6 = arith.xori %4, %5 : i1
    %7 = arith.andi %6, %3 : i1
    %8 = arith.addi %2, %1 : i32
    %9 = arith.select %7, %8, %2 : i32
    %c0_i32_3 = arith.constant 0 : i32
    %10 = arith.cmpi eq, %arg1, %c0_i32_3 : i32
    %11 = arith.extui %10 : i1 to i32
    %c0_i32_4 = arith.constant 0 : i32
    %12 = arith.cmpi ne, %11, %c0_i32_4 : i32
    scf.if %12 {
      %c0_i32_54 = arith.constant 0 : i32
      %c0_i32_55 = arith.constant 0 : i32
      %c0_i32_56 = arith.constant 0 : i32
      %c0_i32_57 = arith.constant 0 : i32
      %594 = tpu.memref_slice %arg2[%arg0, %c0_i32_56, %c0_i32_57] : memref<2x16x2816xf32, #tpu.memory_space<any>> -> memref<1x16x1792xf32, #tpu.memory_space<any>>
      %595 = tpu.memref_squeeze %594 : memref<1x16x1792xf32, #tpu.memory_space<any>> -> memref<16x1792xf32, #tpu.memory_space<any>>
      %c0_i32_58 = arith.constant 0 : i32
      %c0_i32_59 = arith.constant 0 : i32
      %596 = tpu.memref_slice %arg10[%c0_i32_54, %c0_i32_58, %c0_i32_59] : memref<2x16x1792xf32, #tpu.memory_space<vmem>> -> memref<1x16x1792xf32, #tpu.memory_space<vmem>>
      %597 = tpu.memref_squeeze %596 : memref<1x16x1792xf32, #tpu.memory_space<vmem>> -> memref<16x1792xf32, #tpu.memory_space<vmem>>
      %598 = tpu.memref_slice %arg11[%c0_i32_55] : memref<2x!tpu.dma_semaphore, #tpu.memory_space<semaphore_mem>> -> memref<1x!tpu.dma_semaphore, #tpu.memory_space<semaphore_mem>>
      %599 = tpu.memref_squeeze %598 : memref<1x!tpu.dma_semaphore, #tpu.memory_space<semaphore_mem>> -> memref<!tpu.dma_semaphore, #tpu.memory_space<semaphore_mem>>
      tpu.enqueue_dma source(%595 : memref<16x1792xf32, #tpu.memory_space<any>>) target(%597 : memref<16x1792xf32, #tpu.memory_space<vmem>>) target_semaphore(%599 : memref<!tpu.dma_semaphore, #tpu.memory_space<semaphore_mem>>)
    } else {
    }
    %c1024_i32 = arith.constant 1024 : i32
    %13 = arith.muli %arg1, %c1024_i32 : i32
    %c0_i32_5 = arith.constant 0 : i32
    %14 = tpu.memref_slice %arg2[%arg0, %c0_i32_5, %13] : memref<2x16x2816xf32, #tpu.memory_space<any>> -> memref<1x16x1792xf32, #tpu.memory_space<any>>
    %15 = tpu.memref_squeeze %14 : memref<1x16x1792xf32, #tpu.memory_space<any>> -> memref<16x1792xf32, #tpu.memory_space<any>>
    %c0_i32_6 = arith.constant 0 : i32
    %c0_i32_7 = arith.constant 0 : i32
    %16 = tpu.memref_slice %arg10[%9, %c0_i32_6, %c0_i32_7] : memref<2x16x1792xf32, #tpu.memory_space<vmem>> -> memref<1x16x1792xf32, #tpu.memory_space<vmem>>
    %17 = tpu.memref_squeeze %16 : memref<1x16x1792xf32, #tpu.memory_space<vmem>> -> memref<16x1792xf32, #tpu.memory_space<vmem>>
    %18 = tpu.memref_slice %arg11[%9] : memref<2x!tpu.dma_semaphore, #tpu.memory_space<semaphore_mem>> -> memref<1x!tpu.dma_semaphore, #tpu.memory_space<semaphore_mem>>
    %19 = tpu.memref_squeeze %18 : memref<1x!tpu.dma_semaphore, #tpu.memory_space<semaphore_mem>> -> memref<!tpu.dma_semaphore, #tpu.memory_space<semaphore_mem>>
    tpu.wait_dma2 semaphore(%19 : memref<!tpu.dma_semaphore, #tpu.memory_space<semaphore_mem>>) src(%15 : memref<16x1792xf32, #tpu.memory_space<any>>) dst(%17 : memref<16x1792xf32, #tpu.memory_space<vmem>>)
    %c1_i32_8 = arith.constant 1 : i32
    %20 = arith.addi %arg1, %c1_i32_8 : i32
    %c2_i32_9 = arith.constant 2 : i32
    %21 = arith.cmpi slt, %20, %c2_i32_9 : i32
    %22 = arith.extui %21 : i1 to i32
    %c0_i32_10 = arith.constant 0 : i32
    %23 = arith.cmpi ne, %22, %c0_i32_10 : i32
    scf.if %23 {
      %c1_i32_54 = arith.constant 1 : i32
      %594 = arith.addi %arg1, %c1_i32_54 : i32
      %c1_i32_55 = arith.constant 1 : i32
      %595 = arith.subi %c1_i32_55, %9 : i32
      %c1024_i32_56 = arith.constant 1024 : i32
      %596 = arith.muli %594, %c1024_i32_56 : i32
      %c0_i32_57 = arith.constant 0 : i32
      %597 = tpu.memref_slice %arg2[%arg0, %c0_i32_57, %596] : memref<2x16x2816xf32, #tpu.memory_space<any>> -> memref<1x16x1792xf32, #tpu.memory_space<any>>
      %598 = tpu.memref_squeeze %597 : memref<1x16x1792xf32, #tpu.memory_space<any>> -> memref<16x1792xf32, #tpu.memory_space<any>>
      %c0_i32_58 = arith.constant 0 : i32
      %c0_i32_59 = arith.constant 0 : i32
      %599 = tpu.memref_slice %arg10[%595, %c0_i32_58, %c0_i32_59] : memref<2x16x1792xf32, #tpu.memory_space<vmem>> -> memref<1x16x1792xf32, #tpu.memory_space<vmem>>
      %600 = tpu.memref_squeeze %599 : memref<1x16x1792xf32, #tpu.memory_space<vmem>> -> memref<16x1792xf32, #tpu.memory_space<vmem>>
      %601 = tpu.memref_slice %arg11[%595] : memref<2x!tpu.dma_semaphore, #tpu.memory_space<semaphore_mem>> -> memref<1x!tpu.dma_semaphore, #tpu.memory_space<semaphore_mem>>
      %602 = tpu.memref_squeeze %601 : memref<1x!tpu.dma_semaphore, #tpu.memory_space<semaphore_mem>> -> memref<!tpu.dma_semaphore, #tpu.memory_space<semaphore_mem>>
      tpu.enqueue_dma source(%598 : memref<16x1792xf32, #tpu.memory_space<any>>) target(%600 : memref<16x1792xf32, #tpu.memory_space<vmem>>) target_semaphore(%602 : memref<!tpu.dma_semaphore, #tpu.memory_space<semaphore_mem>>)
    } else {
    }
    %c0 = arith.constant 0 : index
    %c0_11 = arith.constant 0 : index
    %24 = vector.load %arg3[%c0, %c0_11] : memref<16x49xf32, #tpu.memory_space<vmem>>, vector<16x49xf32>
    %c0_12 = arith.constant 0 : index
    %c0_13 = arith.constant 0 : index
    %25 = vector.load %arg4[%c0_12, %c0_13] : memref<16x1xf32, #tpu.memory_space<vmem>>, vector<16x1xf32>
    %c0_14 = arith.constant 0 : index
    %c0_15 = arith.constant 0 : index
    %26 = vector.load %arg5[%c0_14, %c0_15] : memref<64x16xbf16, #tpu.memory_space<vmem>>, vector<64x16xbf16>
    %c0_16 = arith.constant 0 : index
    %c0_17 = arith.constant 0 : index
    %27 = vector.load %arg6[%c0_16, %c0_17] : memref<64x1xf32, #tpu.memory_space<vmem>>, vector<64x1xf32>
    %c0_18 = arith.constant 0 : index
    %c0_19 = arith.constant 0 : index
    %28 = vector.load %arg7[%c0_18, %c0_19] : memref<16x64xbf16, #tpu.memory_space<vmem>>, vector<16x64xbf16>
    %c0_20 = arith.constant 0 : index
    %c0_21 = arith.constant 0 : index
    %29 = vector.load %arg8[%c0_20, %c0_21] : memref<16x1xf32, #tpu.memory_space<vmem>>, vector<16x1xf32>
    %30 = arith.index_cast %9 : i32 to index
    %c0_22 = arith.constant 0 : index
    %c0_23 = arith.constant 0 : index
    %31 = vector.load %arg10[%30, %c0_22, %c0_23] : memref<2x16x1792xf32, #tpu.memory_space<vmem>>, vector<1x16x1280xf32>
    %32 = vector.shape_cast %31 : vector<1x16x1280xf32> to vector<16x1280xf32>
    %cst = arith.constant 0.000000e+00 : f32
    %33 = vector.broadcast %cst : f32 to vector<16x512xf32>
    %c3_i32 = arith.constant 3 : i32
    %34 = tpu.dynamic_rotate %32 by %c3_i32 dim 1 : vector<16x1280xf32>, i32 -> vector<16x1280xf32>
    %35 = vector.extract_strided_slice %34 {offsets = [0, 0], sizes = [16, 512], strides = [1, 1]} : vector<16x1280xf32> to vector<16x512xf32>
    %36 = vector.extract_strided_slice %24 {offsets = [0, 0], sizes = [16, 1], strides = [1, 1]} : vector<16x49xf32> to vector<16x1xf32>
    %37 = vector.broadcast %36 : vector<16x1xf32> to vector<16x512xf32>
    %38 = arith.mulf %35, %37 : vector<16x512xf32>
    %39 = arith.addf %33, %38 : vector<16x512xf32>
    %40 = vector.extract_strided_slice %34 {offsets = [0, 128], sizes = [16, 512], strides = [1, 1]} : vector<16x1280xf32> to vector<16x512xf32>
    %41 = vector.extract_strided_slice %24 {offsets = [0, 7], sizes = [16, 1], strides = [1, 1]} : vector<16x49xf32> to vector<16x1xf32>
    %42 = vector.broadcast %41 : vector<16x1xf32> to vector<16x512xf32>
    %43 = arith.mulf %40, %42 : vector<16x512xf32>
    %44 = arith.addf %39, %43 : vector<16x512xf32>
    %45 = vector.extract_strided_slice %34 {offsets = [0, 256], sizes = [16, 512], strides = [1, 1]} : vector<16x1280xf32> to vector<16x512xf32>
    %46 = vector.extract_strided_slice %24 {offsets = [0, 14], sizes = [16, 1], strides = [1, 1]} : vector<16x49xf32> to vector<16x1xf32>
    %47 = vector.broadcast %46 : vector<16x1xf32> to vector<16x512xf32>
    %48 = arith.mulf %45, %47 : vector<16x512xf32>
    %49 = arith.addf %44, %48 : vector<16x512xf32>
    %50 = vector.extract_strided_slice %34 {offsets = [0, 384], sizes = [16, 512], strides = [1, 1]} : vector<16x1280xf32> to vector<16x512xf32>
    %51 = vector.extract_strided_slice %24 {offsets = [0, 21], sizes = [16, 1], strides = [1, 1]} : vector<16x49xf32> to vector<16x1xf32>
    %52 = vector.broadcast %51 : vector<16x1xf32> to vector<16x512xf32>
    %53 = arith.mulf %50, %52 : vector<16x512xf32>
    %54 = arith.addf %49, %53 : vector<16x512xf32>
    %55 = vector.extract_strided_slice %34 {offsets = [0, 512], sizes = [16, 512], strides = [1, 1]} : vector<16x1280xf32> to vector<16x512xf32>
    %56 = vector.extract_strided_slice %24 {offsets = [0, 28], sizes = [16, 1], strides = [1, 1]} : vector<16x49xf32> to vector<16x1xf32>
    %57 = vector.broadcast %56 : vector<16x1xf32> to vector<16x512xf32>
    %58 = arith.mulf %55, %57 : vector<16x512xf32>
    %59 = arith.addf %54, %58 : vector<16x512xf32>
    %60 = vector.extract_strided_slice %34 {offsets = [0, 640], sizes = [16, 512], strides = [1, 1]} : vector<16x1280xf32> to vector<16x512xf32>
    %61 = vector.extract_strided_slice %24 {offsets = [0, 35], sizes = [16, 1], strides = [1, 1]} : vector<16x49xf32> to vector<16x1xf32>
    %62 = vector.broadcast %61 : vector<16x1xf32> to vector<16x512xf32>
    %63 = arith.mulf %60, %62 : vector<16x512xf32>
    %64 = arith.addf %59, %63 : vector<16x512xf32>
    %65 = vector.extract_strided_slice %34 {offsets = [0, 768], sizes = [16, 512], strides = [1, 1]} : vector<16x1280xf32> to vector<16x512xf32>
    %66 = vector.extract_strided_slice %24 {offsets = [0, 42], sizes = [16, 1], strides = [1, 1]} : vector<16x49xf32> to vector<16x1xf32>
    %67 = vector.broadcast %66 : vector<16x1xf32> to vector<16x512xf32>
    %68 = arith.mulf %65, %67 : vector<16x512xf32>
    %69 = arith.addf %64, %68 : vector<16x512xf32>
    %c2_i32_24 = arith.constant 2 : i32
    %70 = tpu.dynamic_rotate %32 by %c2_i32_24 dim 1 : vector<16x1280xf32>, i32 -> vector<16x1280xf32>
    %71 = vector.extract_strided_slice %70 {offsets = [0, 0], sizes = [16, 512], strides = [1, 1]} : vector<16x1280xf32> to vector<16x512xf32>
    %72 = vector.extract_strided_slice %24 {offsets = [0, 1], sizes = [16, 1], strides = [1, 1]} : vector<16x49xf32> to vector<16x1xf32>
    %73 = vector.broadcast %72 : vector<16x1xf32> to vector<16x512xf32>
    %74 = arith.mulf %71, %73 : vector<16x512xf32>
    %75 = arith.addf %69, %74 : vector<16x512xf32>
    %76 = vector.extract_strided_slice %70 {offsets = [0, 128], sizes = [16, 512], strides = [1, 1]} : vector<16x1280xf32> to vector<16x512xf32>
    %77 = vector.extract_strided_slice %24 {offsets = [0, 8], sizes = [16, 1], strides = [1, 1]} : vector<16x49xf32> to vector<16x1xf32>
    %78 = vector.broadcast %77 : vector<16x1xf32> to vector<16x512xf32>
    %79 = arith.mulf %76, %78 : vector<16x512xf32>
    %80 = arith.addf %75, %79 : vector<16x512xf32>
    %81 = vector.extract_strided_slice %70 {offsets = [0, 256], sizes = [16, 512], strides = [1, 1]} : vector<16x1280xf32> to vector<16x512xf32>
    %82 = vector.extract_strided_slice %24 {offsets = [0, 15], sizes = [16, 1], strides = [1, 1]} : vector<16x49xf32> to vector<16x1xf32>
    %83 = vector.broadcast %82 : vector<16x1xf32> to vector<16x512xf32>
    %84 = arith.mulf %81, %83 : vector<16x512xf32>
    %85 = arith.addf %80, %84 : vector<16x512xf32>
    %86 = vector.extract_strided_slice %70 {offsets = [0, 384], sizes = [16, 512], strides = [1, 1]} : vector<16x1280xf32> to vector<16x512xf32>
    %87 = vector.extract_strided_slice %24 {offsets = [0, 22], sizes = [16, 1], strides = [1, 1]} : vector<16x49xf32> to vector<16x1xf32>
    %88 = vector.broadcast %87 : vector<16x1xf32> to vector<16x512xf32>
    %89 = arith.mulf %86, %88 : vector<16x512xf32>
    %90 = arith.addf %85, %89 : vector<16x512xf32>
    %91 = vector.extract_strided_slice %70 {offsets = [0, 512], sizes = [16, 512], strides = [1, 1]} : vector<16x1280xf32> to vector<16x512xf32>
    %92 = vector.extract_strided_slice %24 {offsets = [0, 29], sizes = [16, 1], strides = [1, 1]} : vector<16x49xf32> to vector<16x1xf32>
    %93 = vector.broadcast %92 : vector<16x1xf32> to vector<16x512xf32>
    %94 = arith.mulf %91, %93 : vector<16x512xf32>
    %95 = arith.addf %90, %94 : vector<16x512xf32>
    %96 = vector.extract_strided_slice %70 {offsets = [0, 640], sizes = [16, 512], strides = [1, 1]} : vector<16x1280xf32> to vector<16x512xf32>
    %97 = vector.extract_strided_slice %24 {offsets = [0, 36], sizes = [16, 1], strides = [1, 1]} : vector<16x49xf32> to vector<16x1xf32>
    %98 = vector.broadcast %97 : vector<16x1xf32> to vector<16x512xf32>
    %99 = arith.mulf %96, %98 : vector<16x512xf32>
    %100 = arith.addf %95, %99 : vector<16x512xf32>
    %101 = vector.extract_strided_slice %70 {offsets = [0, 768], sizes = [16, 512], strides = [1, 1]} : vector<16x1280xf32> to vector<16x512xf32>
    %102 = vector.extract_strided_slice %24 {offsets = [0, 43], sizes = [16, 1], strides = [1, 1]} : vector<16x49xf32> to vector<16x1xf32>
    %103 = vector.broadcast %102 : vector<16x1xf32> to vector<16x512xf32>
    %104 = arith.mulf %101, %103 : vector<16x512xf32>
    %105 = arith.addf %100, %104 : vector<16x512xf32>
    %c1_i32_25 = arith.constant 1 : i32
    %106 = tpu.dynamic_rotate %32 by %c1_i32_25 dim 1 : vector<16x1280xf32>, i32 -> vector<16x1280xf32>
    %107 = vector.extract_strided_slice %106 {offsets = [0, 0], sizes = [16, 512], strides = [1, 1]} : vector<16x1280xf32> to vector<16x512xf32>
    %108 = vector.extract_strided_slice %24 {offsets = [0, 2], sizes = [16, 1], strides = [1, 1]} : vector<16x49xf32> to vector<16x1xf32>
    %109 = vector.broadcast %108 : vector<16x1xf32> to vector<16x512xf32>
    %110 = arith.mulf %107, %109 : vector<16x512xf32>
    %111 = arith.addf %105, %110 : vector<16x512xf32>
    %112 = vector.extract_strided_slice %106 {offsets = [0, 128], sizes = [16, 512], strides = [1, 1]} : vector<16x1280xf32> to vector<16x512xf32>
    %113 = vector.extract_strided_slice %24 {offsets = [0, 9], sizes = [16, 1], strides = [1, 1]} : vector<16x49xf32> to vector<16x1xf32>
    %114 = vector.broadcast %113 : vector<16x1xf32> to vector<16x512xf32>
    %115 = arith.mulf %112, %114 : vector<16x512xf32>
    %116 = arith.addf %111, %115 : vector<16x512xf32>
    %117 = vector.extract_strided_slice %106 {offsets = [0, 256], sizes = [16, 512], strides = [1, 1]} : vector<16x1280xf32> to vector<16x512xf32>
    %118 = vector.extract_strided_slice %24 {offsets = [0, 16], sizes = [16, 1], strides = [1, 1]} : vector<16x49xf32> to vector<16x1xf32>
    %119 = vector.broadcast %118 : vector<16x1xf32> to vector<16x512xf32>
    %120 = arith.mulf %117, %119 : vector<16x512xf32>
    %121 = arith.addf %116, %120 : vector<16x512xf32>
    %122 = vector.extract_strided_slice %106 {offsets = [0, 384], sizes = [16, 512], strides = [1, 1]} : vector<16x1280xf32> to vector<16x512xf32>
    %123 = vector.extract_strided_slice %24 {offsets = [0, 23], sizes = [16, 1], strides = [1, 1]} : vector<16x49xf32> to vector<16x1xf32>
    %124 = vector.broadcast %123 : vector<16x1xf32> to vector<16x512xf32>
    %125 = arith.mulf %122, %124 : vector<16x512xf32>
    %126 = arith.addf %121, %125 : vector<16x512xf32>
    %127 = vector.extract_strided_slice %106 {offsets = [0, 512], sizes = [16, 512], strides = [1, 1]} : vector<16x1280xf32> to vector<16x512xf32>
    %128 = vector.extract_strided_slice %24 {offsets = [0, 30], sizes = [16, 1], strides = [1, 1]} : vector<16x49xf32> to vector<16x1xf32>
    %129 = vector.broadcast %128 : vector<16x1xf32> to vector<16x512xf32>
    %130 = arith.mulf %127, %129 : vector<16x512xf32>
    %131 = arith.addf %126, %130 : vector<16x512xf32>
    %132 = vector.extract_strided_slice %106 {offsets = [0, 640], sizes = [16, 512], strides = [1, 1]} : vector<16x1280xf32> to vector<16x512xf32>
    %133 = vector.extract_strided_slice %24 {offsets = [0, 37], sizes = [16, 1], strides = [1, 1]} : vector<16x49xf32> to vector<16x1xf32>
    %134 = vector.broadcast %133 : vector<16x1xf32> to vector<16x512xf32>
    %135 = arith.mulf %132, %134 : vector<16x512xf32>
    %136 = arith.addf %131, %135 : vector<16x512xf32>
    %137 = vector.extract_strided_slice %106 {offsets = [0, 768], sizes = [16, 512], strides = [1, 1]} : vector<16x1280xf32> to vector<16x512xf32>
    %138 = vector.extract_strided_slice %24 {offsets = [0, 44], sizes = [16, 1], strides = [1, 1]} : vector<16x49xf32> to vector<16x1xf32>
    %139 = vector.broadcast %138 : vector<16x1xf32> to vector<16x512xf32>
    %140 = arith.mulf %137, %139 : vector<16x512xf32>
    %141 = arith.addf %136, %140 : vector<16x512xf32>
    %142 = vector.extract_strided_slice %32 {offsets = [0, 0], sizes = [16, 512], strides = [1, 1]} : vector<16x1280xf32> to vector<16x512xf32>
    %143 = vector.extract_strided_slice %24 {offsets = [0, 3], sizes = [16, 1], strides = [1, 1]} : vector<16x49xf32> to vector<16x1xf32>
    %144 = vector.broadcast %143 : vector<16x1xf32> to vector<16x512xf32>
    %145 = arith.mulf %142, %144 : vector<16x512xf32>
    %146 = arith.addf %141, %145 : vector<16x512xf32>
    %147 = vector.extract_strided_slice %32 {offsets = [0, 128], sizes = [16, 512], strides = [1, 1]} : vector<16x1280xf32> to vector<16x512xf32>
    %148 = vector.extract_strided_slice %24 {offsets = [0, 10], sizes = [16, 1], strides = [1, 1]} : vector<16x49xf32> to vector<16x1xf32>
    %149 = vector.broadcast %148 : vector<16x1xf32> to vector<16x512xf32>
    %150 = arith.mulf %147, %149 : vector<16x512xf32>
    %151 = arith.addf %146, %150 : vector<16x512xf32>
    %152 = vector.extract_strided_slice %32 {offsets = [0, 256], sizes = [16, 512], strides = [1, 1]} : vector<16x1280xf32> to vector<16x512xf32>
    %153 = vector.extract_strided_slice %24 {offsets = [0, 17], sizes = [16, 1], strides = [1, 1]} : vector<16x49xf32> to vector<16x1xf32>
    %154 = vector.broadcast %153 : vector<16x1xf32> to vector<16x512xf32>
    %155 = arith.mulf %152, %154 : vector<16x512xf32>
    %156 = arith.addf %151, %155 : vector<16x512xf32>
    %157 = vector.extract_strided_slice %32 {offsets = [0, 384], sizes = [16, 512], strides = [1, 1]} : vector<16x1280xf32> to vector<16x512xf32>
    %158 = vector.extract_strided_slice %24 {offsets = [0, 24], sizes = [16, 1], strides = [1, 1]} : vector<16x49xf32> to vector<16x1xf32>
    %159 = vector.broadcast %158 : vector<16x1xf32> to vector<16x512xf32>
    %160 = arith.mulf %157, %159 : vector<16x512xf32>
    %161 = arith.addf %156, %160 : vector<16x512xf32>
    %162 = vector.extract_strided_slice %32 {offsets = [0, 512], sizes = [16, 512], strides = [1, 1]} : vector<16x1280xf32> to vector<16x512xf32>
    %163 = vector.extract_strided_slice %24 {offsets = [0, 31], sizes = [16, 1], strides = [1, 1]} : vector<16x49xf32> to vector<16x1xf32>
    %164 = vector.broadcast %163 : vector<16x1xf32> to vector<16x512xf32>
    %165 = arith.mulf %162, %164 : vector<16x512xf32>
    %166 = arith.addf %161, %165 : vector<16x512xf32>
    %167 = vector.extract_strided_slice %32 {offsets = [0, 640], sizes = [16, 512], strides = [1, 1]} : vector<16x1280xf32> to vector<16x512xf32>
    %168 = vector.extract_strided_slice %24 {offsets = [0, 38], sizes = [16, 1], strides = [1, 1]} : vector<16x49xf32> to vector<16x1xf32>
    %169 = vector.broadcast %168 : vector<16x1xf32> to vector<16x512xf32>
    %170 = arith.mulf %167, %169 : vector<16x512xf32>
    %171 = arith.addf %166, %170 : vector<16x512xf32>
    %172 = vector.extract_strided_slice %32 {offsets = [0, 768], sizes = [16, 512], strides = [1, 1]} : vector<16x1280xf32> to vector<16x512xf32>
    %173 = vector.extract_strided_slice %24 {offsets = [0, 45], sizes = [16, 1], strides = [1, 1]} : vector<16x49xf32> to vector<16x1xf32>
    %174 = vector.broadcast %173 : vector<16x1xf32> to vector<16x512xf32>
    %175 = arith.mulf %172, %174 : vector<16x512xf32>
    %176 = arith.addf %171, %175 : vector<16x512xf32>
    %c1279_i32 = arith.constant 1279 : i32
    %177 = tpu.dynamic_rotate %32 by %c1279_i32 dim 1 : vector<16x1280xf32>, i32 -> vector<16x1280xf32>
    %178 = vector.extract_strided_slice %177 {offsets = [0, 0], sizes = [16, 512], strides = [1, 1]} : vector<16x1280xf32> to vector<16x512xf32>
    %179 = vector.extract_strided_slice %24 {offsets = [0, 4], sizes = [16, 1], strides = [1, 1]} : vector<16x49xf32> to vector<16x1xf32>
    %180 = vector.broadcast %179 : vector<16x1xf32> to vector<16x512xf32>
    %181 = arith.mulf %178, %180 : vector<16x512xf32>
    %182 = arith.addf %176, %181 : vector<16x512xf32>
    %183 = vector.extract_strided_slice %177 {offsets = [0, 128], sizes = [16, 512], strides = [1, 1]} : vector<16x1280xf32> to vector<16x512xf32>
    %184 = vector.extract_strided_slice %24 {offsets = [0, 11], sizes = [16, 1], strides = [1, 1]} : vector<16x49xf32> to vector<16x1xf32>
    %185 = vector.broadcast %184 : vector<16x1xf32> to vector<16x512xf32>
    %186 = arith.mulf %183, %185 : vector<16x512xf32>
    %187 = arith.addf %182, %186 : vector<16x512xf32>
    %188 = vector.extract_strided_slice %177 {offsets = [0, 256], sizes = [16, 512], strides = [1, 1]} : vector<16x1280xf32> to vector<16x512xf32>
    %189 = vector.extract_strided_slice %24 {offsets = [0, 18], sizes = [16, 1], strides = [1, 1]} : vector<16x49xf32> to vector<16x1xf32>
    %190 = vector.broadcast %189 : vector<16x1xf32> to vector<16x512xf32>
    %191 = arith.mulf %188, %190 : vector<16x512xf32>
    %192 = arith.addf %187, %191 : vector<16x512xf32>
    %193 = vector.extract_strided_slice %177 {offsets = [0, 384], sizes = [16, 512], strides = [1, 1]} : vector<16x1280xf32> to vector<16x512xf32>
    %194 = vector.extract_strided_slice %24 {offsets = [0, 25], sizes = [16, 1], strides = [1, 1]} : vector<16x49xf32> to vector<16x1xf32>
    %195 = vector.broadcast %194 : vector<16x1xf32> to vector<16x512xf32>
    %196 = arith.mulf %193, %195 : vector<16x512xf32>
    %197 = arith.addf %192, %196 : vector<16x512xf32>
    %198 = vector.extract_strided_slice %177 {offsets = [0, 512], sizes = [16, 512], strides = [1, 1]} : vector<16x1280xf32> to vector<16x512xf32>
    %199 = vector.extract_strided_slice %24 {offsets = [0, 32], sizes = [16, 1], strides = [1, 1]} : vector<16x49xf32> to vector<16x1xf32>
    %200 = vector.broadcast %199 : vector<16x1xf32> to vector<16x512xf32>
    %201 = arith.mulf %198, %200 : vector<16x512xf32>
    %202 = arith.addf %197, %201 : vector<16x512xf32>
    %203 = vector.extract_strided_slice %177 {offsets = [0, 640], sizes = [16, 512], strides = [1, 1]} : vector<16x1280xf32> to vector<16x512xf32>
    %204 = vector.extract_strided_slice %24 {offsets = [0, 39], sizes = [16, 1], strides = [1, 1]} : vector<16x49xf32> to vector<16x1xf32>
    %205 = vector.broadcast %204 : vector<16x1xf32> to vector<16x512xf32>
    %206 = arith.mulf %203, %205 : vector<16x512xf32>
    %207 = arith.addf %202, %206 : vector<16x512xf32>
    %208 = vector.extract_strided_slice %177 {offsets = [0, 768], sizes = [16, 512], strides = [1, 1]} : vector<16x1280xf32> to vector<16x512xf32>
    %209 = vector.extract_strided_slice %24 {offsets = [0, 46], sizes = [16, 1], strides = [1, 1]} : vector<16x49xf32> to vector<16x1xf32>
    %210 = vector.broadcast %209 : vector<16x1xf32> to vector<16x512xf32>
    %211 = arith.mulf %208, %210 : vector<16x512xf32>
    %212 = arith.addf %207, %211 : vector<16x512xf32>
    %c1278_i32 = arith.constant 1278 : i32
    %213 = tpu.dynamic_rotate %32 by %c1278_i32 dim 1 : vector<16x1280xf32>, i32 -> vector<16x1280xf32>
    %214 = vector.extract_strided_slice %213 {offsets = [0, 0], sizes = [16, 512], strides = [1, 1]} : vector<16x1280xf32> to vector<16x512xf32>
    %215 = vector.extract_strided_slice %24 {offsets = [0, 5], sizes = [16, 1], strides = [1, 1]} : vector<16x49xf32> to vector<16x1xf32>
    %216 = vector.broadcast %215 : vector<16x1xf32> to vector<16x512xf32>
    %217 = arith.mulf %214, %216 : vector<16x512xf32>
    %218 = arith.addf %212, %217 : vector<16x512xf32>
    %219 = vector.extract_strided_slice %213 {offsets = [0, 128], sizes = [16, 512], strides = [1, 1]} : vector<16x1280xf32> to vector<16x512xf32>
    %220 = vector.extract_strided_slice %24 {offsets = [0, 12], sizes = [16, 1], strides = [1, 1]} : vector<16x49xf32> to vector<16x1xf32>
    %221 = vector.broadcast %220 : vector<16x1xf32> to vector<16x512xf32>
    %222 = arith.mulf %219, %221 : vector<16x512xf32>
    %223 = arith.addf %218, %222 : vector<16x512xf32>
    %224 = vector.extract_strided_slice %213 {offsets = [0, 256], sizes = [16, 512], strides = [1, 1]} : vector<16x1280xf32> to vector<16x512xf32>
    %225 = vector.extract_strided_slice %24 {offsets = [0, 19], sizes = [16, 1], strides = [1, 1]} : vector<16x49xf32> to vector<16x1xf32>
    %226 = vector.broadcast %225 : vector<16x1xf32> to vector<16x512xf32>
    %227 = arith.mulf %224, %226 : vector<16x512xf32>
    %228 = arith.addf %223, %227 : vector<16x512xf32>
    %229 = vector.extract_strided_slice %213 {offsets = [0, 384], sizes = [16, 512], strides = [1, 1]} : vector<16x1280xf32> to vector<16x512xf32>
    %230 = vector.extract_strided_slice %24 {offsets = [0, 26], sizes = [16, 1], strides = [1, 1]} : vector<16x49xf32> to vector<16x1xf32>
    %231 = vector.broadcast %230 : vector<16x1xf32> to vector<16x512xf32>
    %232 = arith.mulf %229, %231 : vector<16x512xf32>
    %233 = arith.addf %228, %232 : vector<16x512xf32>
    %234 = vector.extract_strided_slice %213 {offsets = [0, 512], sizes = [16, 512], strides = [1, 1]} : vector<16x1280xf32> to vector<16x512xf32>
    %235 = vector.extract_strided_slice %24 {offsets = [0, 33], sizes = [16, 1], strides = [1, 1]} : vector<16x49xf32> to vector<16x1xf32>
    %236 = vector.broadcast %235 : vector<16x1xf32> to vector<16x512xf32>
    %237 = arith.mulf %234, %236 : vector<16x512xf32>
    %238 = arith.addf %233, %237 : vector<16x512xf32>
    %239 = vector.extract_strided_slice %213 {offsets = [0, 640], sizes = [16, 512], strides = [1, 1]} : vector<16x1280xf32> to vector<16x512xf32>
    %240 = vector.extract_strided_slice %24 {offsets = [0, 40], sizes = [16, 1], strides = [1, 1]} : vector<16x49xf32> to vector<16x1xf32>
    %241 = vector.broadcast %240 : vector<16x1xf32> to vector<16x512xf32>
    %242 = arith.mulf %239, %241 : vector<16x512xf32>
    %243 = arith.addf %238, %242 : vector<16x512xf32>
    %244 = vector.extract_strided_slice %213 {offsets = [0, 768], sizes = [16, 512], strides = [1, 1]} : vector<16x1280xf32> to vector<16x512xf32>
    %245 = vector.extract_strided_slice %24 {offsets = [0, 47], sizes = [16, 1], strides = [1, 1]} : vector<16x49xf32> to vector<16x1xf32>
    %246 = vector.broadcast %245 : vector<16x1xf32> to vector<16x512xf32>
    %247 = arith.mulf %244, %246 : vector<16x512xf32>
    %248 = arith.addf %243, %247 : vector<16x512xf32>
    %c1277_i32 = arith.constant 1277 : i32
    %249 = tpu.dynamic_rotate %32 by %c1277_i32 dim 1 : vector<16x1280xf32>, i32 -> vector<16x1280xf32>
    %250 = vector.extract_strided_slice %249 {offsets = [0, 0], sizes = [16, 512], strides = [1, 1]} : vector<16x1280xf32> to vector<16x512xf32>
    %251 = vector.extract_strided_slice %24 {offsets = [0, 6], sizes = [16, 1], strides = [1, 1]} : vector<16x49xf32> to vector<16x1xf32>
    %252 = vector.broadcast %251 : vector<16x1xf32> to vector<16x512xf32>
    %253 = arith.mulf %250, %252 : vector<16x512xf32>
    %254 = arith.addf %248, %253 : vector<16x512xf32>
    %255 = vector.extract_strided_slice %249 {offsets = [0, 128], sizes = [16, 512], strides = [1, 1]} : vector<16x1280xf32> to vector<16x512xf32>
    %256 = vector.extract_strided_slice %24 {offsets = [0, 13], sizes = [16, 1], strides = [1, 1]} : vector<16x49xf32> to vector<16x1xf32>
    %257 = vector.broadcast %256 : vector<16x1xf32> to vector<16x512xf32>
    %258 = arith.mulf %255, %257 : vector<16x512xf32>
    %259 = arith.addf %254, %258 : vector<16x512xf32>
    %260 = vector.extract_strided_slice %249 {offsets = [0, 256], sizes = [16, 512], strides = [1, 1]} : vector<16x1280xf32> to vector<16x512xf32>
    %261 = vector.extract_strided_slice %24 {offsets = [0, 20], sizes = [16, 1], strides = [1, 1]} : vector<16x49xf32> to vector<16x1xf32>
    %262 = vector.broadcast %261 : vector<16x1xf32> to vector<16x512xf32>
    %263 = arith.mulf %260, %262 : vector<16x512xf32>
    %264 = arith.addf %259, %263 : vector<16x512xf32>
    %265 = vector.extract_strided_slice %249 {offsets = [0, 384], sizes = [16, 512], strides = [1, 1]} : vector<16x1280xf32> to vector<16x512xf32>
    %266 = vector.extract_strided_slice %24 {offsets = [0, 27], sizes = [16, 1], strides = [1, 1]} : vector<16x49xf32> to vector<16x1xf32>
    %267 = vector.broadcast %266 : vector<16x1xf32> to vector<16x512xf32>
    %268 = arith.mulf %265, %267 : vector<16x512xf32>
    %269 = arith.addf %264, %268 : vector<16x512xf32>
    %270 = vector.extract_strided_slice %249 {offsets = [0, 512], sizes = [16, 512], strides = [1, 1]} : vector<16x1280xf32> to vector<16x512xf32>
    %271 = vector.extract_strided_slice %24 {offsets = [0, 34], sizes = [16, 1], strides = [1, 1]} : vector<16x49xf32> to vector<16x1xf32>
    %272 = vector.broadcast %271 : vector<16x1xf32> to vector<16x512xf32>
    %273 = arith.mulf %270, %272 : vector<16x512xf32>
    %274 = arith.addf %269, %273 : vector<16x512xf32>
    %275 = vector.extract_strided_slice %249 {offsets = [0, 640], sizes = [16, 512], strides = [1, 1]} : vector<16x1280xf32> to vector<16x512xf32>
    %276 = vector.extract_strided_slice %24 {offsets = [0, 41], sizes = [16, 1], strides = [1, 1]} : vector<16x49xf32> to vector<16x1xf32>
    %277 = vector.broadcast %276 : vector<16x1xf32> to vector<16x512xf32>
    %278 = arith.mulf %275, %277 : vector<16x512xf32>
    %279 = arith.addf %274, %278 : vector<16x512xf32>
    %280 = vector.extract_strided_slice %249 {offsets = [0, 768], sizes = [16, 512], strides = [1, 1]} : vector<16x1280xf32> to vector<16x512xf32>
    %281 = vector.extract_strided_slice %24 {offsets = [0, 48], sizes = [16, 1], strides = [1, 1]} : vector<16x49xf32> to vector<16x1xf32>
    %282 = vector.broadcast %281 : vector<16x1xf32> to vector<16x512xf32>
    %283 = arith.mulf %280, %282 : vector<16x512xf32>
    %284 = arith.addf %279, %283 : vector<16x512xf32>
    %285 = vector.broadcast %25 : vector<16x1xf32> to vector<16x512xf32>
    %286 = arith.addf %284, %285 : vector<16x512xf32>
    %cst_26 = arith.constant 0.000000e+00 : f32
    %287 = vector.broadcast %cst_26 : f32 to vector<16x512xf32>
    %288 = arith.cmpf oge, %286, %287 : vector<16x512xf32>
    %cst_27 = arith.constant 5.000000e-02 : f32
    %289 = vector.broadcast %cst_27 : f32 to vector<16x512xf32>
    %290 = arith.mulf %289, %286 : vector<16x512xf32>
    %291 = arith.select %288, %286, %290 : vector<16x512xi1>, vector<16x512xf32>
    %292 = arith.truncf %291 : vector<16x512xf32> to vector<16x512xbf16>
    %cst_28 = arith.constant dense<0.000000e+00> : vector<64x512xf32>
    %293 = tpu.matmul %26, %292, %cst_28 {dimension_numbers = #tpu.dot_dimension_numbers<[1], [0], [0], [1], [0, 0, 1, 1], [], []>} : vector<64x16xbf16>, vector<16x512xbf16>, vector<64x512xf32> -> vector<64x512xf32>
    %294 = vector.broadcast %27 : vector<64x1xf32> to vector<64x512xf32>
    %295 = arith.addf %293, %294 : vector<64x512xf32>
    %cst_29 = arith.constant 0.000000e+00 : f32
    %296 = vector.broadcast %cst_29 : f32 to vector<64x512xf32>
    %297 = arith.cmpf oge, %295, %296 : vector<64x512xf32>
    %cst_30 = arith.constant 5.000000e-02 : f32
    %298 = vector.broadcast %cst_30 : f32 to vector<64x512xf32>
    %299 = arith.mulf %298, %295 : vector<64x512xf32>
    %300 = arith.select %297, %295, %299 : vector<64x512xi1>, vector<64x512xf32>
    %301 = arith.truncf %300 : vector<64x512xf32> to vector<64x512xbf16>
    %cst_31 = arith.constant dense<0.000000e+00> : vector<16x512xf32>
    %302 = tpu.matmul %28, %301, %cst_31 {dimension_numbers = #tpu.dot_dimension_numbers<[1], [0], [0], [1], [0, 0, 1, 1], [], []>} : vector<16x64xbf16>, vector<64x512xbf16>, vector<16x512xf32> -> vector<16x512xf32>
    %303 = arith.index_cast %9 : i32 to index
    %c0_32 = arith.constant 0 : index
    %c384 = arith.constant 384 : index
    %304 = vector.load %arg10[%303, %c0_32, %c384] : memref<2x16x1792xf32, #tpu.memory_space<vmem>>, vector<1x16x512xf32>
    %305 = vector.shape_cast %304 : vector<1x16x512xf32> to vector<16x512xf32>
    %306 = arith.addf %305, %302 : vector<16x512xf32>
    %307 = vector.broadcast %29 : vector<16x1xf32> to vector<16x512xf32>
    %308 = arith.addf %306, %307 : vector<16x512xf32>
    %c0_33 = arith.constant 0 : index
    %c0_34 = arith.constant 0 : index
    %c0_35 = arith.constant 0 : index
    %309 = vector.load %arg9[%c0_33, %c0_34, %c0_35] : memref<1x16x1024xf32, #tpu.memory_space<vmem>>, vector<1x16x512xf32>
    %310 = vector.shape_cast %309 : vector<1x16x512xf32> to vector<16x512xf32>
    %311 = vector.shape_cast %308 : vector<16x512xf32> to vector<1x16x512xf32>
    tpu.vector_store %arg9[%c0_33, %c0_34, %c0_35], %311 {strides = array<i32>} : memref<1x16x1024xf32, #tpu.memory_space<vmem>>, vector<1x16x512xf32>,
    %312 = arith.index_cast %9 : i32 to index
    %c0_36 = arith.constant 0 : index
    %c512 = arith.constant 512 : index
    %313 = vector.load %arg10[%312, %c0_36, %c512] : memref<2x16x1792xf32, #tpu.memory_space<vmem>>, vector<1x16x1280xf32>
    %314 = vector.shape_cast %313 : vector<1x16x1280xf32> to vector<16x1280xf32>
    %cst_37 = arith.constant 0.000000e+00 : f32
    %315 = vector.broadcast %cst_37 : f32 to vector<16x512xf32>
    %c3_i32_38 = arith.constant 3 : i32
    %316 = tpu.dynamic_rotate %314 by %c3_i32_38 dim 1 : vector<16x1280xf32>, i32 -> vector<16x1280xf32>
    %317 = vector.extract_strided_slice %316 {offsets = [0, 0], sizes = [16, 512], strides = [1, 1]} : vector<16x1280xf32> to vector<16x512xf32>
    %318 = vector.extract_strided_slice %24 {offsets = [0, 0], sizes = [16, 1], strides = [1, 1]} : vector<16x49xf32> to vector<16x1xf32>
    %319 = vector.broadcast %318 : vector<16x1xf32> to vector<16x512xf32>
    %320 = arith.mulf %317, %319 : vector<16x512xf32>
    %321 = arith.addf %315, %320 : vector<16x512xf32>
    %322 = vector.extract_strided_slice %316 {offsets = [0, 128], sizes = [16, 512], strides = [1, 1]} : vector<16x1280xf32> to vector<16x512xf32>
    %323 = vector.extract_strided_slice %24 {offsets = [0, 7], sizes = [16, 1], strides = [1, 1]} : vector<16x49xf32> to vector<16x1xf32>
    %324 = vector.broadcast %323 : vector<16x1xf32> to vector<16x512xf32>
    %325 = arith.mulf %322, %324 : vector<16x512xf32>
    %326 = arith.addf %321, %325 : vector<16x512xf32>
    %327 = vector.extract_strided_slice %316 {offsets = [0, 256], sizes = [16, 512], strides = [1, 1]} : vector<16x1280xf32> to vector<16x512xf32>
    %328 = vector.extract_strided_slice %24 {offsets = [0, 14], sizes = [16, 1], strides = [1, 1]} : vector<16x49xf32> to vector<16x1xf32>
    %329 = vector.broadcast %328 : vector<16x1xf32> to vector<16x512xf32>
    %330 = arith.mulf %327, %329 : vector<16x512xf32>
    %331 = arith.addf %326, %330 : vector<16x512xf32>
    %332 = vector.extract_strided_slice %316 {offsets = [0, 384], sizes = [16, 512], strides = [1, 1]} : vector<16x1280xf32> to vector<16x512xf32>
    %333 = vector.extract_strided_slice %24 {offsets = [0, 21], sizes = [16, 1], strides = [1, 1]} : vector<16x49xf32> to vector<16x1xf32>
    %334 = vector.broadcast %333 : vector<16x1xf32> to vector<16x512xf32>
    %335 = arith.mulf %332, %334 : vector<16x512xf32>
    %336 = arith.addf %331, %335 : vector<16x512xf32>
    %337 = vector.extract_strided_slice %316 {offsets = [0, 512], sizes = [16, 512], strides = [1, 1]} : vector<16x1280xf32> to vector<16x512xf32>
    %338 = vector.extract_strided_slice %24 {offsets = [0, 28], sizes = [16, 1], strides = [1, 1]} : vector<16x49xf32> to vector<16x1xf32>
    %339 = vector.broadcast %338 : vector<16x1xf32> to vector<16x512xf32>
    %340 = arith.mulf %337, %339 : vector<16x512xf32>
    %341 = arith.addf %336, %340 : vector<16x512xf32>
    %342 = vector.extract_strided_slice %316 {offsets = [0, 640], sizes = [16, 512], strides = [1, 1]} : vector<16x1280xf32> to vector<16x512xf32>
    %343 = vector.extract_strided_slice %24 {offsets = [0, 35], sizes = [16, 1], strides = [1, 1]} : vector<16x49xf32> to vector<16x1xf32>
    %344 = vector.broadcast %343 : vector<16x1xf32> to vector<16x512xf32>
    %345 = arith.mulf %342, %344 : vector<16x512xf32>
    %346 = arith.addf %341, %345 : vector<16x512xf32>
    %347 = vector.extract_strided_slice %316 {offsets = [0, 768], sizes = [16, 512], strides = [1, 1]} : vector<16x1280xf32> to vector<16x512xf32>
    %348 = vector.extract_strided_slice %24 {offsets = [0, 42], sizes = [16, 1], strides = [1, 1]} : vector<16x49xf32> to vector<16x1xf32>
    %349 = vector.broadcast %348 : vector<16x1xf32> to vector<16x512xf32>
    %350 = arith.mulf %347, %349 : vector<16x512xf32>
    %351 = arith.addf %346, %350 : vector<16x512xf32>
    %c2_i32_39 = arith.constant 2 : i32
    %352 = tpu.dynamic_rotate %314 by %c2_i32_39 dim 1 : vector<16x1280xf32>, i32 -> vector<16x1280xf32>
    %353 = vector.extract_strided_slice %352 {offsets = [0, 0], sizes = [16, 512], strides = [1, 1]} : vector<16x1280xf32> to vector<16x512xf32>
    %354 = vector.extract_strided_slice %24 {offsets = [0, 1], sizes = [16, 1], strides = [1, 1]} : vector<16x49xf32> to vector<16x1xf32>
    %355 = vector.broadcast %354 : vector<16x1xf32> to vector<16x512xf32>
    %356 = arith.mulf %353, %355 : vector<16x512xf32>
    %357 = arith.addf %351, %356 : vector<16x512xf32>
    %358 = vector.extract_strided_slice %352 {offsets = [0, 128], sizes = [16, 512], strides = [1, 1]} : vector<16x1280xf32> to vector<16x512xf32>
    %359 = vector.extract_strided_slice %24 {offsets = [0, 8], sizes = [16, 1], strides = [1, 1]} : vector<16x49xf32> to vector<16x1xf32>
    %360 = vector.broadcast %359 : vector<16x1xf32> to vector<16x512xf32>
    %361 = arith.mulf %358, %360 : vector<16x512xf32>
    %362 = arith.addf %357, %361 : vector<16x512xf32>
    %363 = vector.extract_strided_slice %352 {offsets = [0, 256], sizes = [16, 512], strides = [1, 1]} : vector<16x1280xf32> to vector<16x512xf32>
    %364 = vector.extract_strided_slice %24 {offsets = [0, 15], sizes = [16, 1], strides = [1, 1]} : vector<16x49xf32> to vector<16x1xf32>
    %365 = vector.broadcast %364 : vector<16x1xf32> to vector<16x512xf32>
    %366 = arith.mulf %363, %365 : vector<16x512xf32>
    %367 = arith.addf %362, %366 : vector<16x512xf32>
    %368 = vector.extract_strided_slice %352 {offsets = [0, 384], sizes = [16, 512], strides = [1, 1]} : vector<16x1280xf32> to vector<16x512xf32>
    %369 = vector.extract_strided_slice %24 {offsets = [0, 22], sizes = [16, 1], strides = [1, 1]} : vector<16x49xf32> to vector<16x1xf32>
    %370 = vector.broadcast %369 : vector<16x1xf32> to vector<16x512xf32>
    %371 = arith.mulf %368, %370 : vector<16x512xf32>
    %372 = arith.addf %367, %371 : vector<16x512xf32>
    %373 = vector.extract_strided_slice %352 {offsets = [0, 512], sizes = [16, 512], strides = [1, 1]} : vector<16x1280xf32> to vector<16x512xf32>
    %374 = vector.extract_strided_slice %24 {offsets = [0, 29], sizes = [16, 1], strides = [1, 1]} : vector<16x49xf32> to vector<16x1xf32>
    %375 = vector.broadcast %374 : vector<16x1xf32> to vector<16x512xf32>
    %376 = arith.mulf %373, %375 : vector<16x512xf32>
    %377 = arith.addf %372, %376 : vector<16x512xf32>
    %378 = vector.extract_strided_slice %352 {offsets = [0, 640], sizes = [16, 512], strides = [1, 1]} : vector<16x1280xf32> to vector<16x512xf32>
    %379 = vector.extract_strided_slice %24 {offsets = [0, 36], sizes = [16, 1], strides = [1, 1]} : vector<16x49xf32> to vector<16x1xf32>
    %380 = vector.broadcast %379 : vector<16x1xf32> to vector<16x512xf32>
    %381 = arith.mulf %378, %380 : vector<16x512xf32>
    %382 = arith.addf %377, %381 : vector<16x512xf32>
    %383 = vector.extract_strided_slice %352 {offsets = [0, 768], sizes = [16, 512], strides = [1, 1]} : vector<16x1280xf32> to vector<16x512xf32>
    %384 = vector.extract_strided_slice %24 {offsets = [0, 43], sizes = [16, 1], strides = [1, 1]} : vector<16x49xf32> to vector<16x1xf32>
    %385 = vector.broadcast %384 : vector<16x1xf32> to vector<16x512xf32>
    %386 = arith.mulf %383, %385 : vector<16x512xf32>
    %387 = arith.addf %382, %386 : vector<16x512xf32>
    %c1_i32_40 = arith.constant 1 : i32
    %388 = tpu.dynamic_rotate %314 by %c1_i32_40 dim 1 : vector<16x1280xf32>, i32 -> vector<16x1280xf32>
    %389 = vector.extract_strided_slice %388 {offsets = [0, 0], sizes = [16, 512], strides = [1, 1]} : vector<16x1280xf32> to vector<16x512xf32>
    %390 = vector.extract_strided_slice %24 {offsets = [0, 2], sizes = [16, 1], strides = [1, 1]} : vector<16x49xf32> to vector<16x1xf32>
    %391 = vector.broadcast %390 : vector<16x1xf32> to vector<16x512xf32>
    %392 = arith.mulf %389, %391 : vector<16x512xf32>
    %393 = arith.addf %387, %392 : vector<16x512xf32>
    %394 = vector.extract_strided_slice %388 {offsets = [0, 128], sizes = [16, 512], strides = [1, 1]} : vector<16x1280xf32> to vector<16x512xf32>
    %395 = vector.extract_strided_slice %24 {offsets = [0, 9], sizes = [16, 1], strides = [1, 1]} : vector<16x49xf32> to vector<16x1xf32>
    %396 = vector.broadcast %395 : vector<16x1xf32> to vector<16x512xf32>
    %397 = arith.mulf %394, %396 : vector<16x512xf32>
    %398 = arith.addf %393, %397 : vector<16x512xf32>
    %399 = vector.extract_strided_slice %388 {offsets = [0, 256], sizes = [16, 512], strides = [1, 1]} : vector<16x1280xf32> to vector<16x512xf32>
    %400 = vector.extract_strided_slice %24 {offsets = [0, 16], sizes = [16, 1], strides = [1, 1]} : vector<16x49xf32> to vector<16x1xf32>
    %401 = vector.broadcast %400 : vector<16x1xf32> to vector<16x512xf32>
    %402 = arith.mulf %399, %401 : vector<16x512xf32>
    %403 = arith.addf %398, %402 : vector<16x512xf32>
    %404 = vector.extract_strided_slice %388 {offsets = [0, 384], sizes = [16, 512], strides = [1, 1]} : vector<16x1280xf32> to vector<16x512xf32>
    %405 = vector.extract_strided_slice %24 {offsets = [0, 23], sizes = [16, 1], strides = [1, 1]} : vector<16x49xf32> to vector<16x1xf32>
    %406 = vector.broadcast %405 : vector<16x1xf32> to vector<16x512xf32>
    %407 = arith.mulf %404, %406 : vector<16x512xf32>
    %408 = arith.addf %403, %407 : vector<16x512xf32>
    %409 = vector.extract_strided_slice %388 {offsets = [0, 512], sizes = [16, 512], strides = [1, 1]} : vector<16x1280xf32> to vector<16x512xf32>
    %410 = vector.extract_strided_slice %24 {offsets = [0, 30], sizes = [16, 1], strides = [1, 1]} : vector<16x49xf32> to vector<16x1xf32>
    %411 = vector.broadcast %410 : vector<16x1xf32> to vector<16x512xf32>
    %412 = arith.mulf %409, %411 : vector<16x512xf32>
    %413 = arith.addf %408, %412 : vector<16x512xf32>
    %414 = vector.extract_strided_slice %388 {offsets = [0, 640], sizes = [16, 512], strides = [1, 1]} : vector<16x1280xf32> to vector<16x512xf32>
    %415 = vector.extract_strided_slice %24 {offsets = [0, 37], sizes = [16, 1], strides = [1, 1]} : vector<16x49xf32> to vector<16x1xf32>
    %416 = vector.broadcast %415 : vector<16x1xf32> to vector<16x512xf32>
    %417 = arith.mulf %414, %416 : vector<16x512xf32>
    %418 = arith.addf %413, %417 : vector<16x512xf32>
    %419 = vector.extract_strided_slice %388 {offsets = [0, 768], sizes = [16, 512], strides = [1, 1]} : vector<16x1280xf32> to vector<16x512xf32>
    %420 = vector.extract_strided_slice %24 {offsets = [0, 44], sizes = [16, 1], strides = [1, 1]} : vector<16x49xf32> to vector<16x1xf32>
    %421 = vector.broadcast %420 : vector<16x1xf32> to vector<16x512xf32>
    %422 = arith.mulf %419, %421 : vector<16x512xf32>
    %423 = arith.addf %418, %422 : vector<16x512xf32>
    %424 = vector.extract_strided_slice %314 {offsets = [0, 0], sizes = [16, 512], strides = [1, 1]} : vector<16x1280xf32> to vector<16x512xf32>
    %425 = vector.extract_strided_slice %24 {offsets = [0, 3], sizes = [16, 1], strides = [1, 1]} : vector<16x49xf32> to vector<16x1xf32>
    %426 = vector.broadcast %425 : vector<16x1xf32> to vector<16x512xf32>
    %427 = arith.mulf %424, %426 : vector<16x512xf32>
    %428 = arith.addf %423, %427 : vector<16x512xf32>
    %429 = vector.extract_strided_slice %314 {offsets = [0, 128], sizes = [16, 512], strides = [1, 1]} : vector<16x1280xf32> to vector<16x512xf32>
    %430 = vector.extract_strided_slice %24 {offsets = [0, 10], sizes = [16, 1], strides = [1, 1]} : vector<16x49xf32> to vector<16x1xf32>
    %431 = vector.broadcast %430 : vector<16x1xf32> to vector<16x512xf32>
    %432 = arith.mulf %429, %431 : vector<16x512xf32>
    %433 = arith.addf %428, %432 : vector<16x512xf32>
    %434 = vector.extract_strided_slice %314 {offsets = [0, 256], sizes = [16, 512], strides = [1, 1]} : vector<16x1280xf32> to vector<16x512xf32>
    %435 = vector.extract_strided_slice %24 {offsets = [0, 17], sizes = [16, 1], strides = [1, 1]} : vector<16x49xf32> to vector<16x1xf32>
    %436 = vector.broadcast %435 : vector<16x1xf32> to vector<16x512xf32>
    %437 = arith.mulf %434, %436 : vector<16x512xf32>
    %438 = arith.addf %433, %437 : vector<16x512xf32>
    %439 = vector.extract_strided_slice %314 {offsets = [0, 384], sizes = [16, 512], strides = [1, 1]} : vector<16x1280xf32> to vector<16x512xf32>
    %440 = vector.extract_strided_slice %24 {offsets = [0, 24], sizes = [16, 1], strides = [1, 1]} : vector<16x49xf32> to vector<16x1xf32>
    %441 = vector.broadcast %440 : vector<16x1xf32> to vector<16x512xf32>
    %442 = arith.mulf %439, %441 : vector<16x512xf32>
    %443 = arith.addf %438, %442 : vector<16x512xf32>
    %444 = vector.extract_strided_slice %314 {offsets = [0, 512], sizes = [16, 512], strides = [1, 1]} : vector<16x1280xf32> to vector<16x512xf32>
    %445 = vector.extract_strided_slice %24 {offsets = [0, 31], sizes = [16, 1], strides = [1, 1]} : vector<16x49xf32> to vector<16x1xf32>
    %446 = vector.broadcast %445 : vector<16x1xf32> to vector<16x512xf32>
    %447 = arith.mulf %444, %446 : vector<16x512xf32>
    %448 = arith.addf %443, %447 : vector<16x512xf32>
    %449 = vector.extract_strided_slice %314 {offsets = [0, 640], sizes = [16, 512], strides = [1, 1]} : vector<16x1280xf32> to vector<16x512xf32>
    %450 = vector.extract_strided_slice %24 {offsets = [0, 38], sizes = [16, 1], strides = [1, 1]} : vector<16x49xf32> to vector<16x1xf32>
    %451 = vector.broadcast %450 : vector<16x1xf32> to vector<16x512xf32>
    %452 = arith.mulf %449, %451 : vector<16x512xf32>
    %453 = arith.addf %448, %452 : vector<16x512xf32>
    %454 = vector.extract_strided_slice %314 {offsets = [0, 768], sizes = [16, 512], strides = [1, 1]} : vector<16x1280xf32> to vector<16x512xf32>
    %455 = vector.extract_strided_slice %24 {offsets = [0, 45], sizes = [16, 1], strides = [1, 1]} : vector<16x49xf32> to vector<16x1xf32>
    %456 = vector.broadcast %455 : vector<16x1xf32> to vector<16x512xf32>
    %457 = arith.mulf %454, %456 : vector<16x512xf32>
    %458 = arith.addf %453, %457 : vector<16x512xf32>
    %c1279_i32_41 = arith.constant 1279 : i32
    %459 = tpu.dynamic_rotate %314 by %c1279_i32_41 dim 1 : vector<16x1280xf32>, i32 -> vector<16x1280xf32>
    %460 = vector.extract_strided_slice %459 {offsets = [0, 0], sizes = [16, 512], strides = [1, 1]} : vector<16x1280xf32> to vector<16x512xf32>
    %461 = vector.extract_strided_slice %24 {offsets = [0, 4], sizes = [16, 1], strides = [1, 1]} : vector<16x49xf32> to vector<16x1xf32>
    %462 = vector.broadcast %461 : vector<16x1xf32> to vector<16x512xf32>
    %463 = arith.mulf %460, %462 : vector<16x512xf32>
    %464 = arith.addf %458, %463 : vector<16x512xf32>
    %465 = vector.extract_strided_slice %459 {offsets = [0, 128], sizes = [16, 512], strides = [1, 1]} : vector<16x1280xf32> to vector<16x512xf32>
    %466 = vector.extract_strided_slice %24 {offsets = [0, 11], sizes = [16, 1], strides = [1, 1]} : vector<16x49xf32> to vector<16x1xf32>
    %467 = vector.broadcast %466 : vector<16x1xf32> to vector<16x512xf32>
    %468 = arith.mulf %465, %467 : vector<16x512xf32>
    %469 = arith.addf %464, %468 : vector<16x512xf32>
    %470 = vector.extract_strided_slice %459 {offsets = [0, 256], sizes = [16, 512], strides = [1, 1]} : vector<16x1280xf32> to vector<16x512xf32>
    %471 = vector.extract_strided_slice %24 {offsets = [0, 18], sizes = [16, 1], strides = [1, 1]} : vector<16x49xf32> to vector<16x1xf32>
    %472 = vector.broadcast %471 : vector<16x1xf32> to vector<16x512xf32>
    %473 = arith.mulf %470, %472 : vector<16x512xf32>
    %474 = arith.addf %469, %473 : vector<16x512xf32>
    %475 = vector.extract_strided_slice %459 {offsets = [0, 384], sizes = [16, 512], strides = [1, 1]} : vector<16x1280xf32> to vector<16x512xf32>
    %476 = vector.extract_strided_slice %24 {offsets = [0, 25], sizes = [16, 1], strides = [1, 1]} : vector<16x49xf32> to vector<16x1xf32>
    %477 = vector.broadcast %476 : vector<16x1xf32> to vector<16x512xf32>
    %478 = arith.mulf %475, %477 : vector<16x512xf32>
    %479 = arith.addf %474, %478 : vector<16x512xf32>
    %480 = vector.extract_strided_slice %459 {offsets = [0, 512], sizes = [16, 512], strides = [1, 1]} : vector<16x1280xf32> to vector<16x512xf32>
    %481 = vector.extract_strided_slice %24 {offsets = [0, 32], sizes = [16, 1], strides = [1, 1]} : vector<16x49xf32> to vector<16x1xf32>
    %482 = vector.broadcast %481 : vector<16x1xf32> to vector<16x512xf32>
    %483 = arith.mulf %480, %482 : vector<16x512xf32>
    %484 = arith.addf %479, %483 : vector<16x512xf32>
    %485 = vector.extract_strided_slice %459 {offsets = [0, 640], sizes = [16, 512], strides = [1, 1]} : vector<16x1280xf32> to vector<16x512xf32>
    %486 = vector.extract_strided_slice %24 {offsets = [0, 39], sizes = [16, 1], strides = [1, 1]} : vector<16x49xf32> to vector<16x1xf32>
    %487 = vector.broadcast %486 : vector<16x1xf32> to vector<16x512xf32>
    %488 = arith.mulf %485, %487 : vector<16x512xf32>
    %489 = arith.addf %484, %488 : vector<16x512xf32>
    %490 = vector.extract_strided_slice %459 {offsets = [0, 768], sizes = [16, 512], strides = [1, 1]} : vector<16x1280xf32> to vector<16x512xf32>
    %491 = vector.extract_strided_slice %24 {offsets = [0, 46], sizes = [16, 1], strides = [1, 1]} : vector<16x49xf32> to vector<16x1xf32>
    %492 = vector.broadcast %491 : vector<16x1xf32> to vector<16x512xf32>
    %493 = arith.mulf %490, %492 : vector<16x512xf32>
    %494 = arith.addf %489, %493 : vector<16x512xf32>
    %c1278_i32_42 = arith.constant 1278 : i32
    %495 = tpu.dynamic_rotate %314 by %c1278_i32_42 dim 1 : vector<16x1280xf32>, i32 -> vector<16x1280xf32>
    %496 = vector.extract_strided_slice %495 {offsets = [0, 0], sizes = [16, 512], strides = [1, 1]} : vector<16x1280xf32> to vector<16x512xf32>
    %497 = vector.extract_strided_slice %24 {offsets = [0, 5], sizes = [16, 1], strides = [1, 1]} : vector<16x49xf32> to vector<16x1xf32>
    %498 = vector.broadcast %497 : vector<16x1xf32> to vector<16x512xf32>
    %499 = arith.mulf %496, %498 : vector<16x512xf32>
    %500 = arith.addf %494, %499 : vector<16x512xf32>
    %501 = vector.extract_strided_slice %495 {offsets = [0, 128], sizes = [16, 512], strides = [1, 1]} : vector<16x1280xf32> to vector<16x512xf32>
    %502 = vector.extract_strided_slice %24 {offsets = [0, 12], sizes = [16, 1], strides = [1, 1]} : vector<16x49xf32> to vector<16x1xf32>
    %503 = vector.broadcast %502 : vector<16x1xf32> to vector<16x512xf32>
    %504 = arith.mulf %501, %503 : vector<16x512xf32>
    %505 = arith.addf %500, %504 : vector<16x512xf32>
    %506 = vector.extract_strided_slice %495 {offsets = [0, 256], sizes = [16, 512], strides = [1, 1]} : vector<16x1280xf32> to vector<16x512xf32>
    %507 = vector.extract_strided_slice %24 {offsets = [0, 19], sizes = [16, 1], strides = [1, 1]} : vector<16x49xf32> to vector<16x1xf32>
    %508 = vector.broadcast %507 : vector<16x1xf32> to vector<16x512xf32>
    %509 = arith.mulf %506, %508 : vector<16x512xf32>
    %510 = arith.addf %505, %509 : vector<16x512xf32>
    %511 = vector.extract_strided_slice %495 {offsets = [0, 384], sizes = [16, 512], strides = [1, 1]} : vector<16x1280xf32> to vector<16x512xf32>
    %512 = vector.extract_strided_slice %24 {offsets = [0, 26], sizes = [16, 1], strides = [1, 1]} : vector<16x49xf32> to vector<16x1xf32>
    %513 = vector.broadcast %512 : vector<16x1xf32> to vector<16x512xf32>
    %514 = arith.mulf %511, %513 : vector<16x512xf32>
    %515 = arith.addf %510, %514 : vector<16x512xf32>
    %516 = vector.extract_strided_slice %495 {offsets = [0, 512], sizes = [16, 512], strides = [1, 1]} : vector<16x1280xf32> to vector<16x512xf32>
    %517 = vector.extract_strided_slice %24 {offsets = [0, 33], sizes = [16, 1], strides = [1, 1]} : vector<16x49xf32> to vector<16x1xf32>
    %518 = vector.broadcast %517 : vector<16x1xf32> to vector<16x512xf32>
    %519 = arith.mulf %516, %518 : vector<16x512xf32>
    %520 = arith.addf %515, %519 : vector<16x512xf32>
    %521 = vector.extract_strided_slice %495 {offsets = [0, 640], sizes = [16, 512], strides = [1, 1]} : vector<16x1280xf32> to vector<16x512xf32>
    %522 = vector.extract_strided_slice %24 {offsets = [0, 40], sizes = [16, 1], strides = [1, 1]} : vector<16x49xf32> to vector<16x1xf32>
    %523 = vector.broadcast %522 : vector<16x1xf32> to vector<16x512xf32>
    %524 = arith.mulf %521, %523 : vector<16x512xf32>
    %525 = arith.addf %520, %524 : vector<16x512xf32>
    %526 = vector.extract_strided_slice %495 {offsets = [0, 768], sizes = [16, 512], strides = [1, 1]} : vector<16x1280xf32> to vector<16x512xf32>
    %527 = vector.extract_strided_slice %24 {offsets = [0, 47], sizes = [16, 1], strides = [1, 1]} : vector<16x49xf32> to vector<16x1xf32>
    %528 = vector.broadcast %527 : vector<16x1xf32> to vector<16x512xf32>
    %529 = arith.mulf %526, %528 : vector<16x512xf32>
    %530 = arith.addf %525, %529 : vector<16x512xf32>
    %c1277_i32_43 = arith.constant 1277 : i32
    %531 = tpu.dynamic_rotate %314 by %c1277_i32_43 dim 1 : vector<16x1280xf32>, i32 -> vector<16x1280xf32>
    %532 = vector.extract_strided_slice %531 {offsets = [0, 0], sizes = [16, 512], strides = [1, 1]} : vector<16x1280xf32> to vector<16x512xf32>
    %533 = vector.extract_strided_slice %24 {offsets = [0, 6], sizes = [16, 1], strides = [1, 1]} : vector<16x49xf32> to vector<16x1xf32>
    %534 = vector.broadcast %533 : vector<16x1xf32> to vector<16x512xf32>
    %535 = arith.mulf %532, %534 : vector<16x512xf32>
    %536 = arith.addf %530, %535 : vector<16x512xf32>
    %537 = vector.extract_strided_slice %531 {offsets = [0, 128], sizes = [16, 512], strides = [1, 1]} : vector<16x1280xf32> to vector<16x512xf32>
    %538 = vector.extract_strided_slice %24 {offsets = [0, 13], sizes = [16, 1], strides = [1, 1]} : vector<16x49xf32> to vector<16x1xf32>
    %539 = vector.broadcast %538 : vector<16x1xf32> to vector<16x512xf32>
    %540 = arith.mulf %537, %539 : vector<16x512xf32>
    %541 = arith.addf %536, %540 : vector<16x512xf32>
    %542 = vector.extract_strided_slice %531 {offsets = [0, 256], sizes = [16, 512], strides = [1, 1]} : vector<16x1280xf32> to vector<16x512xf32>
    %543 = vector.extract_strided_slice %24 {offsets = [0, 20], sizes = [16, 1], strides = [1, 1]} : vector<16x49xf32> to vector<16x1xf32>
    %544 = vector.broadcast %543 : vector<16x1xf32> to vector<16x512xf32>
    %545 = arith.mulf %542, %544 : vector<16x512xf32>
    %546 = arith.addf %541, %545 : vector<16x512xf32>
    %547 = vector.extract_strided_slice %531 {offsets = [0, 384], sizes = [16, 512], strides = [1, 1]} : vector<16x1280xf32> to vector<16x512xf32>
    %548 = vector.extract_strided_slice %24 {offsets = [0, 27], sizes = [16, 1], strides = [1, 1]} : vector<16x49xf32> to vector<16x1xf32>
    %549 = vector.broadcast %548 : vector<16x1xf32> to vector<16x512xf32>
    %550 = arith.mulf %547, %549 : vector<16x512xf32>
    %551 = arith.addf %546, %550 : vector<16x512xf32>
    %552 = vector.extract_strided_slice %531 {offsets = [0, 512], sizes = [16, 512], strides = [1, 1]} : vector<16x1280xf32> to vector<16x512xf32>
    %553 = vector.extract_strided_slice %24 {offsets = [0, 34], sizes = [16, 1], strides = [1, 1]} : vector<16x49xf32> to vector<16x1xf32>
    %554 = vector.broadcast %553 : vector<16x1xf32> to vector<16x512xf32>
    %555 = arith.mulf %552, %554 : vector<16x512xf32>
    %556 = arith.addf %551, %555 : vector<16x512xf32>
    %557 = vector.extract_strided_slice %531 {offsets = [0, 640], sizes = [16, 512], strides = [1, 1]} : vector<16x1280xf32> to vector<16x512xf32>
    %558 = vector.extract_strided_slice %24 {offsets = [0, 41], sizes = [16, 1], strides = [1, 1]} : vector<16x49xf32> to vector<16x1xf32>
    %559 = vector.broadcast %558 : vector<16x1xf32> to vector<16x512xf32>
    %560 = arith.mulf %557, %559 : vector<16x512xf32>
    %561 = arith.addf %556, %560 : vector<16x512xf32>
    %562 = vector.extract_strided_slice %531 {offsets = [0, 768], sizes = [16, 512], strides = [1, 1]} : vector<16x1280xf32> to vector<16x512xf32>
    %563 = vector.extract_strided_slice %24 {offsets = [0, 48], sizes = [16, 1], strides = [1, 1]} : vector<16x49xf32> to vector<16x1xf32>
    %564 = vector.broadcast %563 : vector<16x1xf32> to vector<16x512xf32>
    %565 = arith.mulf %562, %564 : vector<16x512xf32>
    %566 = arith.addf %561, %565 : vector<16x512xf32>
    %567 = vector.broadcast %25 : vector<16x1xf32> to vector<16x512xf32>
    %568 = arith.addf %566, %567 : vector<16x512xf32>
    %cst_44 = arith.constant 0.000000e+00 : f32
    %569 = vector.broadcast %cst_44 : f32 to vector<16x512xf32>
    %570 = arith.cmpf oge, %568, %569 : vector<16x512xf32>
    %cst_45 = arith.constant 5.000000e-02 : f32
    %571 = vector.broadcast %cst_45 : f32 to vector<16x512xf32>
    %572 = arith.mulf %571, %568 : vector<16x512xf32>
    %573 = arith.select %570, %568, %572 : vector<16x512xi1>, vector<16x512xf32>
    %574 = arith.truncf %573 : vector<16x512xf32> to vector<16x512xbf16>
    %cst_46 = arith.constant dense<0.000000e+00> : vector<64x512xf32>
    %575 = tpu.matmul %26, %574, %cst_46 {dimension_numbers = #tpu.dot_dimension_numbers<[1], [0], [0], [1], [0, 0, 1, 1], [], []>} : vector<64x16xbf16>, vector<16x512xbf16>, vector<64x512xf32> -> vector<64x512xf32>
    %576 = vector.broadcast %27 : vector<64x1xf32> to vector<64x512xf32>
    %577 = arith.addf %575, %576 : vector<64x512xf32>
    %cst_47 = arith.constant 0.000000e+00 : f32
    %578 = vector.broadcast %cst_47 : f32 to vector<64x512xf32>
    %579 = arith.cmpf oge, %577, %578 : vector<64x512xf32>
    %cst_48 = arith.constant 5.000000e-02 : f32
    %580 = vector.broadcast %cst_48 : f32 to vector<64x512xf32>
    %581 = arith.mulf %580, %577 : vector<64x512xf32>
    %582 = arith.select %579, %577, %581 : vector<64x512xi1>, vector<64x512xf32>
    %583 = arith.truncf %582 : vector<64x512xf32> to vector<64x512xbf16>
    %cst_49 = arith.constant dense<0.000000e+00> : vector<16x512xf32>
    %584 = tpu.matmul %28, %583, %cst_49 {dimension_numbers = #tpu.dot_dimension_numbers<[1], [0], [0], [1], [0, 0, 1, 1], [], []>} : vector<16x64xbf16>, vector<64x512xbf16>, vector<16x512xf32> -> vector<16x512xf32>
    %585 = arith.index_cast %9 : i32 to index
    %c0_50 = arith.constant 0 : index
    %c896 = arith.constant 896 : index
    %586 = vector.load %arg10[%585, %c0_50, %c896] : memref<2x16x1792xf32, #tpu.memory_space<vmem>>, vector<1x16x512xf32>
    %587 = vector.shape_cast %586 : vector<1x16x512xf32> to vector<16x512xf32>
    %588 = arith.addf %587, %584 : vector<16x512xf32>
    %589 = vector.broadcast %29 : vector<16x1xf32> to vector<16x512xf32>
    %590 = arith.addf %588, %589 : vector<16x512xf32>
    %c0_51 = arith.constant 0 : index
    %c0_52 = arith.constant 0 : index
    %c512_53 = arith.constant 512 : index
    %591 = vector.load %arg9[%c0_51, %c0_52, %c512_53] : memref<1x16x1024xf32, #tpu.memory_space<vmem>>, vector<1x16x512xf32>
    %592 = vector.shape_cast %591 : vector<1x16x512xf32> to vector<16x512xf32>
    %593 = vector.shape_cast %590 : vector<16x512xf32> to vector<1x16x512xf32>
    tpu.vector_store %arg9[%c0_51, %c0_52, %c512_53], %593 {strides = array<i32>} : memref<1x16x1024xf32, #tpu.memory_space<vmem>>, vector<1x16x512xf32>,
    return
  }
  func.func @transform_1(%arg0: i32, %arg1: i32) -> (i32, i32) {
    %c0_i32 = arith.constant 0 : i32
    %c0_i32_0 = arith.constant 0 : i32
    %c0_i32_1 = arith.constant 0 : i32
    return %c0_i32, %c0_i32_0 : i32, i32
  }
  func.func @transform_2(%arg0: i32, %arg1: i32) -> (i32, i32) {
    %c0_i32 = arith.constant 0 : i32
    %c0_i32_0 = arith.constant 0 : i32
    %c0_i32_1 = arith.constant 0 : i32
    return %c0_i32, %c0_i32_0 : i32, i32
  }
  func.func @transform_3(%arg0: i32, %arg1: i32) -> (i32, i32) {
    %c0_i32 = arith.constant 0 : i32
    %c0_i32_0 = arith.constant 0 : i32
    %c0_i32_1 = arith.constant 0 : i32
    return %c0_i32, %c0_i32_0 : i32, i32
  }
  func.func @transform_4(%arg0: i32, %arg1: i32) -> (i32, i32) {
    %c0_i32 = arith.constant 0 : i32
    %c0_i32_0 = arith.constant 0 : i32
    %c0_i32_1 = arith.constant 0 : i32
    return %c0_i32, %c0_i32_0 : i32, i32
  }
  func.func @transform_5(%arg0: i32, %arg1: i32) -> (i32, i32) {
    %c0_i32 = arith.constant 0 : i32
    %c0_i32_0 = arith.constant 0 : i32
    %c0_i32_1 = arith.constant 0 : i32
    return %c0_i32, %c0_i32_0 : i32, i32
  }
  func.func @transform_6(%arg0: i32, %arg1: i32) -> (i32, i32) {
    %c0_i32 = arith.constant 0 : i32
    %c0_i32_0 = arith.constant 0 : i32
    %c0_i32_1 = arith.constant 0 : i32
    return %c0_i32, %c0_i32_0 : i32, i32
  }
  func.func @transform_7(%arg0: i32, %arg1: i32) -> (i32, i32, i32) {
    %c0_i32 = arith.constant 0 : i32
    %c0_i32_0 = arith.constant 0 : i32
    return %arg0, %c0_i32, %arg1 : i32, i32, i32
  }
}

</mosaic_0001>

<llo_original>
// kernel: convnext_block.1
$region0: #{convnext_block.1}
  #allocation0 [shape = 'u32[]', space=smem, size = 0x4, offset = 0x4, fixed_abs, tag = 'smem constant byte address 0x4 - core index']
  #allocation1 [shape = 'u32[144,128]{1,0:T(1,128)}', space=vmem, size = 0x12000, scoped, tag = 'internal scratch']
  #allocation2 [shape = 'f32[2,16,1792]{2,1,0:T(8,128)}', space=vmem, size = 0x38000, scoped, tag = 'scratch operand']
  #allocation3 [shape = 's32[2]{0}', space=sflag, size = 0x8, scoped, tag = 'scratch operand']
  #allocation5 [shape = 's32[]', space=sflag, size = 0x4, offset = 0, fixed_abs, tag = 'sflag constant byte address 0x0 - dummy sync flag']
  #allocation6 [shape = 's32[]', space=sflag, size = 0x4, offset = 0, fixed_abs, tag = 'sflag constant byte address 0x0 - dummy sync flag']
  %s0 = inlined_call_operand.vmem [shape: f32[2,16,2816], index: 0, kind: input, shape index: {}]
  %s1 = inlined_call_operand.vmem [shape: f32[16,49], index: 1, kind: input, shape index: {}]
  %s2 = inlined_call_operand.vmem [shape: f32[16,1], index: 2, kind: input, shape index: {}]
  %s3 = inlined_call_operand.vmem [shape: bf16[64,16], index: 3, kind: input, shape index: {}]
  %s4 = inlined_call_operand.vmem [shape: f32[64,1], index: 4, kind: input, shape index: {}]
  %s5 = inlined_call_operand.vmem [shape: bf16[16,64], index: 5, kind: input, shape index: {}]
  %s6 = inlined_call_operand.vmem [shape: f32[16,1], index: 6, kind: input, shape index: {}]
  %s7 = inlined_call_operand.vmem [shape: f32[2,16,2048], index: 7, kind: output, shape index: {}]
  %s8 = sld [smem:[#allocation0]]
  $region152: #{convnext_block.1} parent=0
    _
  %s10 = ssub.s32 1, %s8
  %s11 = scalar_select 0, %s10, %s8
  $region1: #{convnext_block.1} parent=0
    #allocation4 [shape = 'u8[131072]{0}', space=vmem, size = 0x20000, scoped, tag = 'output window, operand 0']
    loop: start=0, step=1, limit=6
    $region2: #{convnext_block.1} parent=1 // loop_pre_header
      _
    $region3: #{convnext_block.1} parent=1 // loop_header
      %s13 = sphi 0, %s17
      %p14 = scmp.ge.s32.totalorder %s13, 6
      %s20 = sphi 0, %s32
      %s21 = sphi 0, %s28
      %s22 = sphi 0, %s20
      %s23 = sphi 0, %s21
      %s24 = sphi 0, %s22
      %s25 = sphi 0, %s23
      %s33 = sphi 0, %s33
      %s35 = sphi 0, %s33
      %s36 = sphi 0, %s35
      %s50 = sphi 0, %s36
      %s54 = sphi 0, %s54
      %s56 = sphi 0, %s54
      %s57 = sphi 0, %s56
      %s71 = sphi 0, %s57
      %s75 = sphi 0, %s75
      %s77 = sphi 0, %s75
      %s78 = sphi 0, %s77
      %s92 = sphi 0, %s78
      %s96 = sphi 0, %s96
      %s98 = sphi 0, %s96
      %s99 = sphi 0, %s98
      %s113 = sphi 0, %s99
      %s117 = sphi 0, %s117
      %s119 = sphi 0, %s117
      %s120 = sphi 0, %s119
      %s134 = sphi 0, %s120
      %s138 = sphi 0, %s138
      %s140 = sphi 0, %s138
      %s141 = sphi 0, %s140
      %s155 = sphi 0, %s141
      %s163 = sphi 0, %s165
      %s166 = sphi 0, %s163
      %s167 = sphi 0, %s166
      %s183 = sphi 0, %s167
    $region4: #{convnext_block.1} parent=1 // loop_header_branch
      %16 = sbr.rel (%p14) target = $region8
    $region5: #{convnext_block.1} parent=1 // loop_body
      %s18 = ssub.s32 %s13, 1
      %s19 = ssub.s32 %s13, 2
      %s26 = sadd.s32 1, %s21
      %p27 = scmp.ge.s32.totalorder %s26, 2
      %s28 = scalar_select %p27, 0, %s26
      %s29 = sadd.s32 1, %s20
      %s30 = scalar_select %p27, %s29, %s20
      %p31 = scmp.ge.s32.totalorder %s30, 2
      %s32 = scalar_select %p31, 0, %s30
      %s34 = sadd.s32 %s33, 1
      %p37 = scmp.eq.s32.totalorder %s13, 3
      %p38 = scmp.ne.s32.totalorder %s33, %s35
      %p39 = scmp.eq.s32.totalorder %s13, 0
      %p40 = por %p38, %p39
      %p41 = scmp.ne.s32.totalorder %s33, %s35
      %p42 = scmp.eq.s32.totalorder %s18, 3
      %p43 = por %p41, %p42
      %p44 = scmp.ne.s32.totalorder %s35, %s36
      %p45 = scmp.eq.s32.totalorder %s18, 0
      %p46 = por %p44, %p45
      %p47 = scmp.ne.s32.totalorder %s35, %s36
      %p48 = scmp.eq.s32.totalorder %s19, 3
      %p49 = por %p47, %p48
      %p51 = scmp.ne.s32.totalorder %s36, %s50
      %p52 = scmp.eq.s32.totalorder %s19, 0
      %p53 = por %p51, %p52
      %s55 = sadd.s32 %s54, 1
      %p58 = scmp.eq.s32.totalorder %s13, 3
      %p59 = scmp.ne.s32.totalorder %s54, %s56
      %p60 = scmp.eq.s32.totalorder %s13, 0
      %p61 = por %p59, %p60
      %p62 = scmp.ne.s32.totalorder %s54, %s56
      %p63 = scmp.eq.s32.totalorder %s18, 3
      %p64 = por %p62, %p63
      %p65 = scmp.ne.s32.totalorder %s56, %s57
      %p66 = scmp.eq.s32.totalorder %s18, 0
      %p67 = por %p65, %p66
      %p68 = scmp.ne.s32.totalorder %s56, %s57
      %p69 = scmp.eq.s32.totalorder %s19, 3
      %p70 = por %p68, %p69
      %p72 = scmp.ne.s32.totalorder %s57, %s71
      %p73 = scmp.eq.s32.totalorder %s19, 0
      %p74 = por %p72, %p73
      %s76 = sadd.s32 %s75, 1
      %p79 = scmp.eq.s32.totalorder %s13, 3
      %p80 = scmp.ne.s32.totalorder %s75, %s77
      %p81 = scmp.eq.s32.totalorder %s13, 0
      %p82 = por %p80, %p81
      %p83 = scmp.ne.s32.totalorder %s75, %s77
      %p84 = scmp.eq.s32.totalorder %s18, 3
      %p85 = por %p83, %p84
      %p86 = scmp.ne.s32.totalorder %s77, %s78
      %p87 = scmp.eq.s32.totalorder %s18, 0
      %p88 = por %p86, %p87
      %p89 = scmp.ne.s32.totalorder %s77, %s78
      %p90 = scmp.eq.s32.totalorder %s19, 3
      %p91 = por %p89, %p90
      %p93 = scmp.ne.s32.totalorder %s78, %s92
      %p94 = scmp.eq.s32.totalorder %s19, 0
      %p95 = por %p93, %p94
      %s97 = sadd.s32 %s96, 1
      %p100 = scmp.eq.s32.totalorder %s13, 3
      %p101 = scmp.ne.s32.totalorder %s96, %s98
      %p102 = scmp.eq.s32.totalorder %s13, 0
      %p103 = por %p101, %p102
      %p104 = scmp.ne.s32.totalorder %s96, %s98
      %p105 = scmp.eq.s32.totalorder %s18, 3
      %p106 = por %p104, %p105
      %p107 = scmp.ne.s32.totalorder %s98, %s99
      %p108 = scmp.eq.s32.totalorder %s18, 0
      %p109 = por %p107, %p108
      %p110 = scmp.ne.s32.totalorder %s98, %s99
      %p111 = scmp.eq.s32.totalorder %s19, 3
      %p112 = por %p110, %p111
      %p114 = scmp.ne.s32.totalorder %s99, %s113
      %p115 = scmp.eq.s32.totalorder %s19, 0
      %p116 = por %p114, %p115
      %s118 = sadd.s32 %s117, 1
      %p121 = scmp.eq.s32.totalorder %s13, 3
      %p122 = scmp.ne.s32.totalorder %s117, %s119
      %p123 = scmp.eq.s32.totalorder %s13, 0
      %p124 = por %p122, %p123
      %p125 = scmp.ne.s32.totalorder %s117, %s119
      %p126 = scmp.eq.s32.totalorder %s18, 3
      %p127 = por %p125, %p126
      %p128 = scmp.ne.s32.totalorder %s119, %s120
      %p129 = scmp.eq.s32.totalorder %s18, 0
      %p130 = por %p128, %p129
      %p131 = scmp.ne.s32.totalorder %s119, %s120
      %p132 = scmp.eq.s32.totalorder %s19, 3
      %p133 = por %p131, %p132
      %p135 = scmp.ne.s32.totalorder %s120, %s134
      %p136 = scmp.eq.s32.totalorder %s19, 0
      %p137 = por %p135, %p136
      %s139 = sadd.s32 %s138, 1
      %p142 = scmp.eq.s32.totalorder %s13, 3
      %p143 = scmp.ne.s32.totalorder %s138, %s140
      %p144 = scmp.eq.s32.totalorder %s13, 0
      %p145 = por %p143, %p144
      %p146 = scmp.ne.s32.totalorder %s138, %s140
      %p147 = scmp.eq.s32.totalorder %s18, 3
      %p148 = por %p146, %p147
      %p149 = scmp.ne.s32.totalorder %s140, %s141
      %p150 = scmp.eq.s32.totalorder %s18, 0
      %p151 = por %p149, %p150
      %p152 = scmp.ne.s32.totalorder %s140, %s141
      %p153 = scmp.eq.s32.totalorder %s19, 3
      %p154 = por %p152, %p153
      %p156 = scmp.ne.s32.totalorder %s141, %s155
      %p157 = scmp.eq.s32.totalorder %s19, 0
      %p158 = por %p156, %p157
      %s159 = ssub.s32 %s20, %s32
      %s160 = ssub.s32 %s21, %s28
      %s161 = sor.u32 %s159, %s160
      %p162 = scmp.eq.s32.totalorder %s161, 0
      %s164 = sadd.s32 %s163, 1
      %s165 = scalar_select %p162, %s163, %s164
      %p168 = pneg %p162
      %p169 = scmp.eq.s32.totalorder %s13, 3
      %p170 = por %p168, %p169
      %p171 = scmp.ne.s32.totalorder %s163, %s166
      %p172 = scmp.eq.s32.totalorder %s13, 0
      %p173 = por %p171, %p172
      %p174 = scmp.ne.s32.totalorder %s163, %s166
      %p175 = scmp.eq.s32.totalorder %s18, 3
      %p176 = por %p174, %p175
      %p177 = scmp.ne.s32.totalorder %s166, %s167
      %p178 = scmp.eq.s32.totalorder %s18, 0
      %p179 = por %p177, %p178
      %p180 = scmp.ne.s32.totalorder %s166, %s167
      %p181 = scmp.eq.s32.totalorder %s19, 3
      %p182 = por %p180, %p181
      %p184 = scmp.ne.s32.totalorder %s167, %s183
      %p185 = scmp.eq.s32.totalorder %s19, 0
      %p186 = por %p184, %p185
      %p187 = scmp.le.s32.totalorder 1, %s13
      %p188 = scmp.lt.s32.totalorder %s13, 5
      %p189 = pnand %p187, %p188
      %p190 = pneg %p189
      // Predicated region
      $region9: #{convnext_block.1} parent=5 // pred_check
        _
      $region10: #{convnext_block.1} parent=5 // pred_check_branch
        %192 = sbr.rel (%p189) target = $region12
      $region11: #{convnext_block.1} parent=5 // pred_region
        %s193 = ssub.s32 %s13, 1
        // Predicated region
        $region13: #{convnext_block.1} parent=11 // pred_check
          %p194 = pneg %p46
        $region14: #{convnext_block.1} parent=11 // pred_check_branch
          %196 = sbr.rel (%p194) target = $region16
        $region15: #{convnext_block.1} parent=11 // pred_region
          _
        $region16: #{convnext_block.1} parent=11 // pred_fallthru
          _
        // Predicated region
        $region17: #{convnext_block.1} parent=11 // pred_check
          %p197 = pneg %p67
        $region18: #{convnext_block.1} parent=11 // pred_check_branch
          %199 = sbr.rel (%p197) target = $region20
        $region19: #{convnext_block.1} parent=11 // pred_region
          _
        $region20: #{convnext_block.1} parent=11 // pred_fallthru
          _
        // Predicated region
        $region21: #{convnext_block.1} parent=11 // pred_check
          %p200 = pneg %p88
        $region22: #{convnext_block.1} parent=11 // pred_check_branch
          %202 = sbr.rel (%p200) target = $region24
        $region23: #{convnext_block.1} parent=11 // pred_region
          _
        $region24: #{convnext_block.1} parent=11 // pred_fallthru
          _
        // Predicated region
        $region25: #{convnext_block.1} parent=11 // pred_check
          %p203 = pneg %p109
        $region26: #{convnext_block.1} parent=11 // pred_check_branch
          %205 = sbr.rel (%p203) target = $region28
        $region27: #{convnext_block.1} parent=11 // pred_region
          _
        $region28: #{convnext_block.1} parent=11 // pred_fallthru
          _
        // Predicated region
        $region29: #{convnext_block.1} parent=11 // pred_check
          %p206 = pneg %p130
        $region30: #{convnext_block.1} parent=11 // pred_check_branch
          %208 = sbr.rel (%p206) target = $region32
        $region31: #{convnext_block.1} parent=11 // pred_region
          _
        $region32: #{convnext_block.1} parent=11 // pred_fallthru
          _
        // Predicated region
        $region33: #{convnext_block.1} parent=11 // pred_check
          %p209 = pneg %p151
        $region34: #{convnext_block.1} parent=11 // pred_check_branch
          %211 = sbr.rel (%p209) target = $region36
        $region35: #{convnext_block.1} parent=11 // pred_region
          _
        $region36: #{convnext_block.1} parent=11 // pred_fallthru
          _
      $region12: #{convnext_block.1} parent=5 // pred_fallthru
        _
      %p212 = scmp.lt.s32.totalorder %s13, 4
      // Predicated region
      $region37: #{convnext_block.1} parent=5 // pred_check
        %p213 = pneg %p212
      $region38: #{convnext_block.1} parent=5 // pred_check_branch
        %215 = sbr.rel (%p213) target = $region40
      $region39: #{convnext_block.1} parent=5 // pred_region
        _
      $region40: #{convnext_block.1} parent=5 // pred_fallthru
        _
      %p216 = scmp.le.s32.totalorder 1, %s13
      %p217 = scmp.lt.s32.totalorder %s13, 5
      %p218 = pnand %p216, %p217
      %p219 = pneg %p218
      // Predicated region
      $region41: #{convnext_block.1} parent=5 // pred_check
        _
      $region42: #{convnext_block.1} parent=5 // pred_check_branch
        %221 = sbr.rel (%p218) target = $region44
      $region43: #{convnext_block.1} parent=5 // pred_region
        %s222 = ssub.s32 %s13, 1
        %p223 = pneg %p46
        %p224 = pneg %p43
        %p225 = pneg %p67
        %p226 = pneg %p64
        %p227 = pneg %p88
        %p228 = pneg %p85
        %p229 = pneg %p109
        %p230 = pneg %p106
        %p231 = pneg %p130
        %p232 = pneg %p127
        %p233 = pneg %p151
        %p234 = pneg %p148
        %p235 = pneg %p179
        %p236 = pneg %p176
        %s237 = sand.u32 %s166, 1
        %s238 = sand.u32 %s166, 1
        %s239 = smul.addr %s238, 128
        %s240 = scalar_lea.vmem [#allocation4], %s239
        %s241 = smul.u32 8, %s23
        %p243 = scmp.lt.s32.totalorder %s23, 0
        %s244 = ssub.s32 0, %s23
        %s245 = scalar_select %p243, %s244, %s23
        %s246 = sand.u32 %s245, 1
        %s247 = ssub.s32 0, %s246
        %s248 = scalar_select %p243, %s247, %s246
        %p249 = scmp.ne.s32.totalorder %s248, 0
        %p250 = scmp.lt.s32.totalorder %s248, 0
        %p251 = pnand %p250, %p249
        %p252 = pneg %p251
        %s253 = sadd.s32 %s248, 2
        %s254 = scalar_select %p252, %s253, %s248
        %p255 = scmp.eq.s32.totalorder %s23, 0
        // Predicated region
        $region45: #{convnext_block.1} parent=43 // pred_check
          %p256 = pneg %p255
        $region46: #{convnext_block.1} parent=43 // pred_check_branch
          %258 = sbr.rel (%p256) target = $region48
        $region47: #{convnext_block.1} parent=43 // pred_region
          %s259 = smul.u32 %s22, 44
          %s260 = smul.addr %s259, 8
          %s261 = scalar_lea.vmem %s0, %s260
          %p263 = scmp.lt.u32.totalorder 112, 8
          %p264 = pneg %p263
          // Predicated region
          $region49: #{convnext_block.1} parent=47 // pred_check
            _
          $region50: #{convnext_block.1} parent=47 // pred_check_branch
            %266 = sbr.rel (%p263) target = $region52
          $region51: #{convnext_block.1} parent=47 // pred_region
            %s283 = sand.u32 112, 7
            %p284 = scmp.eq.s32.totalorder %s283, 0
            // Predicated region
            $region64: #{convnext_block.1} parent=51 // pred_check
              %p285 = pneg %p284
            $region65: #{convnext_block.1} parent=51 // pred_check_branch
              %287 = sbr.rel (%p285) target = $region67
            $region66: #{convnext_block.1} parent=51 // pred_region
              loop: start=0, step=1, limit=1
              $region68: #{convnext_block.1} parent=66 // loop_pre_header
                _
              $region69: #{convnext_block.1} parent=66 // loop_header
                %s289 = sphi 0, %s293
                %p290 = scmp.ge.s32.totalorder %s289, 1
                %s294 = sphi %s261, %s261
                %s295 = sphi [#allocation2], [#allocation2]
              $region70: #{convnext_block.1} parent=66 // loop_header_branch
                %292 = sbr.rel (%p290) target = $region74
              $region71: #{convnext_block.1} parent=66 // loop_body
                %v296 = vld [vmem:[%s294] sm:$0xff]
                %297 = vst [vmem:[%s295] sm:$0xff] %v296
                %v298 = vld [vmem:[%s294 + $0x8] sm:$0xff]
                %299 = vst [vmem:[%s295 + $0x8] sm:$0xff] %v298
                %v300 = vld [vmem:[%s294 + $0x10] sm:$0xff]
                %301 = vst [vmem:[%s295 + $0x10] sm:$0xff] %v300
                %v302 = vld [vmem:[%s294 + $0x18] sm:$0xff]
                %303 = vst [vmem:[%s295 + $0x18] sm:$0xff] %v302
                %v304 = vld [vmem:[%s294 + $0x20] sm:$0xff]
                %305 = vst [vmem:[%s295 + $0x20] sm:$0xff] %v304
                %v306 = vld [vmem:[%s294 + $0x28] sm:$0xff]
                %307 = vst [vmem:[%s295 + $0x28] sm:$0xff] %v306
                %v308 = vld [vmem:[%s294 + $0x30] sm:$0xff]
                %309 = vst [vmem:[%s295 + $0x30] sm:$0xff] %v308
                %v310 = vld [vmem:[%s294 + $0x38] sm:$0xff]
                %311 = vst [vmem:[%s295 + $0x38] sm:$0xff] %v310
                %v312 = vld [vmem:[%s294 + $0x40] sm:$0xff]
                %313 = vst [vmem:[%s295 + $0x40] sm:$0xff] %v312
                %v314 = vld [vmem:[%s294 + $0x48] sm:$0xff]
                %315 = vst [vmem:[%s295 + $0x48] sm:$0xff] %v314
                %v316 = vld [vmem:[%s294 + $0x50] sm:$0xff]
                %317 = vst [vmem:[%s295 + $0x50] sm:$0xff] %v316
                %v318 = vld [vmem:[%s294 + $0x58] sm:$0xff]
                %319 = vst [vmem:[%s295 + $0x58] sm:$0xff] %v318
                %v320 = vld [vmem:[%s294 + $0x60] sm:$0xff]
                %321 = vst [vmem:[%s295 + $0x60] sm:$0xff] %v320
                %v322 = vld [vmem:[%s294 + $0x68] sm:$0xff]
                %323 = vst [vmem:[%s295 + $0x68] sm:$0xff] %v322
                %v324 = vld [vmem:[%s294 + $0xb0] sm:$0xff]
                %325 = vst [vmem:[%s295 + $0x70] sm:$0xff] %v324
                %v326 = vld [vmem:[%s294 + $0xb8] sm:$0xff]
                %327 = vst [vmem:[%s295 + $0x78] sm:$0xff] %v326
                %v328 = vld [vmem:[%s294 + $0xc0] sm:$0xff]
                %329 = vst [vmem:[%s295 + $0x80] sm:$0xff] %v328
                %v330 = vld [vmem:[%s294 + $0xc8] sm:$0xff]
                %331 = vst [vmem:[%s295 + $0x88] sm:$0xff] %v330
                %v332 = vld [vmem:[%s294 + $0xd0] sm:$0xff]
                %333 = vst [vmem:[%s295 + $0x90] sm:$0xff] %v332
                %v334 = vld [vmem:[%s294 + $0xd8] sm:$0xff]
                %335 = vst [vmem:[%s295 + $0x98] sm:$0xff] %v334
                %v336 = vld [vmem:[%s294 + $0xe0] sm:$0xff]
                %337 = vst [vmem:[%s295 + $0xa0] sm:$0xff] %v336
                %v338 = vld [vmem:[%s294 + $0xe8] sm:$0xff]
                %339 = vst [vmem:[%s295 + $0xa8] sm:$0xff] %v338
                %v340 = vld [vmem:[%s294 + $0xf0] sm:$0xff]
                %341 = vst [vmem:[%s295 + $0xb0] sm:$0xff] %v340
                %v342 = vld [vmem:[%s294 + $0xf8] sm:$0xff]
                %343 = vst [vmem:[%s295 + $0xb8] sm:$0xff] %v342
                %v344 = vld [vmem:[%s294 + $0x100] sm:$0xff]
                %345 = vst [vmem:[%s295 + $0xc0] sm:$0xff] %v344
                %v346 = vld [vmem:[%s294 + $0x108] sm:$0xff]
                %347 = vst [vmem:[%s295 + $0xc8] sm:$0xff] %v346
                %v348 = vld [vmem:[%s294 + $0x110] sm:$0xff]
                %349 = vst [vmem:[%s295 + $0xd0] sm:$0xff] %v348
                %v350 = vld [vmem:[%s294 + $0x118] sm:$0xff]
                %351 = vst [vmem:[%s295 + $0xd8] sm:$0xff] %v350
              $region72: #{convnext_block.1} parent=66 // loop_footer
                %s293 = sadd.s32 1, %s289
              $region73: #{convnext_block.1} parent=66 // loop_footer_branch
                %288 = sbr.rel target = $region69
              $region74: #{convnext_block.1} parent=66 // loop_exit
                _
            $region67: #{convnext_block.1} parent=51 // pred_fallthru
              _
            %p352 = pneg %p284
            // Predicated region
            $region75: #{convnext_block.1} parent=51 // pred_check
              _
            $region76: #{convnext_block.1} parent=51 // pred_check_branch
              %354 = sbr.rel (%p284) target = $region78
            $region77: #{convnext_block.1} parent=51 // pred_region
              %s355 = sand.u32 112, 7
            $region78: #{convnext_block.1} parent=51 // pred_fallthru
              _
          $region52: #{convnext_block.1} parent=47 // pred_fallthru
            _
          // Predicated region
          $region53: #{convnext_block.1} parent=47 // pred_check
            %p267 = pneg %p263
          $region54: #{convnext_block.1} parent=47 // pred_check_branch
            %269 = sbr.rel (%p267) target = $region56
          $region55: #{convnext_block.1} parent=47 // pred_region
            %s270 = sshllo.u32 0, 112
            loop: start=0, step=1, limit=1
            $region57: #{convnext_block.1} parent=55 // loop_pre_header
              _
            $region58: #{convnext_block.1} parent=55 // loop_header
              %s272 = sphi 0, %s276
              %p273 = scmp.ge.s32.totalorder %s272, 1
              %s277 = sphi %s261, %s261
              %s278 = sphi [#allocation2], [#allocation2]
            $region59: #{convnext_block.1} parent=55 // loop_header_branch
              %275 = sbr.rel (%p273) target = $region63
            $region60: #{convnext_block.1} parent=55 // loop_body
              %v279 = vld [vmem:[%s277] sm:%s270]
              %280 = vst [vmem:[%s278] sm:%s270] %v279
              %v281 = vld [vmem:[%s277 + $0xb0] sm:%s270]
              %282 = vst [vmem:[%s278 + $0x70] sm:%s270] %v281
            $region61: #{convnext_block.1} parent=55 // loop_footer
              %s276 = sadd.s32 1, %s272
            $region62: #{convnext_block.1} parent=55 // loop_footer_branch
              %271 = sbr.rel target = $region58
            $region63: #{convnext_block.1} parent=55 // loop_exit
              _
          $region56: #{convnext_block.1} parent=47 // pred_fallthru
            _
          // Predicated region
          $region79: #{convnext_block.1} parent=47 // pred_check
            _
          $region80: #{convnext_block.1} parent=47 // pred_check_branch
            %358 = sbr.rel (0) target = $region82
          $region81: #{convnext_block.1} parent=47 // pred_region
            %359 = vsyncadd [#allocation3], 3584
          $region82: #{convnext_block.1} parent=47 // pred_fallthru
            _
        $region48: #{convnext_block.1} parent=43 // pred_fallthru
          _
        %s360 = smul.u32 %s254, 28
        %s361 = smul.addr %s360, 8
        %s362 = scalar_lea.vmem [#allocation2], %s361
        %s363 = scalar_lea.sflag [#allocation3], %s254
        %s364 = smul.u32 8, 2
        %s365 = smul.u32 %s364, 14
        %s366 = sshll.u32 %s365, 4
        %367 = dma.done %s363, %s366
        %s368 = sadd.s32 %s23, 1
        %p369 = scmp.lt.s32.totalorder %s368, 2
        // Predicated region
        $region83: #{convnext_block.1} parent=43 // pred_check
          %p370 = pneg %p369
        $region84: #{convnext_block.1} parent=43 // pred_check_branch
          %372 = sbr.rel (%p370) target = $region86
        $region85: #{convnext_block.1} parent=43 // pred_region
          %s373 = ssub.s32 1, %s254
          %s374 = smul.u32 %s368, 1024
          %s375 = sshra.s32 %s374, 7
          %s376 = sand.u32 %s374, 127
          %s377 = smul.u32 %s22, 44
          %s378 = sadd.s32 %s375, %s377
          %s379 = smul.addr %s378, 8
          %s380 = scalar_lea.vmem %s0, %s379
          %s381 = smul.u32 %s373, 28
          %s382 = smul.addr %s381, 8
          %s383 = scalar_lea.vmem [#allocation2], %s382
          %s384 = scalar_lea.sflag [#allocation3], %s373
          %p386 = scmp.lt.u32.totalorder 112, 8
          %p387 = pneg %p386
          // Predicated region
          $region87: #{convnext_block.1} parent=85 // pred_check
            _
          $region88: #{convnext_block.1} parent=85 // pred_check_branch
            %389 = sbr.rel (%p386) target = $region90
          $region89: #{convnext_block.1} parent=85 // pred_region
            %s406 = sand.u32 112, 7
            %p407 = scmp.eq.s32.totalorder %s406, 0
            // Predicated region
            $region102: #{convnext_block.1} parent=89 // pred_check
              %p408 = pneg %p407
            $region103: #{convnext_block.1} parent=89 // pred_check_branch
              %410 = sbr.rel (%p408) target = $region105
            $region104: #{convnext_block.1} parent=89 // pred_region
              loop: start=0, step=1, limit=1
              $region106: #{convnext_block.1} parent=104 // loop_pre_header
                _
              $region107: #{convnext_block.1} parent=104 // loop_header
                %s412 = sphi 0, %s416
                %p413 = scmp.ge.s32.totalorder %s412, 1
                %s417 = sphi %s380, %s380
                %s418 = sphi %s383, %s383
              $region108: #{convnext_block.1} parent=104 // loop_header_branch
                %415 = sbr.rel (%p413) target = $region112
              $region109: #{convnext_block.1} parent=104 // loop_body
                %v419 = vld [vmem:[%s417] sm:$0xff]
                %420 = vst [vmem:[%s418] sm:$0xff] %v419
                %v421 = vld [vmem:[%s417 + $0x8] sm:$0xff]
                %422 = vst [vmem:[%s418 + $0x8] sm:$0xff] %v421
                %v423 = vld [vmem:[%s417 + $0x10] sm:$0xff]
                %424 = vst [vmem:[%s418 + $0x10] sm:$0xff] %v423
                %v425 = vld [vmem:[%s417 + $0x18] sm:$0xff]
                %426 = vst [vmem:[%s418 + $0x18] sm:$0xff] %v425
                %v427 = vld [vmem:[%s417 + $0x20] sm:$0xff]
                %428 = vst [vmem:[%s418 + $0x20] sm:$0xff] %v427
                %v429 = vld [vmem:[%s417 + $0x28] sm:$0xff]
                %430 = vst [vmem:[%s418 + $0x28] sm:$0xff] %v429
                %v431 = vld [vmem:[%s417 + $0x30] sm:$0xff]
                %432 = vst [vmem:[%s418 + $0x30] sm:$0xff] %v431
                %v433 = vld [vmem:[%s417 + $0x38] sm:$0xff]
                %434 = vst [vmem:[%s418 + $0x38] sm:$0xff] %v433
                %v435 = vld [vmem:[%s417 + $0x40] sm:$0xff]
                %436 = vst [vmem:[%s418 + $0x40] sm:$0xff] %v435
                %v437 = vld [vmem:[%s417 + $0x48] sm:$0xff]
                %438 = vst [vmem:[%s418 + $0x48] sm:$0xff] %v437
                %v439 = vld [vmem:[%s417 + $0x50] sm:$0xff]
                %440 = vst [vmem:[%s418 + $0x50] sm:$0xff] %v439
                %v441 = vld [vmem:[%s417 + $0x58] sm:$0xff]
                %442 = vst [vmem:[%s418 + $0x58] sm:$0xff] %v441
                %v443 = vld [vmem:[%s417 + $0x60] sm:$0xff]
                %444 = vst [vmem:[%s418 + $0x60] sm:$0xff] %v443
                %v445 = vld [vmem:[%s417 + $0x68] sm:$0xff]
                %446 = vst [vmem:[%s418 + $0x68] sm:$0xff] %v445
                %v447 = vld [vmem:[%s417 + $0xb0] sm:$0xff]
                %448 = vst [vmem:[%s418 + $0x70] sm:$0xff] %v447
                %v449 = vld [vmem:[%s417 + $0xb8] sm:$0xff]
                %450 = vst [vmem:[%s418 + $0x78] sm:$0xff] %v449
                %v451 = vld [vmem:[%s417 + $0xc0] sm:$0xff]
                %452 = vst [vmem:[%s418 + $0x80] sm:$0xff] %v451
                %v453 = vld [vmem:[%s417 + $0xc8] sm:$0xff]
                %454 = vst [vmem:[%s418 + $0x88] sm:$0xff] %v453
                %v455 = vld [vmem:[%s417 + $0xd0] sm:$0xff]
                %456 = vst [vmem:[%s418 + $0x90] sm:$0xff] %v455
                %v457 = vld [vmem:[%s417 + $0xd8] sm:$0xff]
                %458 = vst [vmem:[%s418 + $0x98] sm:$0xff] %v457
                %v459 = vld [vmem:[%s417 + $0xe0] sm:$0xff]
                %460 = vst [vmem:[%s418 + $0xa0] sm:$0xff] %v459
                %v461 = vld [vmem:[%s417 + $0xe8] sm:$0xff]
                %462 = vst [vmem:[%s418 + $0xa8] sm:$0xff] %v461
                %v463 = vld [vmem:[%s417 + $0xf0] sm:$0xff]
                %464 = vst [vmem:[%s418 + $0xb0] sm:$0xff] %v463
                %v465 = vld [vmem:[%s417 + $0xf8] sm:$0xff]
                %466 = vst [vmem:[%s418 + $0xb8] sm:$0xff] %v465
                %v467 = vld [vmem:[%s417 + $0x100] sm:$0xff]
                %468 = vst [vmem:[%s418 + $0xc0] sm:$0xff] %v467
                %v469 = vld [vmem:[%s417 + $0x108] sm:$0xff]
                %470 = vst [vmem:[%s418 + $0xc8] sm:$0xff] %v469
                %v471 = vld [vmem:[%s417 + $0x110] sm:$0xff]
                %472 = vst [vmem:[%s418 + $0xd0] sm:$0xff] %v471
                %v473 = vld [vmem:[%s417 + $0x118] sm:$0xff]
                %474 = vst [vmem:[%s418 + $0xd8] sm:$0xff] %v473
              $region110: #{convnext_block.1} parent=104 // loop_footer
                %s416 = sadd.s32 1, %s412
              $region111: #{convnext_block.1} parent=104 // loop_footer_branch
                %411 = sbr.rel target = $region107
              $region112: #{convnext_block.1} parent=104 // loop_exit
                _
            $region105: #{convnext_block.1} parent=89 // pred_fallthru
              _
            %p475 = pneg %p407
            // Predicated region
            $region113: #{convnext_block.1} parent=89 // pred_check
              _
            $region114: #{convnext_block.1} parent=89 // pred_check_branch
              %477 = sbr.rel (%p407) target = $region116
            $region115: #{convnext_block.1} parent=89 // pred_region
              %s478 = sand.u32 112, 7
            $region116: #{convnext_block.1} parent=89 // pred_fallthru
              _
          $region90: #{convnext_block.1} parent=85 // pred_fallthru
            _
          // Predicated region
          $region91: #{convnext_block.1} parent=85 // pred_check
            %p390 = pneg %p386
          $region92: #{convnext_block.1} parent=85 // pred_check_branch
            %392 = sbr.rel (%p390) target = $region94
          $region93: #{convnext_block.1} parent=85 // pred_region
            %s393 = sshllo.u32 0, 112
            loop: start=0, step=1, limit=1
            $region95: #{convnext_block.1} parent=93 // loop_pre_header
              _
            $region96: #{convnext_block.1} parent=93 // loop_header
              %s395 = sphi 0, %s399
              %p396 = scmp.ge.s32.totalorder %s395, 1
              %s400 = sphi %s380, %s380
              %s401 = sphi %s383, %s383
            $region97: #{convnext_block.1} parent=93 // loop_header_branch
              %398 = sbr.rel (%p396) target = $region101
            $region98: #{convnext_block.1} parent=93 // loop_body
              %v402 = vld [vmem:[%s400] sm:%s393]
              %403 = vst [vmem:[%s401] sm:%s393] %v402
              %v404 = vld [vmem:[%s400 + $0xb0] sm:%s393]
              %405 = vst [vmem:[%s401 + $0x70] sm:%s393] %v404
            $region99: #{convnext_block.1} parent=93 // loop_footer
              %s399 = sadd.s32 1, %s395
            $region100: #{convnext_block.1} parent=93 // loop_footer_branch
              %394 = sbr.rel target = $region96
            $region101: #{convnext_block.1} parent=93 // loop_exit
              _
          $region94: #{convnext_block.1} parent=85 // pred_fallthru
            _
          // Predicated region
          $region117: #{convnext_block.1} parent=85 // pred_check
            _
          $region118: #{convnext_block.1} parent=85 // pred_check_branch
            %481 = sbr.rel (0) target = $region120
          $region119: #{convnext_block.1} parent=85 // pred_region
            %482 = vsyncadd %s384, 3584
          $region120: #{convnext_block.1} parent=85 // pred_fallthru
            _
        $region86: #{convnext_block.1} parent=43 // pred_fallthru
          _
        %v483 = vld [vmem:[%s1] sm:$0xff]
        %v484 = vld [vmem:[%s1 + $0x8] sm:$0xff]
        %v485 = vld [vmem:[%s2] sm:$0xff]
        %v486 = vld [vmem:[%s2 + $0x8] sm:$0xff]
        %v487 = vld [vmem:[%s3] sm:$0xf]
        %v488 = vld [vmem:[%s3 + $0x4] sm:$0xf]
        %v489 = vld [vmem:[%s3 + $0x8] sm:$0xf]
        %v490 = vld [vmem:[%s3 + $0xc] sm:$0xf]
        %v491 = vld [vmem:[%s3 + $0x10] sm:$0xf]
        %v492 = vld [vmem:[%s3 + $0x14] sm:$0xf]
        %v493 = vld [vmem:[%s3 + $0x18] sm:$0xf]
        %v494 = vld [vmem:[%s3 + $0x1c] sm:$0xf]
        %v495 = vld [vmem:[%s4] sm:$0xff]
        %v496 = vld [vmem:[%s4 + $0x8] sm:$0xff]
        %v497 = vld [vmem:[%s4 + $0x10] sm:$0xff]
        %v498 = vld [vmem:[%s4 + $0x18] sm:$0xff]
        %v499 = vld [vmem:[%s4 + $0x20] sm:$0xff]
        %v500 = vld [vmem:[%s4 + $0x28] sm:$0xff]
        %v501 = vld [vmem:[%s4 + $0x30] sm:$0xff]
        %v502 = vld [vmem:[%s4 + $0x38] sm:$0xff]
        %v503 = vld [vmem:[%s5] sm:$0xf]
        %v504 = vld [vmem:[%s5 + $0x4] sm:$0xf]
        %v505 = vld [vmem:[%s6] sm:$0xff]
        %v506 = vld [vmem:[%s6 + $0x8] sm:$0xff]
        %v507 = vld [vmem:[%s362] sm:$0xff]
        %v508 = vld [vmem:[%s362 + $0x8] sm:$0xff]
        %v509 = vld [vmem:[%s362 + $0x10] sm:$0xff]
        %v510 = vld [vmem:[%s362 + $0x18] sm:$0xff]
        %v511 = vld [vmem:[%s362 + $0x20] sm:$0xff]
        %v512 = vld [vmem:[%s362 + $0x28] sm:$0xff]
        %v513 = vld [vmem:[%s362 + $0x30] sm:$0xff]
        %v514 = vld [vmem:[%s362 + $0x38] sm:$0xff]
        %v515 = vld [vmem:[%s362 + $0x40] sm:$0xff]
        %v516 = vld [vmem:[%s362 + $0x48] sm:$0xff]
        %v517 = vld [vmem:[%s362 + $0x70] sm:$0xff]
        %v518 = vld [vmem:[%s362 + $0x78] sm:$0xff]
        %v519 = vld [vmem:[%s362 + $0x80] sm:$0xff]
        %v520 = vld [vmem:[%s362 + $0x88] sm:$0xff]
        %v521 = vld [vmem:[%s362 + $0x90] sm:$0xff]
        %v522 = vld [vmem:[%s362 + $0x98] sm:$0xff]
        %v523 = vld [vmem:[%s362 + $0xa0] sm:$0xff]
        %v524 = vld [vmem:[%s362 + $0xa8] sm:$0xff]
        %v525 = vld [vmem:[%s362 + $0xb0] sm:$0xff]
        %v526 = vld [vmem:[%s362 + $0xb8] sm:$0xff]
        %527 = vrot.lane.b32.xlu0 %v507, 3
        %v528 = vpop.permute.xlu0 %527
        %529 = vrot.lane.b32.xlu0 %v517, 3
        %v530 = vpop.permute.xlu0 %529
        %531 = vrot.lane.b32.xlu0 %v508, 3
        %v532 = vpop.permute.xlu0 %531
        %533 = vrot.lane.b32.xlu0 %v518, 3
        %v534 = vpop.permute.xlu0 %533
        %535 = vrot.lane.b32.xlu0 %v509, 3
        %v536 = vpop.permute.xlu0 %535
        %537 = vrot.lane.b32.xlu0 %v519, 3
        %v538 = vpop.permute.xlu0 %537
        %539 = vrot.lane.b32.xlu0 %v510, 3
        %v540 = vpop.permute.xlu0 %539
        %541 = vrot.lane.b32.xlu0 %v520, 3
        %v542 = vpop.permute.xlu0 %541
        %543 = vrot.lane.b32.xlu0 %v511, 3
        %v544 = vpop.permute.xlu0 %543
        %545 = vrot.lane.b32.xlu0 %v521, 3
        %v546 = vpop.permute.xlu0 %545
        %547 = vrot.lane.b32.xlu0 %v512, 3
        %v548 = vpop.permute.xlu0 %547
        %549 = vrot.lane.b32.xlu0 %v522, 3
        %v550 = vpop.permute.xlu0 %549
        %551 = vrot.lane.b32.xlu0 %v513, 3
        %v552 = vpop.permute.xlu0 %551
        %553 = vrot.lane.b32.xlu0 %v523, 3
        %v554 = vpop.permute.xlu0 %553
        %555 = vrot.lane.b32.xlu0 %v514, 3
        %v556 = vpop.permute.xlu0 %555
        %557 = vrot.lane.b32.xlu0 %v524, 3
        %v558 = vpop.permute.xlu0 %557
        %559 = vrot.lane.b32.xlu0 %v515, 3
        %v560 = vpop.permute.xlu0 %559
        %561 = vrot.lane.b32.xlu0 %v525, 3
        %v562 = vpop.permute.xlu0 %561
        %563 = vrot.lane.b32.xlu0 %v516, 3
        %v564 = vpop.permute.xlu0 %563
        %565 = vrot.lane.b32.xlu0 %v526, 3
        %v566 = vpop.permute.xlu0 %565
        %v567 = vlaneseq
        %v568 = vand.u32 %v567, 127
        %vm569 = vcmp.lt.s32.totalorder %v568, 3
        %v570 = vsel %vm569, %v560, %v564
        %v571 = vsel %vm569, %v562, %v566
        %v572 = vsel %vm569, %v556, %v560
        %v573 = vsel %vm569, %v558, %v562
        %v574 = vsel %vm569, %v552, %v556
        %v575 = vsel %vm569, %v554, %v558
        %v576 = vsel %vm569, %v548, %v552
        %v577 = vsel %vm569, %v550, %v554
        %v578 = vsel %vm569, %v544, %v548
        %v579 = vsel %vm569, %v546, %v550
        %v580 = vsel %vm569, %v540, %v544
        %v581 = vsel %vm569, %v542, %v546
        %v582 = vsel %vm569, %v536, %v540
        %v583 = vsel %vm569, %v538, %v542
        %v584 = vsel %vm569, %v532, %v536
        %v585 = vsel %vm569, %v534, %v538
        %v586 = vsel %vm569, %v528, %v532
        %v587 = vsel %vm569, %v530, %v534
        %v588 = vsel %vm569, %v564, %v528
        %v589 = vsel %vm569, %v566, %v530
        %591 = vset.pattern.permute.xlu0 0
        %592 = vperm.xlu0 %591, %v483
        %v593 = vpop.permute.xlu0 %592
        %596 = vset.pattern.permute.xlu0 0
        %597 = vperm.xlu0 %596, %v484
        %v598 = vpop.permute.xlu0 %597
        %v600 = vmul.f32 %v588, %v593
        %v601 = vmul.f32 %v586, %v593
        %v602 = vmul.f32 %v584, %v593
        %v603 = vmul.f32 %v582, %v593
        %v604 = vmul.f32 %v589, %v598
        %v605 = vmul.f32 %v587, %v598
        %v606 = vmul.f32 %v585, %v598
        %v607 = vmul.f32 %v583, %v598
        %v608 = vadd.f32 %v600, 0.0
        %v609 = vadd.f32 %v601, 0.0
        %v610 = vadd.f32 %v602, 0.0
        %v611 = vadd.f32 %v603, 0.0
        %v612 = vadd.f32 %v604, 0.0
        %v613 = vadd.f32 %v605, 0.0
        %v614 = vadd.f32 %v606, 0.0
        %v615 = vadd.f32 %v607, 0.0
        %616 = vset.pattern.permute.xlu0 7
        %617 = vperm.xlu0 %616, %v483
        %v618 = vpop.permute.xlu0 %617
        %620 = vset.pattern.permute.xlu0 7
        %621 = vperm.xlu0 %620, %v484
        %v622 = vpop.permute.xlu0 %621
        %v624 = vmul.f32 %v586, %v618
        %v625 = vmul.f32 %v584, %v618
        %v626 = vmul.f32 %v582, %v618
        %v627 = vmul.f32 %v580, %v618
        %v628 = vmul.f32 %v587, %v622
        %v629 = vmul.f32 %v585, %v622
        %v630 = vmul.f32 %v583, %v622
        %v631 = vmul.f32 %v581, %v622
        %v632 = vadd.f32 %v608, %v624
        %v633 = vadd.f32 %v609, %v625
        %v634 = vadd.f32 %v610, %v626
        %v635 = vadd.f32 %v611, %v627
        %v636 = vadd.f32 %v612, %v628
        %v637 = vadd.f32 %v613, %v629
        %v638 = vadd.f32 %v614, %v630
        %v639 = vadd.f32 %v615, %v631
        %640 = vset.pattern.permute.xlu0 14
        %641 = vperm.xlu0 %640, %v483
        %v642 = vpop.permute.xlu0 %641
        %644 = vset.pattern.permute.xlu0 14
        %645 = vperm.xlu0 %644, %v484
        %v646 = vpop.permute.xlu0 %645
        %v648 = vmul.f32 %v584, %v642
        %v649 = vmul.f32 %v582, %v642
        %v650 = vmul.f32 %v580, %v642
        %v651 = vmul.f32 %v578, %v642
        %v652 = vmul.f32 %v585, %v646
        %v653 = vmul.f32 %v583, %v646
        %v654 = vmul.f32 %v581, %v646
        %v655 = vmul.f32 %v579, %v646
        %v656 = vadd.f32 %v632, %v648
        %v657 = vadd.f32 %v633, %v649
        %v658 = vadd.f32 %v634, %v650
        %v659 = vadd.f32 %v635, %v651
        %v660 = vadd.f32 %v636, %v652
        %v661 = vadd.f32 %v637, %v653
        %v662 = vadd.f32 %v638, %v654
        %v663 = vadd.f32 %v639, %v655
        %664 = vset.pattern.permute.xlu0 21
        %665 = vperm.xlu0 %664, %v483
        %v666 = vpop.permute.xlu0 %665
        %668 = vset.pattern.permute.xlu0 21
        %669 = vperm.xlu0 %668, %v484
        %v670 = vpop.permute.xlu0 %669
        %v672 = vmul.f32 %v582, %v666
        %v673 = vmul.f32 %v580, %v666
        %v674 = vmul.f32 %v578, %v666
        %v675 = vmul.f32 %v576, %v666
        %v676 = vmul.f32 %v583, %v670
        %v677 = vmul.f32 %v581, %v670
        %v678 = vmul.f32 %v579, %v670
        %v679 = vmul.f32 %v577, %v670
        %v680 = vadd.f32 %v656, %v672
        %v681 = vadd.f32 %v657, %v673
        %v682 = vadd.f32 %v658, %v674
        %v683 = vadd.f32 %v659, %v675
        %v684 = vadd.f32 %v660, %v676
        %v685 = vadd.f32 %v661, %v677
        %v686 = vadd.f32 %v662, %v678
        %v687 = vadd.f32 %v663, %v679
        %688 = vset.pattern.permute.xlu0 28
        %689 = vperm.xlu0 %688, %v483
        %v690 = vpop.permute.xlu0 %689
        %692 = vset.pattern.permute.xlu0 28
        %693 = vperm.xlu0 %692, %v484
        %v694 = vpop.permute.xlu0 %693
        %v696 = vmul.f32 %v580, %v690
        %v697 = vmul.f32 %v578, %v690
        %v698 = vmul.f32 %v576, %v690
        %v699 = vmul.f32 %v574, %v690
        %v700 = vmul.f32 %v581, %v694
        %v701 = vmul.f32 %v579, %v694
        %v702 = vmul.f32 %v577, %v694
        %v703 = vmul.f32 %v575, %v694
        %v704 = vadd.f32 %v680, %v696
        %v705 = vadd.f32 %v681, %v697
        %v706 = vadd.f32 %v682, %v698
        %v707 = vadd.f32 %v683, %v699
        %v708 = vadd.f32 %v684, %v700
        %v709 = vadd.f32 %v685, %v701
        %v710 = vadd.f32 %v686, %v702
        %v711 = vadd.f32 %v687, %v703
        %712 = vset.pattern.permute.xlu0 35
        %713 = vperm.xlu0 %712, %v483
        %v714 = vpop.permute.xlu0 %713
        %716 = vset.pattern.permute.xlu0 35
        %717 = vperm.xlu0 %716, %v484
        %v718 = vpop.permute.xlu0 %717
        %v720 = vmul.f32 %v578, %v714
        %v721 = vmul.f32 %v576, %v714
        %v722 = vmul.f32 %v574, %v714
        %v723 = vmul.f32 %v572, %v714
        %v724 = vmul.f32 %v579, %v718
        %v725 = vmul.f32 %v577, %v718
        %v726 = vmul.f32 %v575, %v718
        %v727 = vmul.f32 %v573, %v718
        %v728 = vadd.f32 %v704, %v720
        %v729 = vadd.f32 %v705, %v721
        %v730 = vadd.f32 %v706, %v722
        %v731 = vadd.f32 %v707, %v723
        %v732 = vadd.f32 %v708, %v724
        %v733 = vadd.f32 %v709, %v725
        %v734 = vadd.f32 %v710, %v726
        %v735 = vadd.f32 %v711, %v727
        %736 = vset.pattern.permute.xlu0 42
        %737 = vperm.xlu0 %736, %v483
        %v738 = vpop.permute.xlu0 %737
        %740 = vset.pattern.permute.xlu0 42
        %741 = vperm.xlu0 %740, %v484
        %v742 = vpop.permute.xlu0 %741
        %v744 = vmul.f32 %v576, %v738
        %v745 = vmul.f32 %v574, %v738
        %v746 = vmul.f32 %v572, %v738
        %v747 = vmul.f32 %v570, %v738
        %v748 = vmul.f32 %v577, %v742
        %v749 = vmul.f32 %v575, %v742
        %v750 = vmul.f32 %v573, %v742
        %v751 = vmul.f32 %v571, %v742
        %v752 = vadd.f32 %v728, %v744
        %v753 = vadd.f32 %v729, %v745
        %v754 = vadd.f32 %v730, %v746
        %v755 = vadd.f32 %v731, %v747
        %v756 = vadd.f32 %v732, %v748
        %v757 = vadd.f32 %v733, %v749
        %v758 = vadd.f32 %v734, %v750
        %v759 = vadd.f32 %v735, %v751
        %760 = vrot.lane.b32.xlu0 %v507, 2
        %v761 = vpop.permute.xlu0 %760
        %762 = vrot.lane.b32.xlu0 %v517, 2
        %v763 = vpop.permute.xlu0 %762
        %764 = vrot.lane.b32.xlu0 %v508, 2
        %v765 = vpop.permute.xlu0 %764
        %766 = vrot.lane.b32.xlu0 %v518, 2
        %v767 = vpop.permute.xlu0 %766
        %768 = vrot.lane.b32.xlu0 %v509, 2
        %v769 = vpop.permute.xlu0 %768
        %770 = vrot.lane.b32.xlu0 %v519, 2
        %v771 = vpop.permute.xlu0 %770
        %772 = vrot.lane.b32.xlu0 %v510, 2
        %v773 = vpop.permute.xlu0 %772
        %774 = vrot.lane.b32.xlu0 %v520, 2
        %v775 = vpop.permute.xlu0 %774
        %776 = vrot.lane.b32.xlu0 %v511, 2
        %v777 = vpop.permute.xlu0 %776
        %778 = vrot.lane.b32.xlu0 %v521, 2
        %v779 = vpop.permute.xlu0 %778
        %780 = vrot.lane.b32.xlu0 %v512, 2
        %v781 = vpop.permute.xlu0 %780
        %782 = vrot.lane.b32.xlu0 %v522, 2
        %v783 = vpop.permute.xlu0 %782
        %784 = vrot.lane.b32.xlu0 %v513, 2
        %v785 = vpop.permute.xlu0 %784
        %786 = vrot.lane.b32.xlu0 %v523, 2
        %v787 = vpop.permute.xlu0 %786
        %788 = vrot.lane.b32.xlu0 %v514, 2
        %v789 = vpop.permute.xlu0 %788
        %790 = vrot.lane.b32.xlu0 %v524, 2
        %v791 = vpop.permute.xlu0 %790
        %792 = vrot.lane.b32.xlu0 %v515, 2
        %v793 = vpop.permute.xlu0 %792
        %794 = vrot.lane.b32.xlu0 %v525, 2
        %v795 = vpop.permute.xlu0 %794
        %796 = vrot.lane.b32.xlu0 %v516, 2
        %v797 = vpop.permute.xlu0 %796
        %798 = vrot.lane.b32.xlu0 %v526, 2
        %v799 = vpop.permute.xlu0 %798
        %vm800 = vcmp.lt.s32.totalorder %v568, 2
        %v801 = vsel %vm800, %v793, %v797
        %v802 = vsel %vm800, %v795, %v799
        %v803 = vsel %vm800, %v789, %v793
        %v804 = vsel %vm800, %v791, %v795
        %v805 = vsel %vm800, %v785, %v789
        %v806 = vsel %vm800, %v787, %v791
        %v807 = vsel %vm800, %v781, %v785
        %v808 = vsel %vm800, %v783, %v787
        %v809 = vsel %vm800, %v777, %v781
        %v810 = vsel %vm800, %v779, %v783
        %v811 = vsel %vm800, %v773, %v777
        %v812 = vsel %vm800, %v775, %v779
        %v813 = vsel %vm800, %v769, %v773
        %v814 = vsel %vm800, %v771, %v775
        %v815 = vsel %vm800, %v765, %v769
        %v816 = vsel %vm800, %v767, %v771
        %v817 = vsel %vm800, %v761, %v765
        %v818 = vsel %vm800, %v763, %v767
        %v819 = vsel %vm800, %v797, %v761
        %v820 = vsel %vm800, %v799, %v763
        %821 = vset.pattern.permute.xlu0 1
        %822 = vperm.xlu0 %821, %v483
        %v823 = vpop.permute.xlu0 %822
        %825 = vset.pattern.permute.xlu0 1
        %826 = vperm.xlu0 %825, %v484
        %v827 = vpop.permute.xlu0 %826
        %v829 = vmul.f32 %v819, %v823
        %v830 = vmul.f32 %v817, %v823
        %v831 = vmul.f32 %v815, %v823
        %v832 = vmul.f32 %v813, %v823
        %v833 = vmul.f32 %v820, %v827
        %v834 = vmul.f32 %v818, %v827
        %v835 = vmul.f32 %v816, %v827
        %v836 = vmul.f32 %v814, %v827
        %v837 = vadd.f32 %v752, %v829
        %v838 = vadd.f32 %v753, %v830
        %v839 = vadd.f32 %v754, %v831
        %v840 = vadd.f32 %v755, %v832
        %v841 = vadd.f32 %v756, %v833
        %v842 = vadd.f32 %v757, %v834
        %v843 = vadd.f32 %v758, %v835
        %v844 = vadd.f32 %v759, %v836
        %845 = vset.pattern.permute.xlu0 8
        %846 = vperm.xlu0 %845, %v483
        %v847 = vpop.permute.xlu0 %846
        %849 = vset.pattern.permute.xlu0 8
        %850 = vperm.xlu0 %849, %v484
        %v851 = vpop.permute.xlu0 %850
        %v853 = vmul.f32 %v817, %v847
        %v854 = vmul.f32 %v815, %v847
        %v855 = vmul.f32 %v813, %v847
        %v856 = vmul.f32 %v811, %v847
        %v857 = vmul.f32 %v818, %v851
        %v858 = vmul.f32 %v816, %v851
        %v859 = vmul.f32 %v814, %v851
        %v860 = vmul.f32 %v812, %v851
        %v861 = vadd.f32 %v837, %v853
        %v862 = vadd.f32 %v838, %v854
        %v863 = vadd.f32 %v839, %v855
        %v864 = vadd.f32 %v840, %v856
        %v865 = vadd.f32 %v841, %v857
        %v866 = vadd.f32 %v842, %v858
        %v867 = vadd.f32 %v843, %v859
        %v868 = vadd.f32 %v844, %v860
        %869 = vset.pattern.permute.xlu0 15
        %870 = vperm.xlu0 %869, %v483
        %v871 = vpop.permute.xlu0 %870
        %873 = vset.pattern.permute.xlu0 15
        %874 = vperm.xlu0 %873, %v484
        %v875 = vpop.permute.xlu0 %874
        %v877 = vmul.f32 %v815, %v871
        %v878 = vmul.f32 %v813, %v871
        %v879 = vmul.f32 %v811, %v871
        %v880 = vmul.f32 %v809, %v871
        %v881 = vmul.f32 %v816, %v875
        %v882 = vmul.f32 %v814, %v875
        %v883 = vmul.f32 %v812, %v875
        %v884 = vmul.f32 %v810, %v875
        %v885 = vadd.f32 %v861, %v877
        %v886 = vadd.f32 %v862, %v878
        %v887 = vadd.f32 %v863, %v879
        %v888 = vadd.f32 %v864, %v880
        %v889 = vadd.f32 %v865, %v881
        %v890 = vadd.f32 %v866, %v882
        %v891 = vadd.f32 %v867, %v883
        %v892 = vadd.f32 %v868, %v884
        %893 = vset.pattern.permute.xlu0 22
        %894 = vperm.xlu0 %893, %v483
        %v895 = vpop.permute.xlu0 %894
        %897 = vset.pattern.permute.xlu0 22
        %898 = vperm.xlu0 %897, %v484
        %v899 = vpop.permute.xlu0 %898
        %v901 = vmul.f32 %v813, %v895
        %v902 = vmul.f32 %v811, %v895
        %v903 = vmul.f32 %v809, %v895
        %v904 = vmul.f32 %v807, %v895
        %v905 = vmul.f32 %v814, %v899
        %v906 = vmul.f32 %v812, %v899
        %v907 = vmul.f32 %v810, %v899
        %v908 = vmul.f32 %v808, %v899
        %v909 = vadd.f32 %v885, %v901
        %v910 = vadd.f32 %v886, %v902
        %v911 = vadd.f32 %v887, %v903
        %v912 = vadd.f32 %v888, %v904
        %v913 = vadd.f32 %v889, %v905
        %v914 = vadd.f32 %v890, %v906
        %v915 = vadd.f32 %v891, %v907
        %v916 = vadd.f32 %v892, %v908
        %917 = vset.pattern.permute.xlu0 29
        %918 = vperm.xlu0 %917, %v483
        %v919 = vpop.permute.xlu0 %918
        %921 = vset.pattern.permute.xlu0 29
        %922 = vperm.xlu0 %921, %v484
        %v923 = vpop.permute.xlu0 %922
        %v925 = vmul.f32 %v811, %v919
        %v926 = vmul.f32 %v809, %v919
        %v927 = vmul.f32 %v807, %v919
        %v928 = vmul.f32 %v805, %v919
        %v929 = vmul.f32 %v812, %v923
        %v930 = vmul.f32 %v810, %v923
        %v931 = vmul.f32 %v808, %v923
        %v932 = vmul.f32 %v806, %v923
        %v933 = vadd.f32 %v909, %v925
        %v934 = vadd.f32 %v910, %v926
        %v935 = vadd.f32 %v911, %v927
        %v936 = vadd.f32 %v912, %v928
        %v937 = vadd.f32 %v913, %v929
        %v938 = vadd.f32 %v914, %v930
        %v939 = vadd.f32 %v915, %v931
        %v940 = vadd.f32 %v916, %v932
        %941 = vset.pattern.permute.xlu0 36
        %942 = vperm.xlu0 %941, %v483
        %v943 = vpop.permute.xlu0 %942
        %945 = vset.pattern.permute.xlu0 36
        %946 = vperm.xlu0 %945, %v484
        %v947 = vpop.permute.xlu0 %946
        %v949 = vmul.f32 %v809, %v943
        %v950 = vmul.f32 %v807, %v943
        %v951 = vmul.f32 %v805, %v943
        %v952 = vmul.f32 %v803, %v943
        %v953 = vmul.f32 %v810, %v947
        %v954 = vmul.f32 %v808, %v947
        %v955 = vmul.f32 %v806, %v947
        %v956 = vmul.f32 %v804, %v947
        %v957 = vadd.f32 %v933, %v949
        %v958 = vadd.f32 %v934, %v950
        %v959 = vadd.f32 %v935, %v951
        %v960 = vadd.f32 %v936, %v952
        %v961 = vadd.f32 %v937, %v953
        %v962 = vadd.f32 %v938, %v954
        %v963 = vadd.f32 %v939, %v955
        %v964 = vadd.f32 %v940, %v956
        %965 = vset.pattern.permute.xlu0 43
        %966 = vperm.xlu0 %965, %v483
        %v967 = vpop.permute.xlu0 %966
        %969 = vset.pattern.permute.xlu0 43
        %970 = vperm.xlu0 %969, %v484
        %v971 = vpop.permute.xlu0 %970
        %v973 = vmul.f32 %v807, %v967
        %v974 = vmul.f32 %v805, %v967
        %v975 = vmul.f32 %v803, %v967
        %v976 = vmul.f32 %v801, %v967
        %v977 = vmul.f32 %v808, %v971
        %v978 = vmul.f32 %v806, %v971
        %v979 = vmul.f32 %v804, %v971
        %v980 = vmul.f32 %v802, %v971
        %v981 = vadd.f32 %v957, %v973
        %v982 = vadd.f32 %v958, %v974
        %v983 = vadd.f32 %v959, %v975
        %v984 = vadd.f32 %v960, %v976
        %v985 = vadd.f32 %v961, %v977
        %v986 = vadd.f32 %v962, %v978
        %v987 = vadd.f32 %v963, %v979
        %v988 = vadd.f32 %v964, %v980
        %989 = vrot.lane.b32.xlu0 %v507, 1
        %v990 = vpop.permute.xlu0 %989
        %991 = vrot.lane.b32.xlu0 %v517, 1
        %v992 = vpop.permute.xlu0 %991
        %993 = vrot.lane.b32.xlu0 %v508, 1
        %v994 = vpop.permute.xlu0 %993
        %995 = vrot.lane.b32.xlu0 %v518, 1
        %v996 = vpop.permute.xlu0 %995
        %997 = vrot.lane.b32.xlu0 %v509, 1
        %v998 = vpop.permute.xlu0 %997
        %999 = vrot.lane.b32.xlu0 %v519, 1
        %v1000 = vpop.permute.xlu0 %999
        %1001 = vrot.lane.b32.xlu0 %v510, 1
        %v1002 = vpop.permute.xlu0 %1001
        %1003 = vrot.lane.b32.xlu0 %v520, 1
        %v1004 = vpop.permute.xlu0 %1003
        %1005 = vrot.lane.b32.xlu0 %v511, 1
        %v1006 = vpop.permute.xlu0 %1005
        %1007 = vrot.lane.b32.xlu0 %v521, 1
        %v1008 = vpop.permute.xlu0 %1007
        %1009 = vrot.lane.b32.xlu0 %v512, 1
        %v1010 = vpop.permute.xlu0 %1009
        %1011 = vrot.lane.b32.xlu0 %v522, 1
        %v1012 = vpop.permute.xlu0 %1011
        %1013 = vrot.lane.b32.xlu0 %v513, 1
        %v1014 = vpop.permute.xlu0 %1013
        %1015 = vrot.lane.b32.xlu0 %v523, 1
        %v1016 = vpop.permute.xlu0 %1015
        %1017 = vrot.lane.b32.xlu0 %v514, 1
        %v1018 = vpop.permute.xlu0 %1017
        %1019 = vrot.lane.b32.xlu0 %v524, 1
        %v1020 = vpop.permute.xlu0 %1019
        %1021 = vrot.lane.b32.xlu0 %v515, 1
        %v1022 = vpop.permute.xlu0 %1021
        %1023 = vrot.lane.b32.xlu0 %v525, 1
        %v1024 = vpop.permute.xlu0 %1023
        %1025 = vrot.lane.b32.xlu0 %v516, 1
        %v1026 = vpop.permute.xlu0 %1025
        %1027 = vrot.lane.b32.xlu0 %v526, 1
        %v1028 = vpop.permute.xlu0 %1027
        %vm1029 = vcmp.lt.s32.totalorder %v568, 1
        %v1030 = vsel %vm1029, %v1022, %v1026
        %v1031 = vsel %vm1029, %v1024, %v1028
        %v1032 = vsel %vm1029, %v1018, %v1022
        %v1033 = vsel %vm1029, %v1020, %v1024
        %v1034 = vsel %vm1029, %v1014, %v1018
        %v1035 = vsel %vm1029, %v1016, %v1020
        %v1036 = vsel %vm1029, %v1010, %v1014
        %v1037 = vsel %vm1029, %v1012, %v1016
        %v1038 = vsel %vm1029, %v1006, %v1010
        %v1039 = vsel %vm1029, %v1008, %v1012
        %v1040 = vsel %vm1029, %v1002, %v1006
        %v1041 = vsel %vm1029, %v1004, %v1008
        %v1042 = vsel %vm1029, %v998, %v1002
        %v1043 = vsel %vm1029, %v1000, %v1004
        %v1044 = vsel %vm1029, %v994, %v998
        %v1045 = vsel %vm1029, %v996, %v1000
        %v1046 = vsel %vm1029, %v990, %v994
        %v1047 = vsel %vm1029, %v992, %v996
        %v1048 = vsel %vm1029, %v1026, %v990
        %v1049 = vsel %vm1029, %v1028, %v992
        %1050 = vset.pattern.permute.xlu0 2
        %1051 = vperm.xlu0 %1050, %v483
        %v1052 = vpop.permute.xlu0 %1051
        %1054 = vset.pattern.permute.xlu0 2
        %1055 = vperm.xlu0 %1054, %v484
        %v1056 = vpop.permute.xlu0 %1055
        %v1058 = vmul.f32 %v1048, %v1052
        %v1059 = vmul.f32 %v1046, %v1052
        %v1060 = vmul.f32 %v1044, %v1052
        %v1061 = vmul.f32 %v1042, %v1052
        %v1062 = vmul.f32 %v1049, %v1056
        %v1063 = vmul.f32 %v1047, %v1056
        %v1064 = vmul.f32 %v1045, %v1056
        %v1065 = vmul.f32 %v1043, %v1056
        %v1066 = vadd.f32 %v981, %v1058
        %v1067 = vadd.f32 %v982, %v1059
        %v1068 = vadd.f32 %v983, %v1060
        %v1069 = vadd.f32 %v984, %v1061
        %v1070 = vadd.f32 %v985, %v1062
        %v1071 = vadd.f32 %v986, %v1063
        %v1072 = vadd.f32 %v987, %v1064
        %v1073 = vadd.f32 %v988, %v1065
        %1074 = vset.pattern.permute.xlu0 9
        %1075 = vperm.xlu0 %1074, %v483
        %v1076 = vpop.permute.xlu0 %1075
        %1078 = vset.pattern.permute.xlu0 9
        %1079 = vperm.xlu0 %1078, %v484
        %v1080 = vpop.permute.xlu0 %1079
        %v1082 = vmul.f32 %v1046, %v1076
        %v1083 = vmul.f32 %v1044, %v1076
        %v1084 = vmul.f32 %v1042, %v1076
        %v1085 = vmul.f32 %v1040, %v1076
        %v1086 = vmul.f32 %v1047, %v1080
        %v1087 = vmul.f32 %v1045, %v1080
        %v1088 = vmul.f32 %v1043, %v1080
        %v1089 = vmul.f32 %v1041, %v1080
        %v1090 = vadd.f32 %v1066, %v1082
        %v1091 = vadd.f32 %v1067, %v1083
        %v1092 = vadd.f32 %v1068, %v1084
        %v1093 = vadd.f32 %v1069, %v1085
        %v1094 = vadd.f32 %v1070, %v1086
        %v1095 = vadd.f32 %v1071, %v1087
        %v1096 = vadd.f32 %v1072, %v1088
        %v1097 = vadd.f32 %v1073, %v1089
        %1098 = vset.pattern.permute.xlu0 16
        %1099 = vperm.xlu0 %1098, %v483
        %v1100 = vpop.permute.xlu0 %1099
        %1102 = vset.pattern.permute.xlu0 16
        %1103 = vperm.xlu0 %1102, %v484
        %v1104 = vpop.permute.xlu0 %1103
        %v1106 = vmul.f32 %v1044, %v1100
        %v1107 = vmul.f32 %v1042, %v1100
        %v1108 = vmul.f32 %v1040, %v1100
        %v1109 = vmul.f32 %v1038, %v1100
        %v1110 = vmul.f32 %v1045, %v1104
        %v1111 = vmul.f32 %v1043, %v1104
        %v1112 = vmul.f32 %v1041, %v1104
        %v1113 = vmul.f32 %v1039, %v1104
        %v1114 = vadd.f32 %v1090, %v1106
        %v1115 = vadd.f32 %v1091, %v1107
        %v1116 = vadd.f32 %v1092, %v1108
        %v1117 = vadd.f32 %v1093, %v1109
        %v1118 = vadd.f32 %v1094, %v1110
        %v1119 = vadd.f32 %v1095, %v1111
        %v1120 = vadd.f32 %v1096, %v1112
        %v1121 = vadd.f32 %v1097, %v1113
        %1122 = vset.pattern.permute.xlu0 23
        %1123 = vperm.xlu0 %1122, %v483
        %v1124 = vpop.permute.xlu0 %1123
        %1126 = vset.pattern.permute.xlu0 23
        %1127 = vperm.xlu0 %1126, %v484
        %v1128 = vpop.permute.xlu0 %1127
        %v1130 = vmul.f32 %v1042, %v1124
        %v1131 = vmul.f32 %v1040, %v1124
        %v1132 = vmul.f32 %v1038, %v1124
        %v1133 = vmul.f32 %v1036, %v1124
        %v1134 = vmul.f32 %v1043, %v1128
        %v1135 = vmul.f32 %v1041, %v1128
        %v1136 = vmul.f32 %v1039, %v1128
        %v1137 = vmul.f32 %v1037, %v1128
        %v1138 = vadd.f32 %v1114, %v1130
        %v1139 = vadd.f32 %v1115, %v1131
        %v1140 = vadd.f32 %v1116, %v1132
        %v1141 = vadd.f32 %v1117, %v1133
        %v1142 = vadd.f32 %v1118, %v1134
        %v1143 = vadd.f32 %v1119, %v1135
        %v1144 = vadd.f32 %v1120, %v1136
        %v1145 = vadd.f32 %v1121, %v1137
        %1146 = vset.pattern.permute.xlu0 30
        %1147 = vperm.xlu0 %1146, %v483
        %v1148 = vpop.permute.xlu0 %1147
        %1150 = vset.pattern.permute.xlu0 30
        %1151 = vperm.xlu0 %1150, %v484
        %v1152 = vpop.permute.xlu0 %1151
        %v1154 = vmul.f32 %v1040, %v1148
        %v1155 = vmul.f32 %v1038, %v1148
        %v1156 = vmul.f32 %v1036, %v1148
        %v1157 = vmul.f32 %v1034, %v1148
        %v1158 = vmul.f32 %v1041, %v1152
        %v1159 = vmul.f32 %v1039, %v1152
        %v1160 = vmul.f32 %v1037, %v1152
        %v1161 = vmul.f32 %v1035, %v1152
        %v1162 = vadd.f32 %v1138, %v1154
        %v1163 = vadd.f32 %v1139, %v1155
        %v1164 = vadd.f32 %v1140, %v1156
        %v1165 = vadd.f32 %v1141, %v1157
        %v1166 = vadd.f32 %v1142, %v1158
        %v1167 = vadd.f32 %v1143, %v1159
        %v1168 = vadd.f32 %v1144, %v1160
        %v1169 = vadd.f32 %v1145, %v1161
        %1170 = vset.pattern.permute.xlu0 37
        %1171 = vperm.xlu0 %1170, %v483
        %v1172 = vpop.permute.xlu0 %1171
        %1174 = vset.pattern.permute.xlu0 37
        %1175 = vperm.xlu0 %1174, %v484
        %v1176 = vpop.permute.xlu0 %1175
        %v1178 = vmul.f32 %v1038, %v1172
        %v1179 = vmul.f32 %v1036, %v1172
        %v1180 = vmul.f32 %v1034, %v1172
        %v1181 = vmul.f32 %v1032, %v1172
        %v1182 = vmul.f32 %v1039, %v1176
        %v1183 = vmul.f32 %v1037, %v1176
        %v1184 = vmul.f32 %v1035, %v1176
        %v1185 = vmul.f32 %v1033, %v1176
        %v1186 = vadd.f32 %v1162, %v1178
        %v1187 = vadd.f32 %v1163, %v1179
        %v1188 = vadd.f32 %v1164, %v1180
        %v1189 = vadd.f32 %v1165, %v1181
        %v1190 = vadd.f32 %v1166, %v1182
        %v1191 = vadd.f32 %v1167, %v1183
        %v1192 = vadd.f32 %v1168, %v1184
        %v1193 = vadd.f32 %v1169, %v1185
        %1194 = vset.pattern.permute.xlu0 44
        %1195 = vperm.xlu0 %1194, %v483
        %v1196 = vpop.permute.xlu0 %1195
        %1198 = vset.pattern.permute.xlu0 44
        %1199 = vperm.xlu0 %1198, %v484
        %v1200 = vpop.permute.xlu0 %1199
        %v1202 = vmul.f32 %v1036, %v1196
        %v1203 = vmul.f32 %v1034, %v1196
        %v1204 = vmul.f32 %v1032, %v1196
        %v1205 = vmul.f32 %v1030, %v1196
        %v1206 = vmul.f32 %v1037, %v1200
        %v1207 = vmul.f32 %v1035, %v1200
        %v1208 = vmul.f32 %v1033, %v1200
        %v1209 = vmul.f32 %v1031, %v1200
        %v1210 = vadd.f32 %v1186, %v1202
        %v1211 = vadd.f32 %v1187, %v1203
        %v1212 = vadd.f32 %v1188, %v1204
        %v1213 = vadd.f32 %v1189, %v1205
        %v1214 = vadd.f32 %v1190, %v1206
        %v1215 = vadd.f32 %v1191, %v1207
        %v1216 = vadd.f32 %v1192, %v1208
        %v1217 = vadd.f32 %v1193, %v1209
        %1218 = vset.pattern.permute.xlu0 3
        %1219 = vperm.xlu0 %1218, %v483
        %v1220 = vpop.permute.xlu0 %1219
        %1222 = vset.pattern.permute.xlu0 3
        %1223 = vperm.xlu0 %1222, %v484
        %v1224 = vpop.permute.xlu0 %1223
        %v1226 = vmul.f32 %v507, %v1220
        %v1227 = vmul.f32 %v508, %v1220
        %v1228 = vmul.f32 %v509, %v1220
        %v1229 = vmul.f32 %v510, %v1220
        %v1230 = vmul.f32 %v517, %v1224
        %v1231 = vmul.f32 %v518, %v1224
        %v1232 = vmul.f32 %v519, %v1224
        %v1233 = vmul.f32 %v520, %v1224
        %v1234 = vadd.f32 %v1210, %v1226
        %v1235 = vadd.f32 %v1211, %v1227
        %v1236 = vadd.f32 %v1212, %v1228
        %v1237 = vadd.f32 %v1213, %v1229
        %v1238 = vadd.f32 %v1214, %v1230
        %v1239 = vadd.f32 %v1215, %v1231
        %v1240 = vadd.f32 %v1216, %v1232
        %v1241 = vadd.f32 %v1217, %v1233
        %1242 = vset.pattern.permute.xlu0 10
        %1243 = vperm.xlu0 %1242, %v483
        %v1244 = vpop.permute.xlu0 %1243
        %1246 = vset.pattern.permute.xlu0 10
        %1247 = vperm.xlu0 %1246, %v484
        %v1248 = vpop.permute.xlu0 %1247
        %v1250 = vmul.f32 %v508, %v1244
        %v1251 = vmul.f32 %v509, %v1244
        %v1252 = vmul.f32 %v510, %v1244
        %v1253 = vmul.f32 %v511, %v1244
        %v1254 = vmul.f32 %v518, %v1248
        %v1255 = vmul.f32 %v519, %v1248
        %v1256 = vmul.f32 %v520, %v1248
        %v1257 = vmul.f32 %v521, %v1248
        %v1258 = vadd.f32 %v1234, %v1250
        %v1259 = vadd.f32 %v1235, %v1251
        %v1260 = vadd.f32 %v1236, %v1252
        %v1261 = vadd.f32 %v1237, %v1253
        %v1262 = vadd.f32 %v1238, %v1254
        %v1263 = vadd.f32 %v1239, %v1255
        %v1264 = vadd.f32 %v1240, %v1256
        %v1265 = vadd.f32 %v1241, %v1257
        %1266 = vset.pattern.permute.xlu0 17
        %1267 = vperm.xlu0 %1266, %v483
        %v1268 = vpop.permute.xlu0 %1267
        %1270 = vset.pattern.permute.xlu0 17
        %1271 = vperm.xlu0 %1270, %v484
        %v1272 = vpop.permute.xlu0 %1271
        %v1274 = vmul.f32 %v509, %v1268
        %v1275 = vmul.f32 %v510, %v1268
        %v1276 = vmul.f32 %v511, %v1268
        %v1277 = vmul.f32 %v512, %v1268
        %v1278 = vmul.f32 %v519, %v1272
        %v1279 = vmul.f32 %v520, %v1272
        %v1280 = vmul.f32 %v521, %v1272
        %v1281 = vmul.f32 %v522, %v1272
        %v1282 = vadd.f32 %v1258, %v1274
        %v1283 = vadd.f32 %v1259, %v1275
        %v1284 = vadd.f32 %v1260, %v1276
        %v1285 = vadd.f32 %v1261, %v1277
        %v1286 = vadd.f32 %v1262, %v1278
        %v1287 = vadd.f32 %v1263, %v1279
        %v1288 = vadd.f32 %v1264, %v1280
        %v1289 = vadd.f32 %v1265, %v1281
        %1290 = vset.pattern.permute.xlu0 24
        %1291 = vperm.xlu0 %1290, %v483
        %v1292 = vpop.permute.xlu0 %1291
        %1294 = vset.pattern.permute.xlu0 24
        %1295 = vperm.xlu0 %1294, %v484
        %v1296 = vpop.permute.xlu0 %1295
        %v1298 = vmul.f32 %v510, %v1292
        %v1299 = vmul.f32 %v511, %v1292
        %v1300 = vmul.f32 %v512, %v1292
        %v1301 = vmul.f32 %v513, %v1292
        %v1302 = vmul.f32 %v520, %v1296
        %v1303 = vmul.f32 %v521, %v1296
        %v1304 = vmul.f32 %v522, %v1296
        %v1305 = vmul.f32 %v523, %v1296
        %v1306 = vadd.f32 %v1282, %v1298
        %v1307 = vadd.f32 %v1283, %v1299
        %v1308 = vadd.f32 %v1284, %v1300
        %v1309 = vadd.f32 %v1285, %v1301
        %v1310 = vadd.f32 %v1286, %v1302
        %v1311 = vadd.f32 %v1287, %v1303
        %v1312 = vadd.f32 %v1288, %v1304
        %v1313 = vadd.f32 %v1289, %v1305
        %1314 = vset.pattern.permute.xlu0 31
        %1315 = vperm.xlu0 %1314, %v483
        %v1316 = vpop.permute.xlu0 %1315
        %1318 = vset.pattern.permute.xlu0 31
        %1319 = vperm.xlu0 %1318, %v484
        %v1320 = vpop.permute.xlu0 %1319
        %v1322 = vmul.f32 %v511, %v1316
        %v1323 = vmul.f32 %v512, %v1316
        %v1324 = vmul.f32 %v513, %v1316
        %v1325 = vmul.f32 %v514, %v1316
        %v1326 = vmul.f32 %v521, %v1320
        %v1327 = vmul.f32 %v522, %v1320
        %v1328 = vmul.f32 %v523, %v1320
        %v1329 = vmul.f32 %v524, %v1320
        %v1330 = vadd.f32 %v1306, %v1322
        %v1331 = vadd.f32 %v1307, %v1323
        %v1332 = vadd.f32 %v1308, %v1324
        %v1333 = vadd.f32 %v1309, %v1325
        %v1334 = vadd.f32 %v1310, %v1326
        %v1335 = vadd.f32 %v1311, %v1327
        %v1336 = vadd.f32 %v1312, %v1328
        %v1337 = vadd.f32 %v1313, %v1329
        %1338 = vset.pattern.permute.xlu0 38
        %1339 = vperm.xlu0 %1338, %v483
        %v1340 = vpop.permute.xlu0 %1339
        %1342 = vset.pattern.permute.xlu0 38
        %1343 = vperm.xlu0 %1342, %v484
        %v1344 = vpop.permute.xlu0 %1343
        %v1346 = vmul.f32 %v512, %v1340
        %v1347 = vmul.f32 %v513, %v1340
        %v1348 = vmul.f32 %v514, %v1340
        %v1349 = vmul.f32 %v515, %v1340
        %v1350 = vmul.f32 %v522, %v1344
        %v1351 = vmul.f32 %v523, %v1344
        %v1352 = vmul.f32 %v524, %v1344
        %v1353 = vmul.f32 %v525, %v1344
        %v1354 = vadd.f32 %v1330, %v1346
        %v1355 = vadd.f32 %v1331, %v1347
        %v1356 = vadd.f32 %v1332, %v1348
        %v1357 = vadd.f32 %v1333, %v1349
        %v1358 = vadd.f32 %v1334, %v1350
        %v1359 = vadd.f32 %v1335, %v1351
        %v1360 = vadd.f32 %v1336, %v1352
        %v1361 = vadd.f32 %v1337, %v1353
        %1362 = vset.pattern.permute.xlu0 45
        %1363 = vperm.xlu0 %1362, %v483
        %v1364 = vpop.permute.xlu0 %1363
        %1366 = vset.pattern.permute.xlu0 45
        %1367 = vperm.xlu0 %1366, %v484
        %v1368 = vpop.permute.xlu0 %1367
        %v1370 = vmul.f32 %v513, %v1364
        %v1371 = vmul.f32 %v514, %v1364
        %v1372 = vmul.f32 %v515, %v1364
        %v1373 = vmul.f32 %v516, %v1364
        %v1374 = vmul.f32 %v523, %v1368
        %v1375 = vmul.f32 %v524, %v1368
        %v1376 = vmul.f32 %v525, %v1368
        %v1377 = vmul.f32 %v526, %v1368
        %v1378 = vadd.f32 %v1354, %v1370
        %v1379 = vadd.f32 %v1355, %v1371
        %v1380 = vadd.f32 %v1356, %v1372
        %v1381 = vadd.f32 %v1357, %v1373
        %v1382 = vadd.f32 %v1358, %v1374
        %v1383 = vadd.f32 %v1359, %v1375
        %v1384 = vadd.f32 %v1360, %v1376
        %v1385 = vadd.f32 %v1361, %v1377
        %1386 = vrot.lane.b32.xlu0 %v507, 127
        %v1387 = vpop.permute.xlu0 %1386
        %1388 = vrot.lane.b32.xlu0 %v517, 127
        %v1389 = vpop.permute.xlu0 %1388
        %1390 = vrot.lane.b32.xlu0 %v508, 127
        %v1391 = vpop.permute.xlu0 %1390
        %1392 = vrot.lane.b32.xlu0 %v518, 127
        %v1393 = vpop.permute.xlu0 %1392
        %1394 = vrot.lane.b32.xlu0 %v509, 127
        %v1395 = vpop.permute.xlu0 %1394
        %1396 = vrot.lane.b32.xlu0 %v519, 127
        %v1397 = vpop.permute.xlu0 %1396
        %1398 = vrot.lane.b32.xlu0 %v510, 127
        %v1399 = vpop.permute.xlu0 %1398
        %1400 = vrot.lane.b32.xlu0 %v520, 127
        %v1401 = vpop.permute.xlu0 %1400
        %1402 = vrot.lane.b32.xlu0 %v511, 127
        %v1403 = vpop.permute.xlu0 %1402
        %1404 = vrot.lane.b32.xlu0 %v521, 127
        %v1405 = vpop.permute.xlu0 %1404
        %1406 = vrot.lane.b32.xlu0 %v512, 127
        %v1407 = vpop.permute.xlu0 %1406
        %1408 = vrot.lane.b32.xlu0 %v522, 127
        %v1409 = vpop.permute.xlu0 %1408
        %1410 = vrot.lane.b32.xlu0 %v513, 127
        %v1411 = vpop.permute.xlu0 %1410
        %1412 = vrot.lane.b32.xlu0 %v523, 127
        %v1413 = vpop.permute.xlu0 %1412
        %1414 = vrot.lane.b32.xlu0 %v514, 127
        %v1415 = vpop.permute.xlu0 %1414
        %1416 = vrot.lane.b32.xlu0 %v524, 127
        %v1417 = vpop.permute.xlu0 %1416
        %1418 = vrot.lane.b32.xlu0 %v515, 127
        %v1419 = vpop.permute.xlu0 %1418
        %1420 = vrot.lane.b32.xlu0 %v525, 127
        %v1421 = vpop.permute.xlu0 %1420
        %1422 = vrot.lane.b32.xlu0 %v516, 127
        %v1423 = vpop.permute.xlu0 %1422
        %1424 = vrot.lane.b32.xlu0 %v526, 127
        %v1425 = vpop.permute.xlu0 %1424
        %vm1426 = vcmp.lt.s32.totalorder %v568, 127
        %v1427 = vsel %vm1426, %v1419, %v1423
        %v1428 = vsel %vm1426, %v1421, %v1425
        %v1429 = vsel %vm1426, %v1415, %v1419
        %v1430 = vsel %vm1426, %v1417, %v1421
        %v1431 = vsel %vm1426, %v1411, %v1415
        %v1432 = vsel %vm1426, %v1413, %v1417
        %v1433 = vsel %vm1426, %v1407, %v1411
        %v1434 = vsel %vm1426, %v1409, %v1413
        %v1435 = vsel %vm1426, %v1403, %v1407
        %v1436 = vsel %vm1426, %v1405, %v1409
        %v1437 = vsel %vm1426, %v1399, %v1403
        %v1438 = vsel %vm1426, %v1401, %v1405
        %v1439 = vsel %vm1426, %v1395, %v1399
        %v1440 = vsel %vm1426, %v1397, %v1401
        %v1441 = vsel %vm1426, %v1391, %v1395
        %v1442 = vsel %vm1426, %v1393, %v1397
        %v1443 = vsel %vm1426, %v1387, %v1391
        %v1444 = vsel %vm1426, %v1389, %v1393
        %v1445 = vsel %vm1426, %v1423, %v1387
        %v1446 = vsel %vm1426, %v1425, %v1389
        %1447 = vset.pattern.permute.xlu0 4
        %1448 = vperm.xlu0 %1447, %v483
        %v1449 = vpop.permute.xlu0 %1448
        %1451 = vset.pattern.permute.xlu0 4
        %1452 = vperm.xlu0 %1451, %v484
        %v1453 = vpop.permute.xlu0 %1452
        %v1455 = vmul.f32 %v1443, %v1449
        %v1456 = vmul.f32 %v1441, %v1449
        %v1457 = vmul.f32 %v1439, %v1449
        %v1458 = vmul.f32 %v1437, %v1449
        %v1459 = vmul.f32 %v1444, %v1453
        %v1460 = vmul.f32 %v1442, %v1453
        %v1461 = vmul.f32 %v1440, %v1453
        %v1462 = vmul.f32 %v1438, %v1453
        %v1463 = vadd.f32 %v1378, %v1455
        %v1464 = vadd.f32 %v1379, %v1456
        %v1465 = vadd.f32 %v1380, %v1457
        %v1466 = vadd.f32 %v1381, %v1458
        %v1467 = vadd.f32 %v1382, %v1459
        %v1468 = vadd.f32 %v1383, %v1460
        %v1469 = vadd.f32 %v1384, %v1461
        %v1470 = vadd.f32 %v1385, %v1462
        %1471 = vset.pattern.permute.xlu0 11
        %1472 = vperm.xlu0 %1471, %v483
        %v1473 = vpop.permute.xlu0 %1472
        %1475 = vset.pattern.permute.xlu0 11
        %1476 = vperm.xlu0 %1475, %v484
        %v1477 = vpop.permute.xlu0 %1476
        %v1479 = vmul.f32 %v1441, %v1473
        %v1480 = vmul.f32 %v1439, %v1473
        %v1481 = vmul.f32 %v1437, %v1473
        %v1482 = vmul.f32 %v1435, %v1473
        %v1483 = vmul.f32 %v1442, %v1477
        %v1484 = vmul.f32 %v1440, %v1477
        %v1485 = vmul.f32 %v1438, %v1477
        %v1486 = vmul.f32 %v1436, %v1477
        %v1487 = vadd.f32 %v1463, %v1479
        %v1488 = vadd.f32 %v1464, %v1480
        %v1489 = vadd.f32 %v1465, %v1481
        %v1490 = vadd.f32 %v1466, %v1482
        %v1491 = vadd.f32 %v1467, %v1483
        %v1492 = vadd.f32 %v1468, %v1484
        %v1493 = vadd.f32 %v1469, %v1485
        %v1494 = vadd.f32 %v1470, %v1486
        %1495 = vset.pattern.permute.xlu0 18
        %1496 = vperm.xlu0 %1495, %v483
        %v1497 = vpop.permute.xlu0 %1496
        %1499 = vset.pattern.permute.xlu0 18
        %1500 = vperm.xlu0 %1499, %v484
        %v1501 = vpop.permute.xlu0 %1500
        %v1503 = vmul.f32 %v1439, %v1497
        %v1504 = vmul.f32 %v1437, %v1497
        %v1505 = vmul.f32 %v1435, %v1497
        %v1506 = vmul.f32 %v1433, %v1497
        %v1507 = vmul.f32 %v1440, %v1501
        %v1508 = vmul.f32 %v1438, %v1501
        %v1509 = vmul.f32 %v1436, %v1501
        %v1510 = vmul.f32 %v1434, %v1501
        %v1511 = vadd.f32 %v1487, %v1503
        %v1512 = vadd.f32 %v1488, %v1504
        %v1513 = vadd.f32 %v1489, %v1505
        %v1514 = vadd.f32 %v1490, %v1506
        %v1515 = vadd.f32 %v1491, %v1507
        %v1516 = vadd.f32 %v1492, %v1508
        %v1517 = vadd.f32 %v1493, %v1509
        %v1518 = vadd.f32 %v1494, %v1510
        %1519 = vset.pattern.permute.xlu0 25
        %1520 = vperm.xlu0 %1519, %v483
        %v1521 = vpop.permute.xlu0 %1520
        %1523 = vset.pattern.permute.xlu0 25
        %1524 = vperm.xlu0 %1523, %v484
        %v1525 = vpop.permute.xlu0 %1524
        %v1527 = vmul.f32 %v1437, %v1521
        %v1528 = vmul.f32 %v1435, %v1521
        %v1529 = vmul.f32 %v1433, %v1521
        %v1530 = vmul.f32 %v1431, %v1521
        %v1531 = vmul.f32 %v1438, %v1525
        %v1532 = vmul.f32 %v1436, %v1525
        %v1533 = vmul.f32 %v1434, %v1525
        %v1534 = vmul.f32 %v1432, %v1525
        %v1535 = vadd.f32 %v1511, %v1527
        %v1536 = vadd.f32 %v1512, %v1528
        %v1537 = vadd.f32 %v1513, %v1529
        %v1538 = vadd.f32 %v1514, %v1530
        %v1539 = vadd.f32 %v1515, %v1531
        %v1540 = vadd.f32 %v1516, %v1532
        %v1541 = vadd.f32 %v1517, %v1533
        %v1542 = vadd.f32 %v1518, %v1534
        %1543 = vset.pattern.permute.xlu0 32
        %1544 = vperm.xlu0 %1543, %v483
        %v1545 = vpop.permute.xlu0 %1544
        %1547 = vset.pattern.permute.xlu0 32
        %1548 = vperm.xlu0 %1547, %v484
        %v1549 = vpop.permute.xlu0 %1548
        %v1551 = vmul.f32 %v1435, %v1545
        %v1552 = vmul.f32 %v1433, %v1545
        %v1553 = vmul.f32 %v1431, %v1545
        %v1554 = vmul.f32 %v1429, %v1545
        %v1555 = vmul.f32 %v1436, %v1549
        %v1556 = vmul.f32 %v1434, %v1549
        %v1557 = vmul.f32 %v1432, %v1549
        %v1558 = vmul.f32 %v1430, %v1549
        %v1559 = vadd.f32 %v1535, %v1551
        %v1560 = vadd.f32 %v1536, %v1552
        %v1561 = vadd.f32 %v1537, %v1553
        %v1562 = vadd.f32 %v1538, %v1554
        %v1563 = vadd.f32 %v1539, %v1555
        %v1564 = vadd.f32 %v1540, %v1556
        %v1565 = vadd.f32 %v1541, %v1557
        %v1566 = vadd.f32 %v1542, %v1558
        %1567 = vset.pattern.permute.xlu0 39
        %1568 = vperm.xlu0 %1567, %v483
        %v1569 = vpop.permute.xlu0 %1568
        %1571 = vset.pattern.permute.xlu0 39
        %1572 = vperm.xlu0 %1571, %v484
        %v1573 = vpop.permute.xlu0 %1572
        %v1575 = vmul.f32 %v1433, %v1569
        %v1576 = vmul.f32 %v1431, %v1569
        %v1577 = vmul.f32 %v1429, %v1569
        %v1578 = vmul.f32 %v1427, %v1569
        %v1579 = vmul.f32 %v1434, %v1573
        %v1580 = vmul.f32 %v1432, %v1573
        %v1581 = vmul.f32 %v1430, %v1573
        %v1582 = vmul.f32 %v1428, %v1573
        %v1583 = vadd.f32 %v1559, %v1575
        %v1584 = vadd.f32 %v1560, %v1576
        %v1585 = vadd.f32 %v1561, %v1577
        %v1586 = vadd.f32 %v1562, %v1578
        %v1587 = vadd.f32 %v1563, %v1579
        %v1588 = vadd.f32 %v1564, %v1580
        %v1589 = vadd.f32 %v1565, %v1581
        %v1590 = vadd.f32 %v1566, %v1582
        %1591 = vset.pattern.permute.xlu0 46
        %1592 = vperm.xlu0 %1591, %v483
        %v1593 = vpop.permute.xlu0 %1592
        %1595 = vset.pattern.permute.xlu0 46
        %1596 = vperm.xlu0 %1595, %v484
        %v1597 = vpop.permute.xlu0 %1596
        %v1599 = vmul.f32 %v1431, %v1593
        %v1600 = vmul.f32 %v1429, %v1593
        %v1601 = vmul.f32 %v1427, %v1593
        %v1602 = vmul.f32 %v1445, %v1593
        %v1603 = vmul.f32 %v1432, %v1597
        %v1604 = vmul.f32 %v1430, %v1597
        %v1605 = vmul.f32 %v1428, %v1597
        %v1606 = vmul.f32 %v1446, %v1597
        %v1607 = vadd.f32 %v1583, %v1599
        %v1608 = vadd.f32 %v1584, %v1600
        %v1609 = vadd.f32 %v1585, %v1601
        %v1610 = vadd.f32 %v1586, %v1602
        %v1611 = vadd.f32 %v1587, %v1603
        %v1612 = vadd.f32 %v1588, %v1604
        %v1613 = vadd.f32 %v1589, %v1605
        %v1614 = vadd.f32 %v1590, %v1606
        %1615 = vrot.lane.b32.xlu0 %v507, 126
        %v1616 = vpop.permute.xlu0 %1615
        %1617 = vrot.lane.b32.xlu0 %v517, 126
        %v1618 = vpop.permute.xlu0 %1617
        %1619 = vrot.lane.b32.xlu0 %v508, 126
        %v1620 = vpop.permute.xlu0 %1619
        %1621 = vrot.lane.b32.xlu0 %v518, 126
        %v1622 = vpop.permute.xlu0 %1621
        %1623 = vrot.lane.b32.xlu0 %v509, 126
        %v1624 = vpop.permute.xlu0 %1623
        %1625 = vrot.lane.b32.xlu0 %v519, 126
        %v1626 = vpop.permute.xlu0 %1625
        %1627 = vrot.lane.b32.xlu0 %v510, 126
        %v1628 = vpop.permute.xlu0 %1627
        %1629 = vrot.lane.b32.xlu0 %v520, 126
        %v1630 = vpop.permute.xlu0 %1629
        %1631 = vrot.lane.b32.xlu0 %v511, 126
        %v1632 = vpop.permute.xlu0 %1631
        %1633 = vrot.lane.b32.xlu0 %v521, 126
        %v1634 = vpop.permute.xlu0 %1633
        %1635 = vrot.lane.b32.xlu0 %v512, 126
        %v1636 = vpop.permute.xlu0 %1635
        %1637 = vrot.lane.b32.xlu0 %v522, 126
        %v1638 = vpop.permute.xlu0 %1637
        %1639 = vrot.lane.b32.xlu0 %v513, 126
        %v1640 = vpop.permute.xlu0 %1639
        %1641 = vrot.lane.b32.xlu0 %v523, 126
        %v1642 = vpop.permute.xlu0 %1641
        %1643 = vrot.lane.b32.xlu0 %v514, 126
        %v1644 = vpop.permute.xlu0 %1643
        %1645 = vrot.lane.b32.xlu0 %v524, 126
        %v1646 = vpop.permute.xlu0 %1645
        %1647 = vrot.lane.b32.xlu0 %v515, 126
        %v1648 = vpop.permute.xlu0 %1647
        %1649 = vrot.lane.b32.xlu0 %v525, 126
        %v1650 = vpop.permute.xlu0 %1649
        %1651 = vrot.lane.b32.xlu0 %v516, 126
        %v1652 = vpop.permute.xlu0 %1651
        %1653 = vrot.lane.b32.xlu0 %v526, 126
        %v1654 = vpop.permute.xlu0 %1653
        %vm1655 = vcmp.lt.s32.totalorder %v568, 126
        %v1656 = vsel %vm1655, %v1648, %v1652
        %v1657 = vsel %vm1655, %v1650, %v1654
        %v1658 = vsel %vm1655, %v1644, %v1648
        %v1659 = vsel %vm1655, %v1646, %v1650
        %v1660 = vsel %vm1655, %v1640, %v1644
        %v1661 = vsel %vm1655, %v1642, %v1646
        %v1662 = vsel %vm1655, %v1636, %v1640
        %v1663 = vsel %vm1655, %v1638, %v1642
        %v1664 = vsel %vm1655, %v1632, %v1636
        %v1665 = vsel %vm1655, %v1634, %v1638
        %v1666 = vsel %vm1655, %v1628, %v1632
        %v1667 = vsel %vm1655, %v1630, %v1634
        %v1668 = vsel %vm1655, %v1624, %v1628
        %v1669 = vsel %vm1655, %v1626, %v1630
        %v1670 = vsel %vm1655, %v1620, %v1624
        %v1671 = vsel %vm1655, %v1622, %v1626
        %v1672 = vsel %vm1655, %v1616, %v1620
        %v1673 = vsel %vm1655, %v1618, %v1622
        %v1674 = vsel %vm1655, %v1652, %v1616
        %v1675 = vsel %vm1655, %v1654, %v1618
        %1676 = vset.pattern.permute.xlu0 5
        %1677 = vperm.xlu0 %1676, %v483
        %v1678 = vpop.permute.xlu0 %1677
        %1680 = vset.pattern.permute.xlu0 5
        %1681 = vperm.xlu0 %1680, %v484
        %v1682 = vpop.permute.xlu0 %1681
        %v1684 = vmul.f32 %v1672, %v1678
        %v1685 = vmul.f32 %v1670, %v1678
        %v1686 = vmul.f32 %v1668, %v1678
        %v1687 = vmul.f32 %v1666, %v1678
        %v1688 = vmul.f32 %v1673, %v1682
        %v1689 = vmul.f32 %v1671, %v1682
        %v1690 = vmul.f32 %v1669, %v1682
        %v1691 = vmul.f32 %v1667, %v1682
        %v1692 = vadd.f32 %v1607, %v1684
        %v1693 = vadd.f32 %v1608, %v1685
        %v1694 = vadd.f32 %v1609, %v1686
        %v1695 = vadd.f32 %v1610, %v1687
        %v1696 = vadd.f32 %v1611, %v1688
        %v1697 = vadd.f32 %v1612, %v1689
        %v1698 = vadd.f32 %v1613, %v1690
        %v1699 = vadd.f32 %v1614, %v1691
        %1700 = vset.pattern.permute.xlu0 12
        %1701 = vperm.xlu0 %1700, %v483
        %v1702 = vpop.permute.xlu0 %1701
        %1704 = vset.pattern.permute.xlu0 12
        %1705 = vperm.xlu0 %1704, %v484
        %v1706 = vpop.permute.xlu0 %1705
        %v1708 = vmul.f32 %v1670, %v1702
        %v1709 = vmul.f32 %v1668, %v1702
        %v1710 = vmul.f32 %v1666, %v1702
        %v1711 = vmul.f32 %v1664, %v1702
        %v1712 = vmul.f32 %v1671, %v1706
        %v1713 = vmul.f32 %v1669, %v1706
        %v1714 = vmul.f32 %v1667, %v1706
        %v1715 = vmul.f32 %v1665, %v1706
        %v1716 = vadd.f32 %v1692, %v1708
        %v1717 = vadd.f32 %v1693, %v1709
        %v1718 = vadd.f32 %v1694, %v1710
        %v1719 = vadd.f32 %v1695, %v1711
        %v1720 = vadd.f32 %v1696, %v1712
        %v1721 = vadd.f32 %v1697, %v1713
        %v1722 = vadd.f32 %v1698, %v1714
        %v1723 = vadd.f32 %v1699, %v1715
        %1724 = vset.pattern.permute.xlu0 19
        %1725 = vperm.xlu0 %1724, %v483
        %v1726 = vpop.permute.xlu0 %1725
        %1728 = vset.pattern.permute.xlu0 19
        %1729 = vperm.xlu0 %1728, %v484
        %v1730 = vpop.permute.xlu0 %1729
        %v1732 = vmul.f32 %v1668, %v1726
        %v1733 = vmul.f32 %v1666, %v1726
        %v1734 = vmul.f32 %v1664, %v1726
        %v1735 = vmul.f32 %v1662, %v1726
        %v1736 = vmul.f32 %v1669, %v1730
        %v1737 = vmul.f32 %v1667, %v1730
        %v1738 = vmul.f32 %v1665, %v1730
        %v1739 = vmul.f32 %v1663, %v1730
        %v1740 = vadd.f32 %v1716, %v1732
        %v1741 = vadd.f32 %v1717, %v1733
        %v1742 = vadd.f32 %v1718, %v1734
        %v1743 = vadd.f32 %v1719, %v1735
        %v1744 = vadd.f32 %v1720, %v1736
        %v1745 = vadd.f32 %v1721, %v1737
        %v1746 = vadd.f32 %v1722, %v1738
        %v1747 = vadd.f32 %v1723, %v1739
        %1748 = vset.pattern.permute.xlu0 26
        %1749 = vperm.xlu0 %1748, %v483
        %v1750 = vpop.permute.xlu0 %1749
        %1752 = vset.pattern.permute.xlu0 26
        %1753 = vperm.xlu0 %1752, %v484
        %v1754 = vpop.permute.xlu0 %1753
        %v1756 = vmul.f32 %v1666, %v1750
        %v1757 = vmul.f32 %v1664, %v1750
        %v1758 = vmul.f32 %v1662, %v1750
        %v1759 = vmul.f32 %v1660, %v1750
        %v1760 = vmul.f32 %v1667, %v1754
        %v1761 = vmul.f32 %v1665, %v1754
        %v1762 = vmul.f32 %v1663, %v1754
        %v1763 = vmul.f32 %v1661, %v1754
        %v1764 = vadd.f32 %v1740, %v1756
        %v1765 = vadd.f32 %v1741, %v1757
        %v1766 = vadd.f32 %v1742, %v1758
        %v1767 = vadd.f32 %v1743, %v1759
        %v1768 = vadd.f32 %v1744, %v1760
        %v1769 = vadd.f32 %v1745, %v1761
        %v1770 = vadd.f32 %v1746, %v1762
        %v1771 = vadd.f32 %v1747, %v1763
        %1772 = vset.pattern.permute.xlu0 33
        %1773 = vperm.xlu0 %1772, %v483
        %v1774 = vpop.permute.xlu0 %1773
        %1776 = vset.pattern.permute.xlu0 33
        %1777 = vperm.xlu0 %1776, %v484
        %v1778 = vpop.permute.xlu0 %1777
        %v1780 = vmul.f32 %v1664, %v1774
        %v1781 = vmul.f32 %v1662, %v1774
        %v1782 = vmul.f32 %v1660, %v1774
        %v1783 = vmul.f32 %v1658, %v1774
        %v1784 = vmul.f32 %v1665, %v1778
        %v1785 = vmul.f32 %v1663, %v1778
        %v1786 = vmul.f32 %v1661, %v1778
        %v1787 = vmul.f32 %v1659, %v1778
        %v1788 = vadd.f32 %v1764, %v1780
        %v1789 = vadd.f32 %v1765, %v1781
        %v1790 = vadd.f32 %v1766, %v1782
        %v1791 = vadd.f32 %v1767, %v1783
        %v1792 = vadd.f32 %v1768, %v1784
        %v1793 = vadd.f32 %v1769, %v1785
        %v1794 = vadd.f32 %v1770, %v1786
        %v1795 = vadd.f32 %v1771, %v1787
        %1796 = vset.pattern.permute.xlu0 40
        %1797 = vperm.xlu0 %1796, %v483
        %v1798 = vpop.permute.xlu0 %1797
        %1800 = vset.pattern.permute.xlu0 40
        %1801 = vperm.xlu0 %1800, %v484
        %v1802 = vpop.permute.xlu0 %1801
        %v1804 = vmul.f32 %v1662, %v1798
        %v1805 = vmul.f32 %v1660, %v1798
        %v1806 = vmul.f32 %v1658, %v1798
        %v1807 = vmul.f32 %v1656, %v1798
        %v1808 = vmul.f32 %v1663, %v1802
        %v1809 = vmul.f32 %v1661, %v1802
        %v1810 = vmul.f32 %v1659, %v1802
        %v1811 = vmul.f32 %v1657, %v1802
        %v1812 = vadd.f32 %v1788, %v1804
        %v1813 = vadd.f32 %v1789, %v1805
        %v1814 = vadd.f32 %v1790, %v1806
        %v1815 = vadd.f32 %v1791, %v1807
        %v1816 = vadd.f32 %v1792, %v1808
        %v1817 = vadd.f32 %v1793, %v1809
        %v1818 = vadd.f32 %v1794, %v1810
        %v1819 = vadd.f32 %v1795, %v1811
        %1820 = vset.pattern.permute.xlu0 47
        %1821 = vperm.xlu0 %1820, %v483
        %v1822 = vpop.permute.xlu0 %1821
        %1824 = vset.pattern.permute.xlu0 47
        %1825 = vperm.xlu0 %1824, %v484
        %v1826 = vpop.permute.xlu0 %1825
        %v1828 = vmul.f32 %v1660, %v1822
        %v1829 = vmul.f32 %v1658, %v1822
        %v1830 = vmul.f32 %v1656, %v1822
        %v1831 = vmul.f32 %v1674, %v1822
        %v1832 = vmul.f32 %v1661, %v1826
        %v1833 = vmul.f32 %v1659, %v1826
        %v1834 = vmul.f32 %v1657, %v1826
        %v1835 = vmul.f32 %v1675, %v1826
        %v1836 = vadd.f32 %v1812, %v1828
        %v1837 = vadd.f32 %v1813, %v1829
        %v1838 = vadd.f32 %v1814, %v1830
        %v1839 = vadd.f32 %v1815, %v1831
        %v1840 = vadd.f32 %v1816, %v1832
        %v1841 = vadd.f32 %v1817, %v1833
        %v1842 = vadd.f32 %v1818, %v1834
        %v1843 = vadd.f32 %v1819, %v1835
        %1844 = vrot.lane.b32.xlu0 %v507, 125
        %v1845 = vpop.permute.xlu0 %1844
        %1846 = vrot.lane.b32.xlu0 %v517, 125
        %v1847 = vpop.permute.xlu0 %1846
        %1848 = vrot.lane.b32.xlu0 %v508, 125
        %v1849 = vpop.permute.xlu0 %1848
        %1850 = vrot.lane.b32.xlu0 %v518, 125
        %v1851 = vpop.permute.xlu0 %1850
        %1852 = vrot.lane.b32.xlu0 %v509, 125
        %v1853 = vpop.permute.xlu0 %1852
        %1854 = vrot.lane.b32.xlu0 %v519, 125
        %v1855 = vpop.permute.xlu0 %1854
        %1856 = vrot.lane.b32.xlu0 %v510, 125
        %v1857 = vpop.permute.xlu0 %1856
        %1858 = vrot.lane.b32.xlu0 %v520, 125
        %v1859 = vpop.permute.xlu0 %1858
        %1860 = vrot.lane.b32.xlu0 %v511, 125
        %v1861 = vpop.permute.xlu0 %1860
        %1862 = vrot.lane.b32.xlu0 %v521, 125
        %v1863 = vpop.permute.xlu0 %1862
        %1864 = vrot.lane.b32.xlu0 %v512, 125
        %v1865 = vpop.permute.xlu0 %1864
        %1866 = vrot.lane.b32.xlu0 %v522, 125
        %v1867 = vpop.permute.xlu0 %1866
        %1868 = vrot.lane.b32.xlu0 %v513, 125
        %v1869 = vpop.permute.xlu0 %1868
        %1870 = vrot.lane.b32.xlu0 %v523, 125
        %v1871 = vpop.permute.xlu0 %1870
        %1872 = vrot.lane.b32.xlu0 %v514, 125
        %v1873 = vpop.permute.xlu0 %1872
        %1874 = vrot.lane.b32.xlu0 %v524, 125
        %v1875 = vpop.permute.xlu0 %1874
        %1876 = vrot.lane.b32.xlu0 %v515, 125
        %v1877 = vpop.permute.xlu0 %1876
        %1878 = vrot.lane.b32.xlu0 %v525, 125
        %v1879 = vpop.permute.xlu0 %1878
        %1880 = vrot.lane.b32.xlu0 %v516, 125
        %v1881 = vpop.permute.xlu0 %1880
        %1882 = vrot.lane.b32.xlu0 %v526, 125
        %v1883 = vpop.permute.xlu0 %1882
        %vm1884 = vcmp.lt.s32.totalorder %v568, 125
        %v1885 = vsel %vm1884, %v1877, %v1881
        %v1886 = vsel %vm1884, %v1879, %v1883
        %v1887 = vsel %vm1884, %v1873, %v1877
        %v1888 = vsel %vm1884, %v1875, %v1879
        %v1889 = vsel %vm1884, %v1869, %v1873
        %v1890 = vsel %vm1884, %v1871, %v1875
        %v1891 = vsel %vm1884, %v1865, %v1869
        %v1892 = vsel %vm1884, %v1867, %v1871
        %v1893 = vsel %vm1884, %v1861, %v1865
        %v1894 = vsel %vm1884, %v1863, %v1867
        %v1895 = vsel %vm1884, %v1857, %v1861
        %v1896 = vsel %vm1884, %v1859, %v1863
        %v1897 = vsel %vm1884, %v1853, %v1857
        %v1898 = vsel %vm1884, %v1855, %v1859
        %v1899 = vsel %vm1884, %v1849, %v1853
        %v1900 = vsel %vm1884, %v1851, %v1855
        %v1901 = vsel %vm1884, %v1845, %v1849
        %v1902 = vsel %vm1884, %v1847, %v1851
        %v1903 = vsel %vm1884, %v1881, %v1845
        %v1904 = vsel %vm1884, %v1883, %v1847
        %1905 = vset.pattern.permute.xlu0 6
        %1906 = vperm.xlu0 %1905, %v483
        %v1907 = vpop.permute.xlu0 %1906
        %1909 = vset.pattern.permute.xlu0 6
        %1910 = vperm.xlu0 %1909, %v484
        %v1911 = vpop.permute.xlu0 %1910
        %v1913 = vmul.f32 %v1901, %v1907
        %v1914 = vmul.f32 %v1899, %v1907
        %v1915 = vmul.f32 %v1897, %v1907
        %v1916 = vmul.f32 %v1895, %v1907
        %v1917 = vmul.f32 %v1902, %v1911
        %v1918 = vmul.f32 %v1900, %v1911
        %v1919 = vmul.f32 %v1898, %v1911
        %v1920 = vmul.f32 %v1896, %v1911
        %v1921 = vadd.f32 %v1836, %v1913
        %v1922 = vadd.f32 %v1837, %v1914
        %v1923 = vadd.f32 %v1838, %v1915
        %v1924 = vadd.f32 %v1839, %v1916
        %v1925 = vadd.f32 %v1840, %v1917
        %v1926 = vadd.f32 %v1841, %v1918
        %v1927 = vadd.f32 %v1842, %v1919
        %v1928 = vadd.f32 %v1843, %v1920
        %1929 = vset.pattern.permute.xlu0 13
        %1930 = vperm.xlu0 %1929, %v483
        %v1931 = vpop.permute.xlu0 %1930
        %1933 = vset.pattern.permute.xlu0 13
        %1934 = vperm.xlu0 %1933, %v484
        %v1935 = vpop.permute.xlu0 %1934
        %v1937 = vmul.f32 %v1899, %v1931
        %v1938 = vmul.f32 %v1897, %v1931
        %v1939 = vmul.f32 %v1895, %v1931
        %v1940 = vmul.f32 %v1893, %v1931
        %v1941 = vmul.f32 %v1900, %v1935
        %v1942 = vmul.f32 %v1898, %v1935
        %v1943 = vmul.f32 %v1896, %v1935
        %v1944 = vmul.f32 %v1894, %v1935
        %v1945 = vadd.f32 %v1921, %v1937
        %v1946 = vadd.f32 %v1922, %v1938
        %v1947 = vadd.f32 %v1923, %v1939
        %v1948 = vadd.f32 %v1924, %v1940
        %v1949 = vadd.f32 %v1925, %v1941
        %v1950 = vadd.f32 %v1926, %v1942
        %v1951 = vadd.f32 %v1927, %v1943
        %v1952 = vadd.f32 %v1928, %v1944
        %1953 = vset.pattern.permute.xlu0 20
        %1954 = vperm.xlu0 %1953, %v483
        %v1955 = vpop.permute.xlu0 %1954
        %1957 = vset.pattern.permute.xlu0 20
        %1958 = vperm.xlu0 %1957, %v484
        %v1959 = vpop.permute.xlu0 %1958
        %v1961 = vmul.f32 %v1897, %v1955
        %v1962 = vmul.f32 %v1895, %v1955
        %v1963 = vmul.f32 %v1893, %v1955
        %v1964 = vmul.f32 %v1891, %v1955
        %v1965 = vmul.f32 %v1898, %v1959
        %v1966 = vmul.f32 %v1896, %v1959
        %v1967 = vmul.f32 %v1894, %v1959
        %v1968 = vmul.f32 %v1892, %v1959
        %v1969 = vadd.f32 %v1945, %v1961
        %v1970 = vadd.f32 %v1946, %v1962
        %v1971 = vadd.f32 %v1947, %v1963
        %v1972 = vadd.f32 %v1948, %v1964
        %v1973 = vadd.f32 %v1949, %v1965
        %v1974 = vadd.f32 %v1950, %v1966
        %v1975 = vadd.f32 %v1951, %v1967
        %v1976 = vadd.f32 %v1952, %v1968
        %1977 = vset.pattern.permute.xlu0 27
        %1978 = vperm.xlu0 %1977, %v483
        %v1979 = vpop.permute.xlu0 %1978
        %1981 = vset.pattern.permute.xlu0 27
        %1982 = vperm.xlu0 %1981, %v484
        %v1983 = vpop.permute.xlu0 %1982
        %v1985 = vmul.f32 %v1895, %v1979
        %v1986 = vmul.f32 %v1893, %v1979
        %v1987 = vmul.f32 %v1891, %v1979
        %v1988 = vmul.f32 %v1889, %v1979
        %v1989 = vmul.f32 %v1896, %v1983
        %v1990 = vmul.f32 %v1894, %v1983
        %v1991 = vmul.f32 %v1892, %v1983
        %v1992 = vmul.f32 %v1890, %v1983
        %v1993 = vadd.f32 %v1969, %v1985
        %v1994 = vadd.f32 %v1970, %v1986
        %v1995 = vadd.f32 %v1971, %v1987
        %v1996 = vadd.f32 %v1972, %v1988
        %v1997 = vadd.f32 %v1973, %v1989
        %v1998 = vadd.f32 %v1974, %v1990
        %v1999 = vadd.f32 %v1975, %v1991
        %v2000 = vadd.f32 %v1976, %v1992
        %2001 = vset.pattern.permute.xlu0 34
        %2002 = vperm.xlu0 %2001, %v483
        %v2003 = vpop.permute.xlu0 %2002
        %2005 = vset.pattern.permute.xlu0 34
        %2006 = vperm.xlu0 %2005, %v484
        %v2007 = vpop.permute.xlu0 %2006
        %v2009 = vmul.f32 %v1893, %v2003
        %v2010 = vmul.f32 %v1891, %v2003
        %v2011 = vmul.f32 %v1889, %v2003
        %v2012 = vmul.f32 %v1887, %v2003
        %v2013 = vmul.f32 %v1894, %v2007
        %v2014 = vmul.f32 %v1892, %v2007
        %v2015 = vmul.f32 %v1890, %v2007
        %v2016 = vmul.f32 %v1888, %v2007
        %v2017 = vadd.f32 %v1993, %v2009
        %v2018 = vadd.f32 %v1994, %v2010
        %v2019 = vadd.f32 %v1995, %v2011
        %v2020 = vadd.f32 %v1996, %v2012
        %v2021 = vadd.f32 %v1997, %v2013
        %v2022 = vadd.f32 %v1998, %v2014
        %v2023 = vadd.f32 %v1999, %v2015
        %v2024 = vadd.f32 %v2000, %v2016
        %2025 = vset.pattern.permute.xlu0 41
        %2026 = vperm.xlu0 %2025, %v483
        %v2027 = vpop.permute.xlu0 %2026
        %2029 = vset.pattern.permute.xlu0 41
        %2030 = vperm.xlu0 %2029, %v484
        %v2031 = vpop.permute.xlu0 %2030
        %v2033 = vmul.f32 %v1891, %v2027
        %v2034 = vmul.f32 %v1889, %v2027
        %v2035 = vmul.f32 %v1887, %v2027
        %v2036 = vmul.f32 %v1885, %v2027
        %v2037 = vmul.f32 %v1892, %v2031
        %v2038 = vmul.f32 %v1890, %v2031
        %v2039 = vmul.f32 %v1888, %v2031
        %v2040 = vmul.f32 %v1886, %v2031
        %v2041 = vadd.f32 %v2017, %v2033
        %v2042 = vadd.f32 %v2018, %v2034
        %v2043 = vadd.f32 %v2019, %v2035
        %v2044 = vadd.f32 %v2020, %v2036
        %v2045 = vadd.f32 %v2021, %v2037
        %v2046 = vadd.f32 %v2022, %v2038
        %v2047 = vadd.f32 %v2023, %v2039
        %v2048 = vadd.f32 %v2024, %v2040
        %2049 = vset.pattern.permute.xlu0 48
        %2050 = vperm.xlu0 %2049, %v483
        %v2051 = vpop.permute.xlu0 %2050
        %2053 = vset.pattern.permute.xlu0 48
        %2054 = vperm.xlu0 %2053, %v484
        %v2055 = vpop.permute.xlu0 %2054
        %v2057 = vmul.f32 %v1889, %v2051
        %v2058 = vmul.f32 %v1887, %v2051
        %v2059 = vmul.f32 %v1885, %v2051
        %v2060 = vmul.f32 %v1903, %v2051
        %v2061 = vmul.f32 %v1890, %v2055
        %v2062 = vmul.f32 %v1888, %v2055
        %v2063 = vmul.f32 %v1886, %v2055
        %v2064 = vmul.f32 %v1904, %v2055
        %v2065 = vadd.f32 %v2041, %v2057
        %v2066 = vadd.f32 %v2042, %v2058
        %v2067 = vadd.f32 %v2043, %v2059
        %v2068 = vadd.f32 %v2044, %v2060
        %v2069 = vadd.f32 %v2045, %v2061
        %v2070 = vadd.f32 %v2046, %v2062
        %v2071 = vadd.f32 %v2047, %v2063
        %v2072 = vadd.f32 %v2048, %v2064
        %2074 = vset.pattern.permute.xlu0 0
        %2075 = vperm.xlu0 %2074, %v485
        %v2076 = vpop.permute.xlu0 %2075
        %2079 = vset.pattern.permute.xlu0 0
        %2080 = vperm.xlu0 %2079, %v486
        %v2081 = vpop.permute.xlu0 %2080
        %v2083 = vadd.f32 %v2065, %v2076
        %v2084 = vadd.f32 %v2066, %v2076
        %v2085 = vadd.f32 %v2067, %v2076
        %v2086 = vadd.f32 %v2068, %v2076
        %v2087 = vadd.f32 %v2069, %v2081
        %v2088 = vadd.f32 %v2070, %v2081
        %v2089 = vadd.f32 %v2071, %v2081
        %v2090 = vadd.f32 %v2072, %v2081
        %vm2091 = vcmp.ge.f32.partialorder %v2083, 0.0
        %vm2092 = vcmp.ge.f32.partialorder %v2084, 0.0
        %vm2093 = vcmp.ge.f32.partialorder %v2085, 0.0
        %vm2094 = vcmp.ge.f32.partialorder %v2086, 0.0
        %vm2095 = vcmp.ge.f32.partialorder %v2087, 0.0
        %vm2096 = vcmp.ge.f32.partialorder %v2088, 0.0
        %vm2097 = vcmp.ge.f32.partialorder %v2089, 0.0
        %vm2098 = vcmp.ge.f32.partialorder %v2090, 0.0
        %v2099 = vmul.f32 %v2083, 0.05
        %v2100 = vmul.f32 %v2084, 0.05
        %v2101 = vmul.f32 %v2085, 0.05
        %v2102 = vmul.f32 %v2086, 0.05
        %v2103 = vmul.f32 %v2087, 0.05
        %v2104 = vmul.f32 %v2088, 0.05
        %v2105 = vmul.f32 %v2089, 0.05
        %v2106 = vmul.f32 %v2090, 0.05
        %v2107 = vsel %vm2091, %v2083, %v2099
        %v2108 = vsel %vm2092, %v2084, %v2100
        %v2109 = vsel %vm2093, %v2085, %v2101
        %v2110 = vsel %vm2094, %v2086, %v2102
        %v2111 = vsel %vm2095, %v2087, %v2103
        %v2112 = vsel %vm2096, %v2088, %v2104
        %v2113 = vsel %vm2097, %v2089, %v2105
        %v2114 = vsel %vm2098, %v2090, %v2106
        %v2115 = vpack.c.bf16 %v2111, %v2107
        %v2116 = vpack.c.bf16 %v2112, %v2108
        %v2117 = vpack.c.bf16 %v2113, %v2109
        %v2118 = vpack.c.bf16 %v2114, %v2110
        %2120 = vset.pattern.permute.xlu0 0
        %2121 = vperm.xlu0 %2120, %v495
        %v2122 = vpop.permute.xlu0 %2121
        %2125 = vset.pattern.permute.xlu0 0
        %2126 = vperm.xlu0 %2125, %v496
        %v2127 = vpop.permute.xlu0 %2126
        %2130 = vset.pattern.permute.xlu0 0
        %2131 = vperm.xlu0 %2130, %v497
        %v2132 = vpop.permute.xlu0 %2131
        %2135 = vset.pattern.permute.xlu0 0
        %2136 = vperm.xlu0 %2135, %v498
        %v2137 = vpop.permute.xlu0 %2136
        %2140 = vset.pattern.permute.xlu0 0
        %2141 = vperm.xlu0 %2140, %v499
        %v2142 = vpop.permute.xlu0 %2141
        %2145 = vset.pattern.permute.xlu0 0
        %2146 = vperm.xlu0 %2145, %v500
        %v2147 = vpop.permute.xlu0 %2146
        %2150 = vset.pattern.permute.xlu0 0
        %2151 = vperm.xlu0 %2150, %v501
        %v2152 = vpop.permute.xlu0 %2151
        %2155 = vset.pattern.permute.xlu0 0
        %2156 = vperm.xlu0 %2155, %v502
        %v2157 = vpop.permute.xlu0 %2156
        %v2167 = vunpack.c.l.b16 %v487
        %v2168 = vunpack.c.l.b16 %v488
        %v2169 = vunpack.c.l.b16 %v489
        %v2170 = vunpack.c.l.b16 %v490
        %v2171 = vunpack.c.l.b16 %v491
        %v2172 = vunpack.c.l.b16 %v492
        %v2173 = vunpack.c.l.b16 %v493
        %v2174 = vunpack.c.l.b16 %v494
        %v2175 = vpack.c.b16 %v2168, %v2167
        %v2176 = vpack.c.b16 %v2170, %v2169
        %v2177 = vpack.c.b16 %v2172, %v2171
        %v2178 = vpack.c.b16 %v2174, %v2173
        %vm2179 = vcmask 130048
        %v2181 = vsel %vm2179, %v2175, 0
        %v2184 = vsel %vm2179, %v2176, 0
        %v2187 = vsel %vm2179, %v2177, 0
        %v2190 = vsel %vm2179, %v2178, 0
        %2192 = vmatprep.subr.bf16.mxu0 %v2116
        %2193 = vmatpush1.bf16.msra.mxu0 %v2115
        %2194 = vmatprep.subr.bf16.mxu0 0
        %2195 = vmatpush1.bf16.msra.mxu0 0
        %2196 = vmatprep.subr.bf16.mxu0 0
        %2197 = vmatpush1.bf16.msra.mxu0 0
        %2198 = vmatprep.subr.bf16.mxu0 0
        %2199 = vmatpush1.bf16.msra.mxu0 0
        %2200 = vmatprep.subr.bf16.mxu0 0
        %2201 = vmatpush1.bf16.msra.mxu0 0
        %2202 = vmatprep.subr.bf16.mxu0 0
        %2203 = vmatpush1.bf16.msra.mxu0 0
        %2204 = vmatprep.subr.bf16.mxu0 0
        %2205 = vmatpush1.bf16.msra.mxu0 0
        %2206 = vmatprep.subr.bf16.mxu0 0
        %2207 = vmatpush1.bf16.msra.mxu0 0
        %2208 = vmatprep.subr.bf16.mxu0 0
        %2209 = vmatpush1.bf16.msra.mxu0 0
        %2210 = vmatprep.subr.bf16.mxu0 0
        %2211 = vmatpush1.bf16.msra.mxu0 0
        %2212 = vmatprep.subr.bf16.mxu0 0
        %2213 = vmatpush1.bf16.msra.mxu0 0
        %2214 = vmatprep.subr.bf16.mxu0 0
        %2215 = vmatpush1.bf16.msra.mxu0 0
        %2216 = vmatprep.subr.bf16.mxu0 0
        %2217 = vmatpush1.bf16.msra.mxu0 0
        %2218 = vmatprep.subr.bf16.mxu0 0
        %2219 = vmatpush1.bf16.msra.mxu0 0
        %2220 = vmatprep.subr.bf16.mxu0 0
        %2221 = vmatpush1.bf16.msra.mxu0 0
        %2222 = vmatprep.subr.bf16.mxu0 0
        %2223 = vmatpush1.bf16.msra.mxu0 0
        %2224 = vmatprep.mubr.bf16.mxu0 0
        %2225 = vmatmul.mubr.bf16.gmra.mrb[0].mxu0 %v2181
        %v2226 = vpop.f32.mrb[0].mxu0
        %v2227 = vadd.f32 %v2122, %v2226
        %v2228 = vpop.f32.mrb[0].mxu0
        %v2229 = vadd.f32 %v2122, %v2228
        %v2230 = vpop.f32.mrb[0].mxu0
        %v2231 = vadd.f32 %v2127, %v2230
        %v2232 = vpop.f32.mrb[0].mxu0
        %v2233 = vadd.f32 %v2127, %v2232
        %2234 = vmatprep.mubr.bf16.mxu0 0
        %2235 = vmatmul.mubr.bf16.gmra.mrb[0].mxu0 %v2184
        %v2236 = vpop.f32.mrb[0].mxu0
        %v2237 = vadd.f32 %v2132, %v2236
        %v2238 = vpop.f32.mrb[0].mxu0
        %v2239 = vadd.f32 %v2132, %v2238
        %v2240 = vpop.f32.mrb[0].mxu0
        %v2241 = vadd.f32 %v2137, %v2240
        %v2242 = vpop.f32.mrb[0].mxu0
        %v2243 = vadd.f32 %v2137, %v2242
        %2244 = vmatprep.mubr.bf16.mxu0 0
        %2245 = vmatmul.mubr.bf16.gmra.mrb[0].mxu0 %v2187
        %v2246 = vpop.f32.mrb[0].mxu0
        %v2247 = vadd.f32 %v2142, %v2246
        %v2248 = vpop.f32.mrb[0].mxu0
        %v2249 = vadd.f32 %v2142, %v2248
        %v2250 = vpop.f32.mrb[0].mxu0
        %v2251 = vadd.f32 %v2147, %v2250
        %v2252 = vpop.f32.mrb[0].mxu0
        %v2253 = vadd.f32 %v2147, %v2252
        %2254 = vmatprep.mubr.bf16.mxu0 0
        %2255 = vmatmul.mubr.bf16.gmra.mrb[0].mxu0 %v2190
        %v2256 = vpop.f32.mrb[0].mxu0
        %v2257 = vadd.f32 %v2152, %v2256
        %v2258 = vpop.f32.mrb[0].mxu0
        %v2259 = vadd.f32 %v2152, %v2258
        %v2260 = vpop.f32.mrb[0].mxu0
        %v2261 = vadd.f32 %v2157, %v2260
        %v2262 = vpop.f32.mrb[0].mxu0
        %v2263 = vadd.f32 %v2157, %v2262
        %2264 = vdwg.mxu0
        %2265 = vmatprep.subr.bf16.mxu0 %v2118
        %2266 = vmatpush1.bf16.msra.mxu0 %v2117
        %2267 = vmatprep.subr.bf16.mxu0 0
        %2268 = vmatpush1.bf16.msra.mxu0 0
        %2269 = vmatprep.subr.bf16.mxu0 0
        %2270 = vmatpush1.bf16.msra.mxu0 0
        %2271 = vmatprep.subr.bf16.mxu0 0
        %2272 = vmatpush1.bf16.msra.mxu0 0
        %2273 = vmatprep.subr.bf16.mxu0 0
        %2274 = vmatpush1.bf16.msra.mxu0 0
        %2275 = vmatprep.subr.bf16.mxu0 0
        %2276 = vmatpush1.bf16.msra.mxu0 0
        %2277 = vmatprep.subr.bf16.mxu0 0
        %2278 = vmatpush1.bf16.msra.mxu0 0
        %2279 = vmatprep.subr.bf16.mxu0 0
        %2280 = vmatpush1.bf16.msra.mxu0 0
        %2281 = vmatprep.subr.bf16.mxu0 0
        %2282 = vmatpush1.bf16.msra.mxu0 0
        %2283 = vmatprep.subr.bf16.mxu0 0
        %2284 = vmatpush1.bf16.msra.mxu0 0
        %2285 = vmatprep.subr.bf16.mxu0 0
        %2286 = vmatpush1.bf16.msra.mxu0 0
        %2287 = vmatprep.subr.bf16.mxu0 0
        %2288 = vmatpush1.bf16.msra.mxu0 0
        %2289 = vmatprep.subr.bf16.mxu0 0
        %2290 = vmatpush1.bf16.msra.mxu0 0
        %2291 = vmatprep.subr.bf16.mxu0 0
        %2292 = vmatpush1.bf16.msra.mxu0 0
        %2293 = vmatprep.subr.bf16.mxu0 0
        %2294 = vmatpush1.bf16.msra.mxu0 0
        %2295 = vmatprep.subr.bf16.mxu0 0
        %2296 = vmatpush1.bf16.msra.mxu0 0
        %2297 = vmatprep.mubr.bf16.mxu0 0
        %2298 = vmatmul.mubr.bf16.gmra.mrb[0].mxu0 %v2181
        %v2299 = vpop.f32.mrb[0].mxu0
        %v2300 = vadd.f32 %v2122, %v2299
        %v2301 = vpop.f32.mrb[0].mxu0
        %v2302 = vadd.f32 %v2122, %v2301
        %v2303 = vpop.f32.mrb[0].mxu0
        %v2304 = vadd.f32 %v2127, %v2303
        %v2305 = vpop.f32.mrb[0].mxu0
        %v2306 = vadd.f32 %v2127, %v2305
        %2307 = vmatprep.mubr.bf16.mxu0 0
        %2308 = vmatmul.mubr.bf16.gmra.mrb[0].mxu0 %v2184
        %v2309 = vpop.f32.mrb[0].mxu0
        %v2310 = vadd.f32 %v2132, %v2309
        %v2311 = vpop.f32.mrb[0].mxu0
        %v2312 = vadd.f32 %v2132, %v2311
        %v2313 = vpop.f32.mrb[0].mxu0
        %v2314 = vadd.f32 %v2137, %v2313
        %v2315 = vpop.f32.mrb[0].mxu0
        %v2316 = vadd.f32 %v2137, %v2315
        %2317 = vmatprep.mubr.bf16.mxu0 0
        %2318 = vmatmul.mubr.bf16.gmra.mrb[0].mxu0 %v2187
        %v2319 = vpop.f32.mrb[0].mxu0
        %v2320 = vadd.f32 %v2142, %v2319
        %v2321 = vpop.f32.mrb[0].mxu0
        %v2322 = vadd.f32 %v2142, %v2321
        %v2323 = vpop.f32.mrb[0].mxu0
        %v2324 = vadd.f32 %v2147, %v2323
        %v2325 = vpop.f32.mrb[0].mxu0
        %v2326 = vadd.f32 %v2147, %v2325
        %2327 = vmatprep.mubr.bf16.mxu0 0
        %2328 = vmatmul.mubr.bf16.gmra.mrb[0].mxu0 %v2190
        %v2329 = vpop.f32.mrb[0].mxu0
        %v2330 = vadd.f32 %v2152, %v2329
        %v2331 = vpop.f32.mrb[0].mxu0
        %v2332 = vadd.f32 %v2152, %v2331
        %v2333 = vpop.f32.mrb[0].mxu0
        %v2334 = vadd.f32 %v2157, %v2333
        %v2335 = vpop.f32.mrb[0].mxu0
        %v2336 = vadd.f32 %v2157, %v2335
        %2337 = vdwg.mxu0
        %vm2338 = vcmp.ge.f32.partialorder %v2227, 0.0
        %vm2339 = vcmp.ge.f32.partialorder %v2229, 0.0
        %vm2340 = vcmp.ge.f32.partialorder %v2300, 0.0
        %vm2341 = vcmp.ge.f32.partialorder %v2302, 0.0
        %vm2342 = vcmp.ge.f32.partialorder %v2231, 0.0
        %vm2343 = vcmp.ge.f32.partialorder %v2233, 0.0
        %vm2344 = vcmp.ge.f32.partialorder %v2304, 0.0
        %vm2345 = vcmp.ge.f32.partialorder %v2306, 0.0
        %vm2346 = vcmp.ge.f32.partialorder %v2237, 0.0
        %vm2347 = vcmp.ge.f32.partialorder %v2239, 0.0
        %vm2348 = vcmp.ge.f32.partialorder %v2310, 0.0
        %vm2349 = vcmp.ge.f32.partialorder %v2312, 0.0
        %vm2350 = vcmp.ge.f32.partialorder %v2241, 0.0
        %vm2351 = vcmp.ge.f32.partialorder %v2243, 0.0
        %vm2352 = vcmp.ge.f32.partialorder %v2314, 0.0
        %vm2353 = vcmp.ge.f32.partialorder %v2316, 0.0
        %vm2354 = vcmp.ge.f32.partialorder %v2247, 0.0
        %vm2355 = vcmp.ge.f32.partialorder %v2249, 0.0
        %vm2356 = vcmp.ge.f32.partialorder %v2320, 0.0
        %vm2357 = vcmp.ge.f32.partialorder %v2322, 0.0
        %vm2358 = vcmp.ge.f32.partialorder %v2251, 0.0
        %vm2359 = vcmp.ge.f32.partialorder %v2253, 0.0
        %vm2360 = vcmp.ge.f32.partialorder %v2324, 0.0
        %vm2361 = vcmp.ge.f32.partialorder %v2326, 0.0
        %vm2362 = vcmp.ge.f32.partialorder %v2257, 0.0
        %vm2363 = vcmp.ge.f32.partialorder %v2259, 0.0
        %vm2364 = vcmp.ge.f32.partialorder %v2330, 0.0
        %vm2365 = vcmp.ge.f32.partialorder %v2332, 0.0
        %vm2366 = vcmp.ge.f32.partialorder %v2261, 0.0
        %vm2367 = vcmp.ge.f32.partialorder %v2263, 0.0
        %vm2368 = vcmp.ge.f32.partialorder %v2334, 0.0
        %vm2369 = vcmp.ge.f32.partialorder %v2336, 0.0
        %v2370 = vmul.f32 %v2227, 0.05
        %v2371 = vmul.f32 %v2229, 0.05
        %v2372 = vmul.f32 %v2300, 0.05
        %v2373 = vmul.f32 %v2302, 0.05
        %v2374 = vmul.f32 %v2231, 0.05
        %v2375 = vmul.f32 %v2233, 0.05
        %v2376 = vmul.f32 %v2304, 0.05
        %v2377 = vmul.f32 %v2306, 0.05
        %v2378 = vmul.f32 %v2237, 0.05
        %v2379 = vmul.f32 %v2239, 0.05
        %v2380 = vmul.f32 %v2310, 0.05
        %v2381 = vmul.f32 %v2312, 0.05
        %v2382 = vmul.f32 %v2241, 0.05
        %v2383 = vmul.f32 %v2243, 0.05
        %v2384 = vmul.f32 %v2314, 0.05
        %v2385 = vmul.f32 %v2316, 0.05
        %v2386 = vmul.f32 %v2247, 0.05
        %v2387 = vmul.f32 %v2249, 0.05
        %v2388 = vmul.f32 %v2320, 0.05
        %v2389 = vmul.f32 %v2322, 0.05
        %v2390 = vmul.f32 %v2251, 0.05
        %v2391 = vmul.f32 %v2253, 0.05
        %v2392 = vmul.f32 %v2324, 0.05
        %v2393 = vmul.f32 %v2326, 0.05
        %v2394 = vmul.f32 %v2257, 0.05
        %v2395 = vmul.f32 %v2259, 0.05
        %v2396 = vmul.f32 %v2330, 0.05
        %v2397 = vmul.f32 %v2332, 0.05
        %v2398 = vmul.f32 %v2261, 0.05
        %v2399 = vmul.f32 %v2263, 0.05
        %v2400 = vmul.f32 %v2334, 0.05
        %v2401 = vmul.f32 %v2336, 0.05
        %v2402 = vsel %vm2338, %v2227, %v2370
        %v2403 = vsel %vm2339, %v2229, %v2371
        %v2404 = vsel %vm2340, %v2300, %v2372
        %v2405 = vsel %vm2341, %v2302, %v2373
        %v2406 = vsel %vm2342, %v2231, %v2374
        %v2407 = vsel %vm2343, %v2233, %v2375
        %v2408 = vsel %vm2344, %v2304, %v2376
        %v2409 = vsel %vm2345, %v2306, %v2377
        %v2410 = vsel %vm2346, %v2237, %v2378
        %v2411 = vsel %vm2347, %v2239, %v2379
        %v2412 = vsel %vm2348, %v2310, %v2380
        %v2413 = vsel %vm2349, %v2312, %v2381
        %v2414 = vsel %vm2350, %v2241, %v2382
        %v2415 = vsel %vm2351, %v2243, %v2383
        %v2416 = vsel %vm2352, %v2314, %v2384
        %v2417 = vsel %vm2353, %v2316, %v2385
        %v2418 = vsel %vm2354, %v2247, %v2386
        %v2419 = vsel %vm2355, %v2249, %v2387
        %v2420 = vsel %vm2356, %v2320, %v2388
        %v2421 = vsel %vm2357, %v2322, %v2389
        %v2422 = vsel %vm2358, %v2251, %v2390
        %v2423 = vsel %vm2359, %v2253, %v2391
        %v2424 = vsel %vm2360, %v2324, %v2392
        %v2425 = vsel %vm2361, %v2326, %v2393
        %v2426 = vsel %vm2362, %v2257, %v2394
        %v2427 = vsel %vm2363, %v2259, %v2395
        %v2428 = vsel %vm2364, %v2330, %v2396
        %v2429 = vsel %vm2365, %v2332, %v2397
        %v2430 = vsel %vm2366, %v2261, %v2398
        %v2431 = vsel %vm2367, %v2263, %v2399
        %v2432 = vsel %vm2368, %v2334, %v2400
        %v2433 = vsel %vm2369, %v2336, %v2401
        %v2434 = vpack.c.bf16 %v2406, %v2402
        %v2435 = vpack.c.bf16 %v2407, %v2403
        %v2436 = vpack.c.bf16 %v2408, %v2404
        %v2437 = vpack.c.bf16 %v2409, %v2405
        %v2438 = vpack.c.bf16 %v2414, %v2410
        %v2439 = vpack.c.bf16 %v2415, %v2411
        %v2440 = vpack.c.bf16 %v2416, %v2412
        %v2441 = vpack.c.bf16 %v2417, %v2413
        %v2442 = vpack.c.bf16 %v2422, %v2418
        %v2443 = vpack.c.bf16 %v2423, %v2419
        %v2444 = vpack.c.bf16 %v2424, %v2420
        %v2445 = vpack.c.bf16 %v2425, %v2421
        %v2446 = vpack.c.bf16 %v2430, %v2426
        %v2447 = vpack.c.bf16 %v2431, %v2427
        %v2448 = vpack.c.bf16 %v2432, %v2428
        %v2449 = vpack.c.bf16 %v2433, %v2429
        %v2452 = vunpack.c.l.b16 %v503
        %v2453 = vunpack.c.l.b16 %v504
        %v2454 = vpack.c.b16 %v2453, %v2452
        %vm2455 = vcmask 523264
        %v2457 = vsel %vm2455, %v2454, 0
        %2459 = vmatprep.subr.bf16.mxu0 %v2435
        %2460 = vmatpush1.bf16.msra.mxu0 %v2434
        %2461 = vmatprep.subr.bf16.mxu0 %v2439
        %2462 = vmatpush1.bf16.msra.mxu0 %v2438
        %2463 = vmatprep.subr.bf16.mxu0 %v2443
        %2464 = vmatpush1.bf16.msra.mxu0 %v2442
        %2465 = vmatprep.subr.bf16.mxu0 %v2447
        %2466 = vmatpush1.bf16.msra.mxu0 %v2446
        %2467 = vmatprep.subr.bf16.mxu0 0
        %2468 = vmatpush1.bf16.msra.mxu0 0
        %2469 = vmatprep.subr.bf16.mxu0 0
        %2470 = vmatpush1.bf16.msra.mxu0 0
        %2471 = vmatprep.subr.bf16.mxu0 0
        %2472 = vmatpush1.bf16.msra.mxu0 0
        %2473 = vmatprep.subr.bf16.mxu0 0
        %2474 = vmatpush1.bf16.msra.mxu0 0
        %2475 = vmatprep.subr.bf16.mxu0 0
        %2476 = vmatpush1.bf16.msra.mxu0 0
        %2477 = vmatprep.subr.bf16.mxu0 0
        %2478 = vmatpush1.bf16.msra.mxu0 0
        %2479 = vmatprep.subr.bf16.mxu0 0
        %2480 = vmatpush1.bf16.msra.mxu0 0
        %2481 = vmatprep.subr.bf16.mxu0 0
        %2482 = vmatpush1.bf16.msra.mxu0 0
        %2483 = vmatprep.subr.bf16.mxu0 0
        %2484 = vmatpush1.bf16.msra.mxu0 0
        %2485 = vmatprep.subr.bf16.mxu0 0
        %2486 = vmatpush1.bf16.msra.mxu0 0
        %2487 = vmatprep.subr.bf16.mxu0 0
        %2488 = vmatpush1.bf16.msra.mxu0 0
        %2489 = vmatprep.subr.bf16.mxu0 0
        %2490 = vmatpush1.bf16.msra.mxu0 0
        %2491 = vmatprep.mubr.bf16.mxu0 0
        %2492 = vmatmul.mubr.bf16.gmra.mrb[0].mxu0 %v2457
        %v2493 = vpop.f32.mrb[0].mxu0
        %v2494 = vadd.f32 0.0, %v2493
        %v2495 = vpop.f32.mrb[0].mxu0
        %v2496 = vadd.f32 0.0, %v2495
        %v2497 = vpop.f32.mrb[0].mxu0
        %v2498 = vadd.f32 0.0, %v2497
        %v2499 = vpop.f32.mrb[0].mxu0
        %v2500 = vadd.f32 0.0, %v2499
        %2501 = vdwg.mxu0
        %2502 = vmatprep.subr.bf16.mxu0 %v2437
        %2503 = vmatpush1.bf16.msra.mxu0 %v2436
        %2504 = vmatprep.subr.bf16.mxu0 %v2441
        %2505 = vmatpush1.bf16.msra.mxu0 %v2440
        %2506 = vmatprep.subr.bf16.mxu0 %v2445
        %2507 = vmatpush1.bf16.msra.mxu0 %v2444
        %2508 = vmatprep.subr.bf16.mxu0 %v2449
        %2509 = vmatpush1.bf16.msra.mxu0 %v2448
        %2510 = vmatprep.subr.bf16.mxu0 0
        %2511 = vmatpush1.bf16.msra.mxu0 0
        %2512 = vmatprep.subr.bf16.mxu0 0
        %2513 = vmatpush1.bf16.msra.mxu0 0
        %2514 = vmatprep.subr.bf16.mxu0 0
        %2515 = vmatpush1.bf16.msra.mxu0 0
        %2516 = vmatprep.subr.bf16.mxu0 0
        %2517 = vmatpush1.bf16.msra.mxu0 0
        %2518 = vmatprep.subr.bf16.mxu0 0
        %2519 = vmatpush1.bf16.msra.mxu0 0
        %2520 = vmatprep.subr.bf16.mxu0 0
        %2521 = vmatpush1.bf16.msra.mxu0 0
        %2522 = vmatprep.subr.bf16.mxu0 0
        %2523 = vmatpush1.bf16.msra.mxu0 0
        %2524 = vmatprep.subr.bf16.mxu0 0
        %2525 = vmatpush1.bf16.msra.mxu0 0
        %2526 = vmatprep.subr.bf16.mxu0 0
        %2527 = vmatpush1.bf16.msra.mxu0 0
        %2528 = vmatprep.subr.bf16.mxu0 0
        %2529 = vmatpush1.bf16.msra.mxu0 0
        %2530 = vmatprep.subr.bf16.mxu0 0
        %2531 = vmatpush1.bf16.msra.mxu0 0
        %2532 = vmatprep.subr.bf16.mxu0 0
        %2533 = vmatpush1.bf16.msra.mxu0 0
        %2534 = vmatprep.mubr.bf16.mxu0 0
        %2535 = vmatmul.mubr.bf16.gmra.mrb[0].mxu0 %v2457
        %v2536 = vpop.f32.mrb[0].mxu0
        %v2537 = vadd.f32 0.0, %v2536
        %v2538 = vpop.f32.mrb[0].mxu0
        %v2539 = vadd.f32 0.0, %v2538
        %v2540 = vpop.f32.mrb[0].mxu0
        %v2541 = vadd.f32 0.0, %v2540
        %v2542 = vpop.f32.mrb[0].mxu0
        %v2543 = vadd.f32 0.0, %v2542
        %2544 = vdwg.mxu0
        %v2545 = vld [vmem:[%s362 + $0x18] sm:$0xff]
        %v2546 = vld [vmem:[%s362 + $0x20] sm:$0xff]
        %v2547 = vld [vmem:[%s362 + $0x28] sm:$0xff]
        %v2548 = vld [vmem:[%s362 + $0x30] sm:$0xff]
        %v2549 = vld [vmem:[%s362 + $0x88] sm:$0xff]
        %v2550 = vld [vmem:[%s362 + $0x90] sm:$0xff]
        %v2551 = vld [vmem:[%s362 + $0x98] sm:$0xff]
        %v2552 = vld [vmem:[%s362 + $0xa0] sm:$0xff]
        %v2553 = vadd.f32 %v2545, %v2494
        %v2554 = vadd.f32 %v2546, %v2496
        %v2555 = vadd.f32 %v2547, %v2537
        %v2556 = vadd.f32 %v2548, %v2539
        %v2557 = vadd.f32 %v2549, %v2498
        %v2558 = vadd.f32 %v2550, %v2500
        %v2559 = vadd.f32 %v2551, %v2541
        %v2560 = vadd.f32 %v2552, %v2543
        %2562 = vset.pattern.permute.xlu0 0
        %2563 = vperm.xlu0 %2562, %v505
        %v2564 = vpop.permute.xlu0 %2563
        %2567 = vset.pattern.permute.xlu0 0
        %2568 = vperm.xlu0 %2567, %v506
        %v2569 = vpop.permute.xlu0 %2568
        %v2571 = vadd.f32 %v2553, %v2564
        %v2572 = vadd.f32 %v2554, %v2564
        %v2573 = vadd.f32 %v2555, %v2564
        %v2574 = vadd.f32 %v2556, %v2564
        %v2575 = vadd.f32 %v2557, %v2569
        %v2576 = vadd.f32 %v2558, %v2569
        %v2577 = vadd.f32 %v2559, %v2569
        %v2578 = vadd.f32 %v2560, %v2569
        %2579 = vst [vmem:[%s240] sm:$0xff] %v2571
        %2580 = vst [vmem:[%s240 + $0x8] sm:$0xff] %v2572
        %2581 = vst [vmem:[%s240 + $0x10] sm:$0xff] %v2573
        %2582 = vst [vmem:[%s240 + $0x18] sm:$0xff] %v2574
        %2583 = vst [vmem:[%s240 + $0x40] sm:$0xff] %v2575
        %2584 = vst [vmem:[%s240 + $0x48] sm:$0xff] %v2576
        %2585 = vst [vmem:[%s240 + $0x50] sm:$0xff] %v2577
        %2586 = vst [vmem:[%s240 + $0x58] sm:$0xff] %v2578
        %v2587 = vld [vmem:[%s362 + $0x20] sm:$0xff]
        %v2588 = vld [vmem:[%s362 + $0x28] sm:$0xff]
        %v2589 = vld [vmem:[%s362 + $0x30] sm:$0xff]
        %v2590 = vld [vmem:[%s362 + $0x38] sm:$0xff]
        %v2591 = vld [vmem:[%s362 + $0x40] sm:$0xff]
        %v2592 = vld [vmem:[%s362 + $0x48] sm:$0xff]
        %v2593 = vld [vmem:[%s362 + $0x50] sm:$0xff]
        %v2594 = vld [vmem:[%s362 + $0x58] sm:$0xff]
        %v2595 = vld [vmem:[%s362 + $0x60] sm:$0xff]
        %v2596 = vld [vmem:[%s362 + $0x68] sm:$0xff]
        %v2597 = vld [vmem:[%s362 + $0x90] sm:$0xff]
        %v2598 = vld [vmem:[%s362 + $0x98] sm:$0xff]
        %v2599 = vld [vmem:[%s362 + $0xa0] sm:$0xff]
        %v2600 = vld [vmem:[%s362 + $0xa8] sm:$0xff]
        %v2601 = vld [vmem:[%s362 + $0xb0] sm:$0xff]
        %v2602 = vld [vmem:[%s362 + $0xb8] sm:$0xff]
        %v2603 = vld [vmem:[%s362 + $0xc0] sm:$0xff]
        %v2604 = vld [vmem:[%s362 + $0xc8] sm:$0xff]
        %v2605 = vld [vmem:[%s362 + $0xd0] sm:$0xff]
        %v2606 = vld [vmem:[%s362 + $0xd8] sm:$0xff]
        %2607 = vrot.lane.b32.xlu0 %v2587, 3
        %v2608 = vpop.permute.xlu0 %2607
        %2609 = vrot.lane.b32.xlu0 %v2597, 3
        %v2610 = vpop.permute.xlu0 %2609
        %2611 = vrot.lane.b32.xlu0 %v2588, 3
        %v2612 = vpop.permute.xlu0 %2611
        %2613 = vrot.lane.b32.xlu0 %v2598, 3
        %v2614 = vpop.permute.xlu0 %2613
        %2615 = vrot.lane.b32.xlu0 %v2589, 3
        %v2616 = vpop.permute.xlu0 %2615
        %2617 = vrot.lane.b32.xlu0 %v2599, 3
        %v2618 = vpop.permute.xlu0 %2617
        %2619 = vrot.lane.b32.xlu0 %v2590, 3
        %v2620 = vpop.permute.xlu0 %2619
        %2621 = vrot.lane.b32.xlu0 %v2600, 3
        %v2622 = vpop.permute.xlu0 %2621
        %2623 = vrot.lane.b32.xlu0 %v2591, 3
        %v2624 = vpop.permute.xlu0 %2623
        %2625 = vrot.lane.b32.xlu0 %v2601, 3
        %v2626 = vpop.permute.xlu0 %2625
        %2627 = vrot.lane.b32.xlu0 %v2592, 3
        %v2628 = vpop.permute.xlu0 %2627
        %2629 = vrot.lane.b32.xlu0 %v2602, 3
        %v2630 = vpop.permute.xlu0 %2629
        %2631 = vrot.lane.b32.xlu0 %v2593, 3
        %v2632 = vpop.permute.xlu0 %2631
        %2633 = vrot.lane.b32.xlu0 %v2603, 3
        %v2634 = vpop.permute.xlu0 %2633
        %2635 = vrot.lane.b32.xlu0 %v2594, 3
        %v2636 = vpop.permute.xlu0 %2635
        %2637 = vrot.lane.b32.xlu0 %v2604, 3
        %v2638 = vpop.permute.xlu0 %2637
        %2639 = vrot.lane.b32.xlu0 %v2595, 3
        %v2640 = vpop.permute.xlu0 %2639
        %2641 = vrot.lane.b32.xlu0 %v2605, 3
        %v2642 = vpop.permute.xlu0 %2641
        %2643 = vrot.lane.b32.xlu0 %v2596, 3
        %v2644 = vpop.permute.xlu0 %2643
        %2645 = vrot.lane.b32.xlu0 %v2606, 3
        %v2646 = vpop.permute.xlu0 %2645
        %v2647 = vsel %vm569, %v2640, %v2644
        %v2648 = vsel %vm569, %v2642, %v2646
        %v2649 = vsel %vm569, %v2636, %v2640
        %v2650 = vsel %vm569, %v2638, %v2642
        %v2651 = vsel %vm569, %v2632, %v2636
        %v2652 = vsel %vm569, %v2634, %v2638
        %v2653 = vsel %vm569, %v2628, %v2632
        %v2654 = vsel %vm569, %v2630, %v2634
        %v2655 = vsel %vm569, %v2624, %v2628
        %v2656 = vsel %vm569, %v2626, %v2630
        %v2657 = vsel %vm569, %v2620, %v2624
        %v2658 = vsel %vm569, %v2622, %v2626
        %v2659 = vsel %vm569, %v2616, %v2620
        %v2660 = vsel %vm569, %v2618, %v2622
        %v2661 = vsel %vm569, %v2612, %v2616
        %v2662 = vsel %vm569, %v2614, %v2618
        %v2663 = vsel %vm569, %v2608, %v2612
        %v2664 = vsel %vm569, %v2610, %v2614
        %v2665 = vsel %vm569, %v2644, %v2608
        %v2666 = vsel %vm569, %v2646, %v2610
        %v2667 = vmul.f32 %v2665, %v593
        %v2668 = vmul.f32 %v2663, %v593
        %v2669 = vmul.f32 %v2661, %v593
        %v2670 = vmul.f32 %v2659, %v593
        %v2671 = vmul.f32 %v2666, %v598
        %v2672 = vmul.f32 %v2664, %v598
        %v2673 = vmul.f32 %v2662, %v598
        %v2674 = vmul.f32 %v2660, %v598
        %v2675 = vadd.f32 %v2667, 0.0
        %v2676 = vadd.f32 %v2668, 0.0
        %v2677 = vadd.f32 %v2669, 0.0
        %v2678 = vadd.f32 %v2670, 0.0
        %v2679 = vadd.f32 %v2671, 0.0
        %v2680 = vadd.f32 %v2672, 0.0
        %v2681 = vadd.f32 %v2673, 0.0
        %v2682 = vadd.f32 %v2674, 0.0
        %v2683 = vmul.f32 %v2663, %v618
        %v2684 = vmul.f32 %v2661, %v618
        %v2685 = vmul.f32 %v2659, %v618
        %v2686 = vmul.f32 %v2657, %v618
        %v2687 = vmul.f32 %v2664, %v622
        %v2688 = vmul.f32 %v2662, %v622
        %v2689 = vmul.f32 %v2660, %v622
        %v2690 = vmul.f32 %v2658, %v622
        %v2691 = vadd.f32 %v2675, %v2683
        %v2692 = vadd.f32 %v2676, %v2684
        %v2693 = vadd.f32 %v2677, %v2685
        %v2694 = vadd.f32 %v2678, %v2686
        %v2695 = vadd.f32 %v2679, %v2687
        %v2696 = vadd.f32 %v2680, %v2688
        %v2697 = vadd.f32 %v2681, %v2689
        %v2698 = vadd.f32 %v2682, %v2690
        %v2699 = vmul.f32 %v2661, %v642
        %v2700 = vmul.f32 %v2659, %v642
        %v2701 = vmul.f32 %v2657, %v642
        %v2702 = vmul.f32 %v2655, %v642
        %v2703 = vmul.f32 %v2662, %v646
        %v2704 = vmul.f32 %v2660, %v646
        %v2705 = vmul.f32 %v2658, %v646
        %v2706 = vmul.f32 %v2656, %v646
        %v2707 = vadd.f32 %v2691, %v2699
        %v2708 = vadd.f32 %v2692, %v2700
        %v2709 = vadd.f32 %v2693, %v2701
        %v2710 = vadd.f32 %v2694, %v2702
        %v2711 = vadd.f32 %v2695, %v2703
        %v2712 = vadd.f32 %v2696, %v2704
        %v2713 = vadd.f32 %v2697, %v2705
        %v2714 = vadd.f32 %v2698, %v2706
        %v2715 = vmul.f32 %v2659, %v666
        %v2716 = vmul.f32 %v2657, %v666
        %v2717 = vmul.f32 %v2655, %v666
        %v2718 = vmul.f32 %v2653, %v666
        %v2719 = vmul.f32 %v2660, %v670
        %v2720 = vmul.f32 %v2658, %v670
        %v2721 = vmul.f32 %v2656, %v670
        %v2722 = vmul.f32 %v2654, %v670
        %v2723 = vadd.f32 %v2707, %v2715
        %v2724 = vadd.f32 %v2708, %v2716
        %v2725 = vadd.f32 %v2709, %v2717
        %v2726 = vadd.f32 %v2710, %v2718
        %v2727 = vadd.f32 %v2711, %v2719
        %v2728 = vadd.f32 %v2712, %v2720
        %v2729 = vadd.f32 %v2713, %v2721
        %v2730 = vadd.f32 %v2714, %v2722
        %v2731 = vmul.f32 %v2657, %v690
        %v2732 = vmul.f32 %v2655, %v690
        %v2733 = vmul.f32 %v2653, %v690
        %v2734 = vmul.f32 %v2651, %v690
        %v2735 = vmul.f32 %v2658, %v694
        %v2736 = vmul.f32 %v2656, %v694
        %v2737 = vmul.f32 %v2654, %v694
        %v2738 = vmul.f32 %v2652, %v694
        %v2739 = vadd.f32 %v2723, %v2731
        %v2740 = vadd.f32 %v2724, %v2732
        %v2741 = vadd.f32 %v2725, %v2733
        %v2742 = vadd.f32 %v2726, %v2734
        %v2743 = vadd.f32 %v2727, %v2735
        %v2744 = vadd.f32 %v2728, %v2736
        %v2745 = vadd.f32 %v2729, %v2737
        %v2746 = vadd.f32 %v2730, %v2738
        %v2747 = vmul.f32 %v2655, %v714
        %v2748 = vmul.f32 %v2653, %v714
        %v2749 = vmul.f32 %v2651, %v714
        %v2750 = vmul.f32 %v2649, %v714
        %v2751 = vmul.f32 %v2656, %v718
        %v2752 = vmul.f32 %v2654, %v718
        %v2753 = vmul.f32 %v2652, %v718
        %v2754 = vmul.f32 %v2650, %v718
        %v2755 = vadd.f32 %v2739, %v2747
        %v2756 = vadd.f32 %v2740, %v2748
        %v2757 = vadd.f32 %v2741, %v2749
        %v2758 = vadd.f32 %v2742, %v2750
        %v2759 = vadd.f32 %v2743, %v2751
        %v2760 = vadd.f32 %v2744, %v2752
        %v2761 = vadd.f32 %v2745, %v2753
        %v2762 = vadd.f32 %v2746, %v2754
        %v2763 = vmul.f32 %v2653, %v738
        %v2764 = vmul.f32 %v2651, %v738
        %v2765 = vmul.f32 %v2649, %v738
        %v2766 = vmul.f32 %v2647, %v738
        %v2767 = vmul.f32 %v2654, %v742
        %v2768 = vmul.f32 %v2652, %v742
        %v2769 = vmul.f32 %v2650, %v742
        %v2770 = vmul.f32 %v2648, %v742
        %v2771 = vadd.f32 %v2755, %v2763
        %v2772 = vadd.f32 %v2756, %v2764
        %v2773 = vadd.f32 %v2757, %v2765
        %v2774 = vadd.f32 %v2758, %v2766
        %v2775 = vadd.f32 %v2759, %v2767
        %v2776 = vadd.f32 %v2760, %v2768
        %v2777 = vadd.f32 %v2761, %v2769
        %v2778 = vadd.f32 %v2762, %v2770
        %2779 = vrot.lane.b32.xlu0 %v2587, 2
        %v2780 = vpop.permute.xlu0 %2779
        %2781 = vrot.lane.b32.xlu0 %v2597, 2
        %v2782 = vpop.permute.xlu0 %2781
        %2783 = vrot.lane.b32.xlu0 %v2588, 2
        %v2784 = vpop.permute.xlu0 %2783
        %2785 = vrot.lane.b32.xlu0 %v2598, 2
        %v2786 = vpop.permute.xlu0 %2785
        %2787 = vrot.lane.b32.xlu0 %v2589, 2
        %v2788 = vpop.permute.xlu0 %2787
        %2789 = vrot.lane.b32.xlu0 %v2599, 2
        %v2790 = vpop.permute.xlu0 %2789
        %2791 = vrot.lane.b32.xlu0 %v2590, 2
        %v2792 = vpop.permute.xlu0 %2791
        %2793 = vrot.lane.b32.xlu0 %v2600, 2
        %v2794 = vpop.permute.xlu0 %2793
        %2795 = vrot.lane.b32.xlu0 %v2591, 2
        %v2796 = vpop.permute.xlu0 %2795
        %2797 = vrot.lane.b32.xlu0 %v2601, 2
        %v2798 = vpop.permute.xlu0 %2797
        %2799 = vrot.lane.b32.xlu0 %v2592, 2
        %v2800 = vpop.permute.xlu0 %2799
        %2801 = vrot.lane.b32.xlu0 %v2602, 2
        %v2802 = vpop.permute.xlu0 %2801
        %2803 = vrot.lane.b32.xlu0 %v2593, 2
        %v2804 = vpop.permute.xlu0 %2803
        %2805 = vrot.lane.b32.xlu0 %v2603, 2
        %v2806 = vpop.permute.xlu0 %2805
        %2807 = vrot.lane.b32.xlu0 %v2594, 2
        %v2808 = vpop.permute.xlu0 %2807
        %2809 = vrot.lane.b32.xlu0 %v2604, 2
        %v2810 = vpop.permute.xlu0 %2809
        %2811 = vrot.lane.b32.xlu0 %v2595, 2
        %v2812 = vpop.permute.xlu0 %2811
        %2813 = vrot.lane.b32.xlu0 %v2605, 2
        %v2814 = vpop.permute.xlu0 %2813
        %2815 = vrot.lane.b32.xlu0 %v2596, 2
        %v2816 = vpop.permute.xlu0 %2815
        %2817 = vrot.lane.b32.xlu0 %v2606, 2
        %v2818 = vpop.permute.xlu0 %2817
        %v2819 = vsel %vm800, %v2812, %v2816
        %v2820 = vsel %vm800, %v2814, %v2818
        %v2821 = vsel %vm800, %v2808, %v2812
        %v2822 = vsel %vm800, %v2810, %v2814
        %v2823 = vsel %vm800, %v2804, %v2808
        %v2824 = vsel %vm800, %v2806, %v2810
        %v2825 = vsel %vm800, %v2800, %v2804
        %v2826 = vsel %vm800, %v2802, %v2806
        %v2827 = vsel %vm800, %v2796, %v2800
        %v2828 = vsel %vm800, %v2798, %v2802
        %v2829 = vsel %vm800, %v2792, %v2796
        %v2830 = vsel %vm800, %v2794, %v2798
        %v2831 = vsel %vm800, %v2788, %v2792
        %v2832 = vsel %vm800, %v2790, %v2794
        %v2833 = vsel %vm800, %v2784, %v2788
        %v2834 = vsel %vm800, %v2786, %v2790
        %v2835 = vsel %vm800, %v2780, %v2784
        %v2836 = vsel %vm800, %v2782, %v2786
        %v2837 = vsel %vm800, %v2816, %v2780
        %v2838 = vsel %vm800, %v2818, %v2782
        %v2839 = vmul.f32 %v2837, %v823
        %v2840 = vmul.f32 %v2835, %v823
        %v2841 = vmul.f32 %v2833, %v823
        %v2842 = vmul.f32 %v2831, %v823
        %v2843 = vmul.f32 %v2838, %v827
        %v2844 = vmul.f32 %v2836, %v827
        %v2845 = vmul.f32 %v2834, %v827
        %v2846 = vmul.f32 %v2832, %v827
        %v2847 = vadd.f32 %v2771, %v2839
        %v2848 = vadd.f32 %v2772, %v2840
        %v2849 = vadd.f32 %v2773, %v2841
        %v2850 = vadd.f32 %v2774, %v2842
        %v2851 = vadd.f32 %v2775, %v2843
        %v2852 = vadd.f32 %v2776, %v2844
        %v2853 = vadd.f32 %v2777, %v2845
        %v2854 = vadd.f32 %v2778, %v2846
        %v2855 = vmul.f32 %v2835, %v847
        %v2856 = vmul.f32 %v2833, %v847
        %v2857 = vmul.f32 %v2831, %v847
        %v2858 = vmul.f32 %v2829, %v847
        %v2859 = vmul.f32 %v2836, %v851
        %v2860 = vmul.f32 %v2834, %v851
        %v2861 = vmul.f32 %v2832, %v851
        %v2862 = vmul.f32 %v2830, %v851
        %v2863 = vadd.f32 %v2847, %v2855
        %v2864 = vadd.f32 %v2848, %v2856
        %v2865 = vadd.f32 %v2849, %v2857
        %v2866 = vadd.f32 %v2850, %v2858
        %v2867 = vadd.f32 %v2851, %v2859
        %v2868 = vadd.f32 %v2852, %v2860
        %v2869 = vadd.f32 %v2853, %v2861
        %v2870 = vadd.f32 %v2854, %v2862
        %v2871 = vmul.f32 %v2833, %v871
        %v2872 = vmul.f32 %v2831, %v871
        %v2873 = vmul.f32 %v2829, %v871
        %v2874 = vmul.f32 %v2827, %v871
        %v2875 = vmul.f32 %v2834, %v875
        %v2876 = vmul.f32 %v2832, %v875
        %v2877 = vmul.f32 %v2830, %v875
        %v2878 = vmul.f32 %v2828, %v875
        %v2879 = vadd.f32 %v2863, %v2871
        %v2880 = vadd.f32 %v2864, %v2872
        %v2881 = vadd.f32 %v2865, %v2873
        %v2882 = vadd.f32 %v2866, %v2874
        %v2883 = vadd.f32 %v2867, %v2875
        %v2884 = vadd.f32 %v2868, %v2876
        %v2885 = vadd.f32 %v2869, %v2877
        %v2886 = vadd.f32 %v2870, %v2878
        %v2887 = vmul.f32 %v2831, %v895
        %v2888 = vmul.f32 %v2829, %v895
        %v2889 = vmul.f32 %v2827, %v895
        %v2890 = vmul.f32 %v2825, %v895
        %v2891 = vmul.f32 %v2832, %v899
        %v2892 = vmul.f32 %v2830, %v899
        %v2893 = vmul.f32 %v2828, %v899
        %v2894 = vmul.f32 %v2826, %v899
        %v2895 = vadd.f32 %v2879, %v2887
        %v2896 = vadd.f32 %v2880, %v2888
        %v2897 = vadd.f32 %v2881, %v2889
        %v2898 = vadd.f32 %v2882, %v2890
        %v2899 = vadd.f32 %v2883, %v2891
        %v2900 = vadd.f32 %v2884, %v2892
        %v2901 = vadd.f32 %v2885, %v2893
        %v2902 = vadd.f32 %v2886, %v2894
        %v2903 = vmul.f32 %v2829, %v919
        %v2904 = vmul.f32 %v2827, %v919
        %v2905 = vmul.f32 %v2825, %v919
        %v2906 = vmul.f32 %v2823, %v919
        %v2907 = vmul.f32 %v2830, %v923
        %v2908 = vmul.f32 %v2828, %v923
        %v2909 = vmul.f32 %v2826, %v923
        %v2910 = vmul.f32 %v2824, %v923
        %v2911 = vadd.f32 %v2895, %v2903
        %v2912 = vadd.f32 %v2896, %v2904
        %v2913 = vadd.f32 %v2897, %v2905
        %v2914 = vadd.f32 %v2898, %v2906
        %v2915 = vadd.f32 %v2899, %v2907
        %v2916 = vadd.f32 %v2900, %v2908
        %v2917 = vadd.f32 %v2901, %v2909
        %v2918 = vadd.f32 %v2902, %v2910
        %v2919 = vmul.f32 %v2827, %v943
        %v2920 = vmul.f32 %v2825, %v943
        %v2921 = vmul.f32 %v2823, %v943
        %v2922 = vmul.f32 %v2821, %v943
        %v2923 = vmul.f32 %v2828, %v947
        %v2924 = vmul.f32 %v2826, %v947
        %v2925 = vmul.f32 %v2824, %v947
        %v2926 = vmul.f32 %v2822, %v947
        %v2927 = vadd.f32 %v2911, %v2919
        %v2928 = vadd.f32 %v2912, %v2920
        %v2929 = vadd.f32 %v2913, %v2921
        %v2930 = vadd.f32 %v2914, %v2922
        %v2931 = vadd.f32 %v2915, %v2923
        %v2932 = vadd.f32 %v2916, %v2924
        %v2933 = vadd.f32 %v2917, %v2925
        %v2934 = vadd.f32 %v2918, %v2926
        %v2935 = vmul.f32 %v2825, %v967
        %v2936 = vmul.f32 %v2823, %v967
        %v2937 = vmul.f32 %v2821, %v967
        %v2938 = vmul.f32 %v2819, %v967
        %v2939 = vmul.f32 %v2826, %v971
        %v2940 = vmul.f32 %v2824, %v971
        %v2941 = vmul.f32 %v2822, %v971
        %v2942 = vmul.f32 %v2820, %v971
        %v2943 = vadd.f32 %v2927, %v2935
        %v2944 = vadd.f32 %v2928, %v2936
        %v2945 = vadd.f32 %v2929, %v2937
        %v2946 = vadd.f32 %v2930, %v2938
        %v2947 = vadd.f32 %v2931, %v2939
        %v2948 = vadd.f32 %v2932, %v2940
        %v2949 = vadd.f32 %v2933, %v2941
        %v2950 = vadd.f32 %v2934, %v2942
        %2951 = vrot.lane.b32.xlu0 %v2587, 1
        %v2952 = vpop.permute.xlu0 %2951
        %2953 = vrot.lane.b32.xlu0 %v2597, 1
        %v2954 = vpop.permute.xlu0 %2953
        %2955 = vrot.lane.b32.xlu0 %v2588, 1
        %v2956 = vpop.permute.xlu0 %2955
        %2957 = vrot.lane.b32.xlu0 %v2598, 1
        %v2958 = vpop.permute.xlu0 %2957
        %2959 = vrot.lane.b32.xlu0 %v2589, 1
        %v2960 = vpop.permute.xlu0 %2959
        %2961 = vrot.lane.b32.xlu0 %v2599, 1
        %v2962 = vpop.permute.xlu0 %2961
        %2963 = vrot.lane.b32.xlu0 %v2590, 1
        %v2964 = vpop.permute.xlu0 %2963
        %2965 = vrot.lane.b32.xlu0 %v2600, 1
        %v2966 = vpop.permute.xlu0 %2965
        %2967 = vrot.lane.b32.xlu0 %v2591, 1
        %v2968 = vpop.permute.xlu0 %2967
        %2969 = vrot.lane.b32.xlu0 %v2601, 1
        %v2970 = vpop.permute.xlu0 %2969
        %2971 = vrot.lane.b32.xlu0 %v2592, 1
        %v2972 = vpop.permute.xlu0 %2971
        %2973 = vrot.lane.b32.xlu0 %v2602, 1
        %v2974 = vpop.permute.xlu0 %2973
        %2975 = vrot.lane.b32.xlu0 %v2593, 1
        %v2976 = vpop.permute.xlu0 %2975
        %2977 = vrot.lane.b32.xlu0 %v2603, 1
        %v2978 = vpop.permute.xlu0 %2977
        %2979 = vrot.lane.b32.xlu0 %v2594, 1
        %v2980 = vpop.permute.xlu0 %2979
        %2981 = vrot.lane.b32.xlu0 %v2604, 1
        %v2982 = vpop.permute.xlu0 %2981
        %2983 = vrot.lane.b32.xlu0 %v2595, 1
        %v2984 = vpop.permute.xlu0 %2983
        %2985 = vrot.lane.b32.xlu0 %v2605, 1
        %v2986 = vpop.permute.xlu0 %2985
        %2987 = vrot.lane.b32.xlu0 %v2596, 1
        %v2988 = vpop.permute.xlu0 %2987
        %2989 = vrot.lane.b32.xlu0 %v2606, 1
        %v2990 = vpop.permute.xlu0 %2989
        %v2991 = vsel %vm1029, %v2984, %v2988
        %v2992 = vsel %vm1029, %v2986, %v2990
        %v2993 = vsel %vm1029, %v2980, %v2984
        %v2994 = vsel %vm1029, %v2982, %v2986
        %v2995 = vsel %vm1029, %v2976, %v2980
        %v2996 = vsel %vm1029, %v2978, %v2982
        %v2997 = vsel %vm1029, %v2972, %v2976
        %v2998 = vsel %vm1029, %v2974, %v2978
        %v2999 = vsel %vm1029, %v2968, %v2972
        %v3000 = vsel %vm1029, %v2970, %v2974
        %v3001 = vsel %vm1029, %v2964, %v2968
        %v3002 = vsel %vm1029, %v2966, %v2970
        %v3003 = vsel %vm1029, %v2960, %v2964
        %v3004 = vsel %vm1029, %v2962, %v2966
        %v3005 = vsel %vm1029, %v2956, %v2960
        %v3006 = vsel %vm1029, %v2958, %v2962
        %v3007 = vsel %vm1029, %v2952, %v2956
        %v3008 = vsel %vm1029, %v2954, %v2958
        %v3009 = vsel %vm1029, %v2988, %v2952
        %v3010 = vsel %vm1029, %v2990, %v2954
        %v3011 = vmul.f32 %v3009, %v1052
        %v3012 = vmul.f32 %v3007, %v1052
        %v3013 = vmul.f32 %v3005, %v1052
        %v3014 = vmul.f32 %v3003, %v1052
        %v3015 = vmul.f32 %v3010, %v1056
        %v3016 = vmul.f32 %v3008, %v1056
        %v3017 = vmul.f32 %v3006, %v1056
        %v3018 = vmul.f32 %v3004, %v1056
        %v3019 = vadd.f32 %v2943, %v3011
        %v3020 = vadd.f32 %v2944, %v3012
        %v3021 = vadd.f32 %v2945, %v3013
        %v3022 = vadd.f32 %v2946, %v3014
        %v3023 = vadd.f32 %v2947, %v3015
        %v3024 = vadd.f32 %v2948, %v3016
        %v3025 = vadd.f32 %v2949, %v3017
        %v3026 = vadd.f32 %v2950, %v3018
        %v3027 = vmul.f32 %v3007, %v1076
        %v3028 = vmul.f32 %v3005, %v1076
        %v3029 = vmul.f32 %v3003, %v1076
        %v3030 = vmul.f32 %v3001, %v1076
        %v3031 = vmul.f32 %v3008, %v1080
        %v3032 = vmul.f32 %v3006, %v1080
        %v3033 = vmul.f32 %v3004, %v1080
        %v3034 = vmul.f32 %v3002, %v1080
        %v3035 = vadd.f32 %v3019, %v3027
        %v3036 = vadd.f32 %v3020, %v3028
        %v3037 = vadd.f32 %v3021, %v3029
        %v3038 = vadd.f32 %v3022, %v3030
        %v3039 = vadd.f32 %v3023, %v3031
        %v3040 = vadd.f32 %v3024, %v3032
        %v3041 = vadd.f32 %v3025, %v3033
        %v3042 = vadd.f32 %v3026, %v3034
        %v3043 = vmul.f32 %v3005, %v1100
        %v3044 = vmul.f32 %v3003, %v1100
        %v3045 = vmul.f32 %v3001, %v1100
        %v3046 = vmul.f32 %v2999, %v1100
        %v3047 = vmul.f32 %v3006, %v1104
        %v3048 = vmul.f32 %v3004, %v1104
        %v3049 = vmul.f32 %v3002, %v1104
        %v3050 = vmul.f32 %v3000, %v1104
        %v3051 = vadd.f32 %v3035, %v3043
        %v3052 = vadd.f32 %v3036, %v3044
        %v3053 = vadd.f32 %v3037, %v3045
        %v3054 = vadd.f32 %v3038, %v3046
        %v3055 = vadd.f32 %v3039, %v3047
        %v3056 = vadd.f32 %v3040, %v3048
        %v3057 = vadd.f32 %v3041, %v3049
        %v3058 = vadd.f32 %v3042, %v3050
        %v3059 = vmul.f32 %v3003, %v1124
        %v3060 = vmul.f32 %v3001, %v1124
        %v3061 = vmul.f32 %v2999, %v1124
        %v3062 = vmul.f32 %v2997, %v1124
        %v3063 = vmul.f32 %v3004, %v1128
        %v3064 = vmul.f32 %v3002, %v1128
        %v3065 = vmul.f32 %v3000, %v1128
        %v3066 = vmul.f32 %v2998, %v1128
        %v3067 = vadd.f32 %v3051, %v3059
        %v3068 = vadd.f32 %v3052, %v3060
        %v3069 = vadd.f32 %v3053, %v3061
        %v3070 = vadd.f32 %v3054, %v3062
        %v3071 = vadd.f32 %v3055, %v3063
        %v3072 = vadd.f32 %v3056, %v3064
        %v3073 = vadd.f32 %v3057, %v3065
        %v3074 = vadd.f32 %v3058, %v3066
        %v3075 = vmul.f32 %v3001, %v1148
        %v3076 = vmul.f32 %v2999, %v1148
        %v3077 = vmul.f32 %v2997, %v1148
        %v3078 = vmul.f32 %v2995, %v1148
        %v3079 = vmul.f32 %v3002, %v1152
        %v3080 = vmul.f32 %v3000, %v1152
        %v3081 = vmul.f32 %v2998, %v1152
        %v3082 = vmul.f32 %v2996, %v1152
        %v3083 = vadd.f32 %v3067, %v3075
        %v3084 = vadd.f32 %v3068, %v3076
        %v3085 = vadd.f32 %v3069, %v3077
        %v3086 = vadd.f32 %v3070, %v3078
        %v3087 = vadd.f32 %v3071, %v3079
        %v3088 = vadd.f32 %v3072, %v3080
        %v3089 = vadd.f32 %v3073, %v3081
        %v3090 = vadd.f32 %v3074, %v3082
        %v3091 = vmul.f32 %v2999, %v1172
        %v3092 = vmul.f32 %v2997, %v1172
        %v3093 = vmul.f32 %v2995, %v1172
        %v3094 = vmul.f32 %v2993, %v1172
        %v3095 = vmul.f32 %v3000, %v1176
        %v3096 = vmul.f32 %v2998, %v1176
        %v3097 = vmul.f32 %v2996, %v1176
        %v3098 = vmul.f32 %v2994, %v1176
        %v3099 = vadd.f32 %v3083, %v3091
        %v3100 = vadd.f32 %v3084, %v3092
        %v3101 = vadd.f32 %v3085, %v3093
        %v3102 = vadd.f32 %v3086, %v3094
        %v3103 = vadd.f32 %v3087, %v3095
        %v3104 = vadd.f32 %v3088, %v3096
        %v3105 = vadd.f32 %v3089, %v3097
        %v3106 = vadd.f32 %v3090, %v3098
        %v3107 = vmul.f32 %v2997, %v1196
        %v3108 = vmul.f32 %v2995, %v1196
        %v3109 = vmul.f32 %v2993, %v1196
        %v3110 = vmul.f32 %v2991, %v1196
        %v3111 = vmul.f32 %v2998, %v1200
        %v3112 = vmul.f32 %v2996, %v1200
        %v3113 = vmul.f32 %v2994, %v1200
        %v3114 = vmul.f32 %v2992, %v1200
        %v3115 = vadd.f32 %v3099, %v3107
        %v3116 = vadd.f32 %v3100, %v3108
        %v3117 = vadd.f32 %v3101, %v3109
        %v3118 = vadd.f32 %v3102, %v3110
        %v3119 = vadd.f32 %v3103, %v3111
        %v3120 = vadd.f32 %v3104, %v3112
        %v3121 = vadd.f32 %v3105, %v3113
        %v3122 = vadd.f32 %v3106, %v3114
        %v3123 = vmul.f32 %v2587, %v1220
        %v3124 = vmul.f32 %v2588, %v1220
        %v3125 = vmul.f32 %v2589, %v1220
        %v3126 = vmul.f32 %v2590, %v1220
        %v3127 = vmul.f32 %v2597, %v1224
        %v3128 = vmul.f32 %v2598, %v1224
        %v3129 = vmul.f32 %v2599, %v1224
        %v3130 = vmul.f32 %v2600, %v1224
        %v3131 = vadd.f32 %v3115, %v3123
        %v3132 = vadd.f32 %v3116, %v3124
        %v3133 = vadd.f32 %v3117, %v3125
        %v3134 = vadd.f32 %v3118, %v3126
        %v3135 = vadd.f32 %v3119, %v3127
        %v3136 = vadd.f32 %v3120, %v3128
        %v3137 = vadd.f32 %v3121, %v3129
        %v3138 = vadd.f32 %v3122, %v3130
        %v3139 = vmul.f32 %v2588, %v1244
        %v3140 = vmul.f32 %v2589, %v1244
        %v3141 = vmul.f32 %v2590, %v1244
        %v3142 = vmul.f32 %v2591, %v1244
        %v3143 = vmul.f32 %v2598, %v1248
        %v3144 = vmul.f32 %v2599, %v1248
        %v3145 = vmul.f32 %v2600, %v1248
        %v3146 = vmul.f32 %v2601, %v1248
        %v3147 = vadd.f32 %v3131, %v3139
        %v3148 = vadd.f32 %v3132, %v3140
        %v3149 = vadd.f32 %v3133, %v3141
        %v3150 = vadd.f32 %v3134, %v3142
        %v3151 = vadd.f32 %v3135, %v3143
        %v3152 = vadd.f32 %v3136, %v3144
        %v3153 = vadd.f32 %v3137, %v3145
        %v3154 = vadd.f32 %v3138, %v3146
        %v3155 = vmul.f32 %v2589, %v1268
        %v3156 = vmul.f32 %v2590, %v1268
        %v3157 = vmul.f32 %v2591, %v1268
        %v3158 = vmul.f32 %v2592, %v1268
        %v3159 = vmul.f32 %v2599, %v1272
        %v3160 = vmul.f32 %v2600, %v1272
        %v3161 = vmul.f32 %v2601, %v1272
        %v3162 = vmul.f32 %v2602, %v1272
        %v3163 = vadd.f32 %v3147, %v3155
        %v3164 = vadd.f32 %v3148, %v3156
        %v3165 = vadd.f32 %v3149, %v3157
        %v3166 = vadd.f32 %v3150, %v3158
        %v3167 = vadd.f32 %v3151, %v3159
        %v3168 = vadd.f32 %v3152, %v3160
        %v3169 = vadd.f32 %v3153, %v3161
        %v3170 = vadd.f32 %v3154, %v3162
        %v3171 = vmul.f32 %v2590, %v1292
        %v3172 = vmul.f32 %v2591, %v1292
        %v3173 = vmul.f32 %v2592, %v1292
        %v3174 = vmul.f32 %v2593, %v1292
        %v3175 = vmul.f32 %v2600, %v1296
        %v3176 = vmul.f32 %v2601, %v1296
        %v3177 = vmul.f32 %v2602, %v1296
        %v3178 = vmul.f32 %v2603, %v1296
        %v3179 = vadd.f32 %v3163, %v3171
        %v3180 = vadd.f32 %v3164, %v3172
        %v3181 = vadd.f32 %v3165, %v3173
        %v3182 = vadd.f32 %v3166, %v3174
        %v3183 = vadd.f32 %v3167, %v3175
        %v3184 = vadd.f32 %v3168, %v3176
        %v3185 = vadd.f32 %v3169, %v3177
        %v3186 = vadd.f32 %v3170, %v3178
        %v3187 = vmul.f32 %v2591, %v1316
        %v3188 = vmul.f32 %v2592, %v1316
        %v3189 = vmul.f32 %v2593, %v1316
        %v3190 = vmul.f32 %v2594, %v1316
        %v3191 = vmul.f32 %v2601, %v1320
        %v3192 = vmul.f32 %v2602, %v1320
        %v3193 = vmul.f32 %v2603, %v1320
        %v3194 = vmul.f32 %v2604, %v1320
        %v3195 = vadd.f32 %v3179, %v3187
        %v3196 = vadd.f32 %v3180, %v3188
        %v3197 = vadd.f32 %v3181, %v3189
        %v3198 = vadd.f32 %v3182, %v3190
        %v3199 = vadd.f32 %v3183, %v3191
        %v3200 = vadd.f32 %v3184, %v3192
        %v3201 = vadd.f32 %v3185, %v3193
        %v3202 = vadd.f32 %v3186, %v3194
        %v3203 = vmul.f32 %v2592, %v1340
        %v3204 = vmul.f32 %v2593, %v1340
        %v3205 = vmul.f32 %v2594, %v1340
        %v3206 = vmul.f32 %v2595, %v1340
        %v3207 = vmul.f32 %v2602, %v1344
        %v3208 = vmul.f32 %v2603, %v1344
        %v3209 = vmul.f32 %v2604, %v1344
        %v3210 = vmul.f32 %v2605, %v1344
        %v3211 = vadd.f32 %v3195, %v3203
        %v3212 = vadd.f32 %v3196, %v3204
        %v3213 = vadd.f32 %v3197, %v3205
        %v3214 = vadd.f32 %v3198, %v3206
        %v3215 = vadd.f32 %v3199, %v3207
        %v3216 = vadd.f32 %v3200, %v3208
        %v3217 = vadd.f32 %v3201, %v3209
        %v3218 = vadd.f32 %v3202, %v3210
        %v3219 = vmul.f32 %v2593, %v1364
        %v3220 = vmul.f32 %v2594, %v1364
        %v3221 = vmul.f32 %v2595, %v1364
        %v3222 = vmul.f32 %v2596, %v1364
        %v3223 = vmul.f32 %v2603, %v1368
        %v3224 = vmul.f32 %v2604, %v1368
        %v3225 = vmul.f32 %v2605, %v1368
        %v3226 = vmul.f32 %v2606, %v1368
        %v3227 = vadd.f32 %v3211, %v3219
        %v3228 = vadd.f32 %v3212, %v3220
        %v3229 = vadd.f32 %v3213, %v3221
        %v3230 = vadd.f32 %v3214, %v3222
        %v3231 = vadd.f32 %v3215, %v3223
        %v3232 = vadd.f32 %v3216, %v3224
        %v3233 = vadd.f32 %v3217, %v3225
        %v3234 = vadd.f32 %v3218, %v3226
        %3235 = vrot.lane.b32.xlu0 %v2587, 127
        %v3236 = vpop.permute.xlu0 %3235
        %3237 = vrot.lane.b32.xlu0 %v2597, 127
        %v3238 = vpop.permute.xlu0 %3237
        %3239 = vrot.lane.b32.xlu0 %v2588, 127
        %v3240 = vpop.permute.xlu0 %3239
        %3241 = vrot.lane.b32.xlu0 %v2598, 127
        %v3242 = vpop.permute.xlu0 %3241
        %3243 = vrot.lane.b32.xlu0 %v2589, 127
        %v3244 = vpop.permute.xlu0 %3243
        %3245 = vrot.lane.b32.xlu0 %v2599, 127
        %v3246 = vpop.permute.xlu0 %3245
        %3247 = vrot.lane.b32.xlu0 %v2590, 127
        %v3248 = vpop.permute.xlu0 %3247
        %3249 = vrot.lane.b32.xlu0 %v2600, 127
        %v3250 = vpop.permute.xlu0 %3249
        %3251 = vrot.lane.b32.xlu0 %v2591, 127
        %v3252 = vpop.permute.xlu0 %3251
        %3253 = vrot.lane.b32.xlu0 %v2601, 127
        %v3254 = vpop.permute.xlu0 %3253
        %3255 = vrot.lane.b32.xlu0 %v2592, 127
        %v3256 = vpop.permute.xlu0 %3255
        %3257 = vrot.lane.b32.xlu0 %v2602, 127
        %v3258 = vpop.permute.xlu0 %3257
        %3259 = vrot.lane.b32.xlu0 %v2593, 127
        %v3260 = vpop.permute.xlu0 %3259
        %3261 = vrot.lane.b32.xlu0 %v2603, 127
        %v3262 = vpop.permute.xlu0 %3261
        %3263 = vrot.lane.b32.xlu0 %v2594, 127
        %v3264 = vpop.permute.xlu0 %3263
        %3265 = vrot.lane.b32.xlu0 %v2604, 127
        %v3266 = vpop.permute.xlu0 %3265
        %3267 = vrot.lane.b32.xlu0 %v2595, 127
        %v3268 = vpop.permute.xlu0 %3267
        %3269 = vrot.lane.b32.xlu0 %v2605, 127
        %v3270 = vpop.permute.xlu0 %3269
        %3271 = vrot.lane.b32.xlu0 %v2596, 127
        %v3272 = vpop.permute.xlu0 %3271
        %3273 = vrot.lane.b32.xlu0 %v2606, 127
        %v3274 = vpop.permute.xlu0 %3273
        %v3275 = vsel %vm1426, %v3268, %v3272
        %v3276 = vsel %vm1426, %v3270, %v3274
        %v3277 = vsel %vm1426, %v3264, %v3268
        %v3278 = vsel %vm1426, %v3266, %v3270
        %v3279 = vsel %vm1426, %v3260, %v3264
        %v3280 = vsel %vm1426, %v3262, %v3266
        %v3281 = vsel %vm1426, %v3256, %v3260
        %v3282 = vsel %vm1426, %v3258, %v3262
        %v3283 = vsel %vm1426, %v3252, %v3256
        %v3284 = vsel %vm1426, %v3254, %v3258
        %v3285 = vsel %vm1426, %v3248, %v3252
        %v3286 = vsel %vm1426, %v3250, %v3254
        %v3287 = vsel %vm1426, %v3244, %v3248
        %v3288 = vsel %vm1426, %v3246, %v3250
        %v3289 = vsel %vm1426, %v3240, %v3244
        %v3290 = vsel %vm1426, %v3242, %v3246
        %v3291 = vsel %vm1426, %v3236, %v3240
        %v3292 = vsel %vm1426, %v3238, %v3242
        %v3293 = vsel %vm1426, %v3272, %v3236
        %v3294 = vsel %vm1426, %v3274, %v3238
        %v3295 = vmul.f32 %v3291, %v1449
        %v3296 = vmul.f32 %v3289, %v1449
        %v3297 = vmul.f32 %v3287, %v1449
        %v3298 = vmul.f32 %v3285, %v1449
        %v3299 = vmul.f32 %v3292, %v1453
        %v3300 = vmul.f32 %v3290, %v1453
        %v3301 = vmul.f32 %v3288, %v1453
        %v3302 = vmul.f32 %v3286, %v1453
        %v3303 = vadd.f32 %v3227, %v3295
        %v3304 = vadd.f32 %v3228, %v3296
        %v3305 = vadd.f32 %v3229, %v3297
        %v3306 = vadd.f32 %v3230, %v3298
        %v3307 = vadd.f32 %v3231, %v3299
        %v3308 = vadd.f32 %v3232, %v3300
        %v3309 = vadd.f32 %v3233, %v3301
        %v3310 = vadd.f32 %v3234, %v3302
        %v3311 = vmul.f32 %v3289, %v1473
        %v3312 = vmul.f32 %v3287, %v1473
        %v3313 = vmul.f32 %v3285, %v1473
        %v3314 = vmul.f32 %v3283, %v1473
        %v3315 = vmul.f32 %v3290, %v1477
        %v3316 = vmul.f32 %v3288, %v1477
        %v3317 = vmul.f32 %v3286, %v1477
        %v3318 = vmul.f32 %v3284, %v1477
        %v3319 = vadd.f32 %v3303, %v3311
        %v3320 = vadd.f32 %v3304, %v3312
        %v3321 = vadd.f32 %v3305, %v3313
        %v3322 = vadd.f32 %v3306, %v3314
        %v3323 = vadd.f32 %v3307, %v3315
        %v3324 = vadd.f32 %v3308, %v3316
        %v3325 = vadd.f32 %v3309, %v3317
        %v3326 = vadd.f32 %v3310, %v3318
        %v3327 = vmul.f32 %v3287, %v1497
        %v3328 = vmul.f32 %v3285, %v1497
        %v3329 = vmul.f32 %v3283, %v1497
        %v3330 = vmul.f32 %v3281, %v1497
        %v3331 = vmul.f32 %v3288, %v1501
        %v3332 = vmul.f32 %v3286, %v1501
        %v3333 = vmul.f32 %v3284, %v1501
        %v3334 = vmul.f32 %v3282, %v1501
        %v3335 = vadd.f32 %v3319, %v3327
        %v3336 = vadd.f32 %v3320, %v3328
        %v3337 = vadd.f32 %v3321, %v3329
        %v3338 = vadd.f32 %v3322, %v3330
        %v3339 = vadd.f32 %v3323, %v3331
        %v3340 = vadd.f32 %v3324, %v3332
        %v3341 = vadd.f32 %v3325, %v3333
        %v3342 = vadd.f32 %v3326, %v3334
        %v3343 = vmul.f32 %v3285, %v1521
        %v3344 = vmul.f32 %v3283, %v1521
        %v3345 = vmul.f32 %v3281, %v1521
        %v3346 = vmul.f32 %v3279, %v1521
        %v3347 = vmul.f32 %v3286, %v1525
        %v3348 = vmul.f32 %v3284, %v1525
        %v3349 = vmul.f32 %v3282, %v1525
        %v3350 = vmul.f32 %v3280, %v1525
        %v3351 = vadd.f32 %v3335, %v3343
        %v3352 = vadd.f32 %v3336, %v3344
        %v3353 = vadd.f32 %v3337, %v3345
        %v3354 = vadd.f32 %v3338, %v3346
        %v3355 = vadd.f32 %v3339, %v3347
        %v3356 = vadd.f32 %v3340, %v3348
        %v3357 = vadd.f32 %v3341, %v3349
        %v3358 = vadd.f32 %v3342, %v3350
        %v3359 = vmul.f32 %v3283, %v1545
        %v3360 = vmul.f32 %v3281, %v1545
        %v3361 = vmul.f32 %v3279, %v1545
        %v3362 = vmul.f32 %v3277, %v1545
        %v3363 = vmul.f32 %v3284, %v1549
        %v3364 = vmul.f32 %v3282, %v1549
        %v3365 = vmul.f32 %v3280, %v1549
        %v3366 = vmul.f32 %v3278, %v1549
        %v3367 = vadd.f32 %v3351, %v3359
        %v3368 = vadd.f32 %v3352, %v3360
        %v3369 = vadd.f32 %v3353, %v3361
        %v3370 = vadd.f32 %v3354, %v3362
        %v3371 = vadd.f32 %v3355, %v3363
        %v3372 = vadd.f32 %v3356, %v3364
        %v3373 = vadd.f32 %v3357, %v3365
        %v3374 = vadd.f32 %v3358, %v3366
        %v3375 = vmul.f32 %v3281, %v1569
        %v3376 = vmul.f32 %v3279, %v1569
        %v3377 = vmul.f32 %v3277, %v1569
        %v3378 = vmul.f32 %v3275, %v1569
        %v3379 = vmul.f32 %v3282, %v1573
        %v3380 = vmul.f32 %v3280, %v1573
        %v3381 = vmul.f32 %v3278, %v1573
        %v3382 = vmul.f32 %v3276, %v1573
        %v3383 = vadd.f32 %v3367, %v3375
        %v3384 = vadd.f32 %v3368, %v3376
        %v3385 = vadd.f32 %v3369, %v3377
        %v3386 = vadd.f32 %v3370, %v3378
        %v3387 = vadd.f32 %v3371, %v3379
        %v3388 = vadd.f32 %v3372, %v3380
        %v3389 = vadd.f32 %v3373, %v3381
        %v3390 = vadd.f32 %v3374, %v3382
        %v3391 = vmul.f32 %v3279, %v1593
        %v3392 = vmul.f32 %v3277, %v1593
        %v3393 = vmul.f32 %v3275, %v1593
        %v3394 = vmul.f32 %v3293, %v1593
        %v3395 = vmul.f32 %v3280, %v1597
        %v3396 = vmul.f32 %v3278, %v1597
        %v3397 = vmul.f32 %v3276, %v1597
        %v3398 = vmul.f32 %v3294, %v1597
        %v3399 = vadd.f32 %v3383, %v3391
        %v3400 = vadd.f32 %v3384, %v3392
        %v3401 = vadd.f32 %v3385, %v3393
        %v3402 = vadd.f32 %v3386, %v3394
        %v3403 = vadd.f32 %v3387, %v3395
        %v3404 = vadd.f32 %v3388, %v3396
        %v3405 = vadd.f32 %v3389, %v3397
        %v3406 = vadd.f32 %v3390, %v3398
        %3407 = vrot.lane.b32.xlu0 %v2587, 126
        %v3408 = vpop.permute.xlu0 %3407
        %3409 = vrot.lane.b32.xlu0 %v2597, 126
        %v3410 = vpop.permute.xlu0 %3409
        %3411 = vrot.lane.b32.xlu0 %v2588, 126
        %v3412 = vpop.permute.xlu0 %3411
        %3413 = vrot.lane.b32.xlu0 %v2598, 126
        %v3414 = vpop.permute.xlu0 %3413
        %3415 = vrot.lane.b32.xlu0 %v2589, 126
        %v3416 = vpop.permute.xlu0 %3415
        %3417 = vrot.lane.b32.xlu0 %v2599, 126
        %v3418 = vpop.permute.xlu0 %3417
        %3419 = vrot.lane.b32.xlu0 %v2590, 126
        %v3420 = vpop.permute.xlu0 %3419
        %3421 = vrot.lane.b32.xlu0 %v2600, 126
        %v3422 = vpop.permute.xlu0 %3421
        %3423 = vrot.lane.b32.xlu0 %v2591, 126
        %v3424 = vpop.permute.xlu0 %3423
        %3425 = vrot.lane.b32.xlu0 %v2601, 126
        %v3426 = vpop.permute.xlu0 %3425
        %3427 = vrot.lane.b32.xlu0 %v2592, 126
        %v3428 = vpop.permute.xlu0 %3427
        %3429 = vrot.lane.b32.xlu0 %v2602, 126
        %v3430 = vpop.permute.xlu0 %3429
        %3431 = vrot.lane.b32.xlu0 %v2593, 126
        %v3432 = vpop.permute.xlu0 %3431
        %3433 = vrot.lane.b32.xlu0 %v2603, 126
        %v3434 = vpop.permute.xlu0 %3433
        %3435 = vrot.lane.b32.xlu0 %v2594, 126
        %v3436 = vpop.permute.xlu0 %3435
        %3437 = vrot.lane.b32.xlu0 %v2604, 126
        %v3438 = vpop.permute.xlu0 %3437
        %3439 = vrot.lane.b32.xlu0 %v2595, 126
        %v3440 = vpop.permute.xlu0 %3439
        %3441 = vrot.lane.b32.xlu0 %v2605, 126
        %v3442 = vpop.permute.xlu0 %3441
        %3443 = vrot.lane.b32.xlu0 %v2596, 126
        %v3444 = vpop.permute.xlu0 %3443
        %3445 = vrot.lane.b32.xlu0 %v2606, 126
        %v3446 = vpop.permute.xlu0 %3445
        %v3447 = vsel %vm1655, %v3440, %v3444
        %v3448 = vsel %vm1655, %v3442, %v3446
        %v3449 = vsel %vm1655, %v3436, %v3440
        %v3450 = vsel %vm1655, %v3438, %v3442
        %v3451 = vsel %vm1655, %v3432, %v3436
        %v3452 = vsel %vm1655, %v3434, %v3438
        %v3453 = vsel %vm1655, %v3428, %v3432
        %v3454 = vsel %vm1655, %v3430, %v3434
        %v3455 = vsel %vm1655, %v3424, %v3428
        %v3456 = vsel %vm1655, %v3426, %v3430
        %v3457 = vsel %vm1655, %v3420, %v3424
        %v3458 = vsel %vm1655, %v3422, %v3426
        %v3459 = vsel %vm1655, %v3416, %v3420
        %v3460 = vsel %vm1655, %v3418, %v3422
        %v3461 = vsel %vm1655, %v3412, %v3416
        %v3462 = vsel %vm1655, %v3414, %v3418
        %v3463 = vsel %vm1655, %v3408, %v3412
        %v3464 = vsel %vm1655, %v3410, %v3414
        %v3465 = vsel %vm1655, %v3444, %v3408
        %v3466 = vsel %vm1655, %v3446, %v3410
        %v3467 = vmul.f32 %v3463, %v1678
        %v3468 = vmul.f32 %v3461, %v1678
        %v3469 = vmul.f32 %v3459, %v1678
        %v3470 = vmul.f32 %v3457, %v1678
        %v3471 = vmul.f32 %v3464, %v1682
        %v3472 = vmul.f32 %v3462, %v1682
        %v3473 = vmul.f32 %v3460, %v1682
        %v3474 = vmul.f32 %v3458, %v1682
        %v3475 = vadd.f32 %v3399, %v3467
        %v3476 = vadd.f32 %v3400, %v3468
        %v3477 = vadd.f32 %v3401, %v3469
        %v3478 = vadd.f32 %v3402, %v3470
        %v3479 = vadd.f32 %v3403, %v3471
        %v3480 = vadd.f32 %v3404, %v3472
        %v3481 = vadd.f32 %v3405, %v3473
        %v3482 = vadd.f32 %v3406, %v3474
        %v3483 = vmul.f32 %v3461, %v1702
        %v3484 = vmul.f32 %v3459, %v1702
        %v3485 = vmul.f32 %v3457, %v1702
        %v3486 = vmul.f32 %v3455, %v1702
        %v3487 = vmul.f32 %v3462, %v1706
        %v3488 = vmul.f32 %v3460, %v1706
        %v3489 = vmul.f32 %v3458, %v1706
        %v3490 = vmul.f32 %v3456, %v1706
        %v3491 = vadd.f32 %v3475, %v3483
        %v3492 = vadd.f32 %v3476, %v3484
        %v3493 = vadd.f32 %v3477, %v3485
        %v3494 = vadd.f32 %v3478, %v3486
        %v3495 = vadd.f32 %v3479, %v3487
        %v3496 = vadd.f32 %v3480, %v3488
        %v3497 = vadd.f32 %v3481, %v3489
        %v3498 = vadd.f32 %v3482, %v3490
        %v3499 = vmul.f32 %v3459, %v1726
        %v3500 = vmul.f32 %v3457, %v1726
        %v3501 = vmul.f32 %v3455, %v1726
        %v3502 = vmul.f32 %v3453, %v1726
        %v3503 = vmul.f32 %v3460, %v1730
        %v3504 = vmul.f32 %v3458, %v1730
        %v3505 = vmul.f32 %v3456, %v1730
        %v3506 = vmul.f32 %v3454, %v1730
        %v3507 = vadd.f32 %v3491, %v3499
        %v3508 = vadd.f32 %v3492, %v3500
        %v3509 = vadd.f32 %v3493, %v3501
        %v3510 = vadd.f32 %v3494, %v3502
        %v3511 = vadd.f32 %v3495, %v3503
        %v3512 = vadd.f32 %v3496, %v3504
        %v3513 = vadd.f32 %v3497, %v3505
        %v3514 = vadd.f32 %v3498, %v3506
        %v3515 = vmul.f32 %v3457, %v1750
        %v3516 = vmul.f32 %v3455, %v1750
        %v3517 = vmul.f32 %v3453, %v1750
        %v3518 = vmul.f32 %v3451, %v1750
        %v3519 = vmul.f32 %v3458, %v1754
        %v3520 = vmul.f32 %v3456, %v1754
        %v3521 = vmul.f32 %v3454, %v1754
        %v3522 = vmul.f32 %v3452, %v1754
        %v3523 = vadd.f32 %v3507, %v3515
        %v3524 = vadd.f32 %v3508, %v3516
        %v3525 = vadd.f32 %v3509, %v3517
        %v3526 = vadd.f32 %v3510, %v3518
        %v3527 = vadd.f32 %v3511, %v3519
        %v3528 = vadd.f32 %v3512, %v3520
        %v3529 = vadd.f32 %v3513, %v3521
        %v3530 = vadd.f32 %v3514, %v3522
        %v3531 = vmul.f32 %v3455, %v1774
        %v3532 = vmul.f32 %v3453, %v1774
        %v3533 = vmul.f32 %v3451, %v1774
        %v3534 = vmul.f32 %v3449, %v1774
        %v3535 = vmul.f32 %v3456, %v1778
        %v3536 = vmul.f32 %v3454, %v1778
        %v3537 = vmul.f32 %v3452, %v1778
        %v3538 = vmul.f32 %v3450, %v1778
        %v3539 = vadd.f32 %v3523, %v3531
        %v3540 = vadd.f32 %v3524, %v3532
        %v3541 = vadd.f32 %v3525, %v3533
        %v3542 = vadd.f32 %v3526, %v3534
        %v3543 = vadd.f32 %v3527, %v3535
        %v3544 = vadd.f32 %v3528, %v3536
        %v3545 = vadd.f32 %v3529, %v3537
        %v3546 = vadd.f32 %v3530, %v3538
        %v3547 = vmul.f32 %v3453, %v1798
        %v3548 = vmul.f32 %v3451, %v1798
        %v3549 = vmul.f32 %v3449, %v1798
        %v3550 = vmul.f32 %v3447, %v1798
        %v3551 = vmul.f32 %v3454, %v1802
        %v3552 = vmul.f32 %v3452, %v1802
        %v3553 = vmul.f32 %v3450, %v1802
        %v3554 = vmul.f32 %v3448, %v1802
        %v3555 = vadd.f32 %v3539, %v3547
        %v3556 = vadd.f32 %v3540, %v3548
        %v3557 = vadd.f32 %v3541, %v3549
        %v3558 = vadd.f32 %v3542, %v3550
        %v3559 = vadd.f32 %v3543, %v3551
        %v3560 = vadd.f32 %v3544, %v3552
        %v3561 = vadd.f32 %v3545, %v3553
        %v3562 = vadd.f32 %v3546, %v3554
        %v3563 = vmul.f32 %v3451, %v1822
        %v3564 = vmul.f32 %v3449, %v1822
        %v3565 = vmul.f32 %v3447, %v1822
        %v3566 = vmul.f32 %v3465, %v1822
        %v3567 = vmul.f32 %v3452, %v1826
        %v3568 = vmul.f32 %v3450, %v1826
        %v3569 = vmul.f32 %v3448, %v1826
        %v3570 = vmul.f32 %v3466, %v1826
        %v3571 = vadd.f32 %v3555, %v3563
        %v3572 = vadd.f32 %v3556, %v3564
        %v3573 = vadd.f32 %v3557, %v3565
        %v3574 = vadd.f32 %v3558, %v3566
        %v3575 = vadd.f32 %v3559, %v3567
        %v3576 = vadd.f32 %v3560, %v3568
        %v3577 = vadd.f32 %v3561, %v3569
        %v3578 = vadd.f32 %v3562, %v3570
        %3579 = vrot.lane.b32.xlu0 %v2587, 125
        %v3580 = vpop.permute.xlu0 %3579
        %3581 = vrot.lane.b32.xlu0 %v2597, 125
        %v3582 = vpop.permute.xlu0 %3581
        %3583 = vrot.lane.b32.xlu0 %v2588, 125
        %v3584 = vpop.permute.xlu0 %3583
        %3585 = vrot.lane.b32.xlu0 %v2598, 125
        %v3586 = vpop.permute.xlu0 %3585
        %3587 = vrot.lane.b32.xlu0 %v2589, 125
        %v3588 = vpop.permute.xlu0 %3587
        %3589 = vrot.lane.b32.xlu0 %v2599, 125
        %v3590 = vpop.permute.xlu0 %3589
        %3591 = vrot.lane.b32.xlu0 %v2590, 125
        %v3592 = vpop.permute.xlu0 %3591
        %3593 = vrot.lane.b32.xlu0 %v2600, 125
        %v3594 = vpop.permute.xlu0 %3593
        %3595 = vrot.lane.b32.xlu0 %v2591, 125
        %v3596 = vpop.permute.xlu0 %3595
        %3597 = vrot.lane.b32.xlu0 %v2601, 125
        %v3598 = vpop.permute.xlu0 %3597
        %3599 = vrot.lane.b32.xlu0 %v2592, 125
        %v3600 = vpop.permute.xlu0 %3599
        %3601 = vrot.lane.b32.xlu0 %v2602, 125
        %v3602 = vpop.permute.xlu0 %3601
        %3603 = vrot.lane.b32.xlu0 %v2593, 125
        %v3604 = vpop.permute.xlu0 %3603
        %3605 = vrot.lane.b32.xlu0 %v2603, 125
        %v3606 = vpop.permute.xlu0 %3605
        %3607 = vrot.lane.b32.xlu0 %v2594, 125
        %v3608 = vpop.permute.xlu0 %3607
        %3609 = vrot.lane.b32.xlu0 %v2604, 125
        %v3610 = vpop.permute.xlu0 %3609
        %3611 = vrot.lane.b32.xlu0 %v2595, 125
        %v3612 = vpop.permute.xlu0 %3611
        %3613 = vrot.lane.b32.xlu0 %v2605, 125
        %v3614 = vpop.permute.xlu0 %3613
        %3615 = vrot.lane.b32.xlu0 %v2596, 125
        %v3616 = vpop.permute.xlu0 %3615
        %3617 = vrot.lane.b32.xlu0 %v2606, 125
        %v3618 = vpop.permute.xlu0 %3617
        %v3619 = vsel %vm1884, %v3612, %v3616
        %v3620 = vsel %vm1884, %v3614, %v3618
        %v3621 = vsel %vm1884, %v3608, %v3612
        %v3622 = vsel %vm1884, %v3610, %v3614
        %v3623 = vsel %vm1884, %v3604, %v3608
        %v3624 = vsel %vm1884, %v3606, %v3610
        %v3625 = vsel %vm1884, %v3600, %v3604
        %v3626 = vsel %vm1884, %v3602, %v3606
        %v3627 = vsel %vm1884, %v3596, %v3600
        %v3628 = vsel %vm1884, %v3598, %v3602
        %v3629 = vsel %vm1884, %v3592, %v3596
        %v3630 = vsel %vm1884, %v3594, %v3598
        %v3631 = vsel %vm1884, %v3588, %v3592
        %v3632 = vsel %vm1884, %v3590, %v3594
        %v3633 = vsel %vm1884, %v3584, %v3588
        %v3634 = vsel %vm1884, %v3586, %v3590
        %v3635 = vsel %vm1884, %v3580, %v3584
        %v3636 = vsel %vm1884, %v3582, %v3586
        %v3637 = vsel %vm1884, %v3616, %v3580
        %v3638 = vsel %vm1884, %v3618, %v3582
        %v3639 = vmul.f32 %v3635, %v1907
        %v3640 = vmul.f32 %v3633, %v1907
        %v3641 = vmul.f32 %v3631, %v1907
        %v3642 = vmul.f32 %v3629, %v1907
        %v3643 = vmul.f32 %v3636, %v1911
        %v3644 = vmul.f32 %v3634, %v1911
        %v3645 = vmul.f32 %v3632, %v1911
        %v3646 = vmul.f32 %v3630, %v1911
        %v3647 = vadd.f32 %v3571, %v3639
        %v3648 = vadd.f32 %v3572, %v3640
        %v3649 = vadd.f32 %v3573, %v3641
        %v3650 = vadd.f32 %v3574, %v3642
        %v3651 = vadd.f32 %v3575, %v3643
        %v3652 = vadd.f32 %v3576, %v3644
        %v3653 = vadd.f32 %v3577, %v3645
        %v3654 = vadd.f32 %v3578, %v3646
        %v3655 = vmul.f32 %v3633, %v1931
        %v3656 = vmul.f32 %v3631, %v1931
        %v3657 = vmul.f32 %v3629, %v1931
        %v3658 = vmul.f32 %v3627, %v1931
        %v3659 = vmul.f32 %v3634, %v1935
        %v3660 = vmul.f32 %v3632, %v1935
        %v3661 = vmul.f32 %v3630, %v1935
        %v3662 = vmul.f32 %v3628, %v1935
        %v3663 = vadd.f32 %v3647, %v3655
        %v3664 = vadd.f32 %v3648, %v3656
        %v3665 = vadd.f32 %v3649, %v3657
        %v3666 = vadd.f32 %v3650, %v3658
        %v3667 = vadd.f32 %v3651, %v3659
        %v3668 = vadd.f32 %v3652, %v3660
        %v3669 = vadd.f32 %v3653, %v3661
        %v3670 = vadd.f32 %v3654, %v3662
        %v3671 = vmul.f32 %v3631, %v1955
        %v3672 = vmul.f32 %v3629, %v1955
        %v3673 = vmul.f32 %v3627, %v1955
        %v3674 = vmul.f32 %v3625, %v1955
        %v3675 = vmul.f32 %v3632, %v1959
        %v3676 = vmul.f32 %v3630, %v1959
        %v3677 = vmul.f32 %v3628, %v1959
        %v3678 = vmul.f32 %v3626, %v1959
        %v3679 = vadd.f32 %v3663, %v3671
        %v3680 = vadd.f32 %v3664, %v3672
        %v3681 = vadd.f32 %v3665, %v3673
        %v3682 = vadd.f32 %v3666, %v3674
        %v3683 = vadd.f32 %v3667, %v3675
        %v3684 = vadd.f32 %v3668, %v3676
        %v3685 = vadd.f32 %v3669, %v3677
        %v3686 = vadd.f32 %v3670, %v3678
        %v3687 = vmul.f32 %v3629, %v1979
        %v3688 = vmul.f32 %v3627, %v1979
        %v3689 = vmul.f32 %v3625, %v1979
        %v3690 = vmul.f32 %v3623, %v1979
        %v3691 = vmul.f32 %v3630, %v1983
        %v3692 = vmul.f32 %v3628, %v1983
        %v3693 = vmul.f32 %v3626, %v1983
        %v3694 = vmul.f32 %v3624, %v1983
        %v3695 = vadd.f32 %v3679, %v3687
        %v3696 = vadd.f32 %v3680, %v3688
        %v3697 = vadd.f32 %v3681, %v3689
        %v3698 = vadd.f32 %v3682, %v3690
        %v3699 = vadd.f32 %v3683, %v3691
        %v3700 = vadd.f32 %v3684, %v3692
        %v3701 = vadd.f32 %v3685, %v3693
        %v3702 = vadd.f32 %v3686, %v3694
        %v3703 = vmul.f32 %v3627, %v2003
        %v3704 = vmul.f32 %v3625, %v2003
        %v3705 = vmul.f32 %v3623, %v2003
        %v3706 = vmul.f32 %v3621, %v2003
        %v3707 = vmul.f32 %v3628, %v2007
        %v3708 = vmul.f32 %v3626, %v2007
        %v3709 = vmul.f32 %v3624, %v2007
        %v3710 = vmul.f32 %v3622, %v2007
        %v3711 = vadd.f32 %v3695, %v3703
        %v3712 = vadd.f32 %v3696, %v3704
        %v3713 = vadd.f32 %v3697, %v3705
        %v3714 = vadd.f32 %v3698, %v3706
        %v3715 = vadd.f32 %v3699, %v3707
        %v3716 = vadd.f32 %v3700, %v3708
        %v3717 = vadd.f32 %v3701, %v3709
        %v3718 = vadd.f32 %v3702, %v3710
        %v3719 = vmul.f32 %v3625, %v2027
        %v3720 = vmul.f32 %v3623, %v2027
        %v3721 = vmul.f32 %v3621, %v2027
        %v3722 = vmul.f32 %v3619, %v2027
        %v3723 = vmul.f32 %v3626, %v2031
        %v3724 = vmul.f32 %v3624, %v2031
        %v3725 = vmul.f32 %v3622, %v2031
        %v3726 = vmul.f32 %v3620, %v2031
        %v3727 = vadd.f32 %v3711, %v3719
        %v3728 = vadd.f32 %v3712, %v3720
        %v3729 = vadd.f32 %v3713, %v3721
        %v3730 = vadd.f32 %v3714, %v3722
        %v3731 = vadd.f32 %v3715, %v3723
        %v3732 = vadd.f32 %v3716, %v3724
        %v3733 = vadd.f32 %v3717, %v3725
        %v3734 = vadd.f32 %v3718, %v3726
        %v3735 = vmul.f32 %v3623, %v2051
        %v3736 = vmul.f32 %v3621, %v2051
        %v3737 = vmul.f32 %v3619, %v2051
        %v3738 = vmul.f32 %v3637, %v2051
        %v3739 = vmul.f32 %v3624, %v2055
        %v3740 = vmul.f32 %v3622, %v2055
        %v3741 = vmul.f32 %v3620, %v2055
        %v3742 = vmul.f32 %v3638, %v2055
        %v3743 = vadd.f32 %v3727, %v3735
        %v3744 = vadd.f32 %v3728, %v3736
        %v3745 = vadd.f32 %v3729, %v3737
        %v3746 = vadd.f32 %v3730, %v3738
        %v3747 = vadd.f32 %v3731, %v3739
        %v3748 = vadd.f32 %v3732, %v3740
        %v3749 = vadd.f32 %v3733, %v3741
        %v3750 = vadd.f32 %v3734, %v3742
        %v3751 = vadd.f32 %v3743, %v2076
        %v3752 = vadd.f32 %v3744, %v2076
        %v3753 = vadd.f32 %v3745, %v2076
        %v3754 = vadd.f32 %v3746, %v2076
        %v3755 = vadd.f32 %v3747, %v2081
        %v3756 = vadd.f32 %v3748, %v2081
        %v3757 = vadd.f32 %v3749, %v2081
        %v3758 = vadd.f32 %v3750, %v2081
        %vm3759 = vcmp.ge.f32.partialorder %v3751, 0.0
        %vm3760 = vcmp.ge.f32.partialorder %v3752, 0.0
        %vm3761 = vcmp.ge.f32.partialorder %v3753, 0.0
        %vm3762 = vcmp.ge.f32.partialorder %v3754, 0.0
        %vm3763 = vcmp.ge.f32.partialorder %v3755, 0.0
        %vm3764 = vcmp.ge.f32.partialorder %v3756, 0.0
        %vm3765 = vcmp.ge.f32.partialorder %v3757, 0.0
        %vm3766 = vcmp.ge.f32.partialorder %v3758, 0.0
        %v3767 = vmul.f32 %v3751, 0.05
        %v3768 = vmul.f32 %v3752, 0.05
        %v3769 = vmul.f32 %v3753, 0.05
        %v3770 = vmul.f32 %v3754, 0.05
        %v3771 = vmul.f32 %v3755, 0.05
        %v3772 = vmul.f32 %v3756, 0.05
        %v3773 = vmul.f32 %v3757, 0.05
        %v3774 = vmul.f32 %v3758, 0.05
        %v3775 = vsel %vm3759, %v3751, %v3767
        %v3776 = vsel %vm3760, %v3752, %v3768
        %v3777 = vsel %vm3761, %v3753, %v3769
        %v3778 = vsel %vm3762, %v3754, %v3770
        %v3779 = vsel %vm3763, %v3755, %v3771
        %v3780 = vsel %vm3764, %v3756, %v3772
        %v3781 = vsel %vm3765, %v3757, %v3773
        %v3782 = vsel %vm3766, %v3758, %v3774
        %v3783 = vpack.c.bf16 %v3779, %v3775
        %v3784 = vpack.c.bf16 %v3780, %v3776
        %v3785 = vpack.c.bf16 %v3781, %v3777
        %v3786 = vpack.c.bf16 %v3782, %v3778
        %3787 = vmatprep.subr.bf16.mxu0 %v3784
        %3788 = vmatpush1.bf16.msra.mxu0 %v3783
        %3789 = vmatprep.subr.bf16.mxu0 0
        %3790 = vmatpush1.bf16.msra.mxu0 0
        %3791 = vmatprep.subr.bf16.mxu0 0
        %3792 = vmatpush1.bf16.msra.mxu0 0
        %3793 = vmatprep.subr.bf16.mxu0 0
        %3794 = vmatpush1.bf16.msra.mxu0 0
        %3795 = vmatprep.subr.bf16.mxu0 0
        %3796 = vmatpush1.bf16.msra.mxu0 0
        %3797 = vmatprep.subr.bf16.mxu0 0
        %3798 = vmatpush1.bf16.msra.mxu0 0
        %3799 = vmatprep.subr.bf16.mxu0 0
        %3800 = vmatpush1.bf16.msra.mxu0 0
        %3801 = vmatprep.subr.bf16.mxu0 0
        %3802 = vmatpush1.bf16.msra.mxu0 0
        %3803 = vmatprep.subr.bf16.mxu0 0
        %3804 = vmatpush1.bf16.msra.mxu0 0
        %3805 = vmatprep.subr.bf16.mxu0 0
        %3806 = vmatpush1.bf16.msra.mxu0 0
        %3807 = vmatprep.subr.bf16.mxu0 0
        %3808 = vmatpush1.bf16.msra.mxu0 0
        %3809 = vmatprep.subr.bf16.mxu0 0
        %3810 = vmatpush1.bf16.msra.mxu0 0
        %3811 = vmatprep.subr.bf16.mxu0 0
        %3812 = vmatpush1.bf16.msra.mxu0 0
        %3813 = vmatprep.subr.bf16.mxu0 0
        %3814 = vmatpush1.bf16.msra.mxu0 0
        %3815 = vmatprep.subr.bf16.mxu0 0
        %3816 = vmatpush1.bf16.msra.mxu0 0
        %3817 = vmatprep.subr.bf16.mxu0 0
        %3818 = vmatpush1.bf16.msra.mxu0 0
        %3819 = vmatprep.mubr.bf16.mxu0 0
        %3820 = vmatmul.mubr.bf16.gmra.mrb[0].mxu0 %v2181
        %v3821 = vpop.f32.mrb[0].mxu0
        %v3822 = vadd.f32 %v2122, %v3821
        %v3823 = vpop.f32.mrb[0].mxu0
        %v3824 = vadd.f32 %v2122, %v3823
        %v3825 = vpop.f32.mrb[0].mxu0
        %v3826 = vadd.f32 %v2127, %v3825
        %v3827 = vpop.f32.mrb[0].mxu0
        %v3828 = vadd.f32 %v2127, %v3827
        %3829 = vmatprep.mubr.bf16.mxu0 0
        %3830 = vmatmul.mubr.bf16.gmra.mrb[0].mxu0 %v2184
        %v3831 = vpop.f32.mrb[0].mxu0
        %v3832 = vadd.f32 %v2132, %v3831
        %v3833 = vpop.f32.mrb[0].mxu0
        %v3834 = vadd.f32 %v2132, %v3833
        %v3835 = vpop.f32.mrb[0].mxu0
        %v3836 = vadd.f32 %v2137, %v3835
        %v3837 = vpop.f32.mrb[0].mxu0
        %v3838 = vadd.f32 %v2137, %v3837
        %3839 = vmatprep.mubr.bf16.mxu0 0
        %3840 = vmatmul.mubr.bf16.gmra.mrb[0].mxu0 %v2187
        %v3841 = vpop.f32.mrb[0].mxu0
        %v3842 = vadd.f32 %v2142, %v3841
        %v3843 = vpop.f32.mrb[0].mxu0
        %v3844 = vadd.f32 %v2142, %v3843
        %v3845 = vpop.f32.mrb[0].mxu0
        %v3846 = vadd.f32 %v2147, %v3845
        %v3847 = vpop.f32.mrb[0].mxu0
        %v3848 = vadd.f32 %v2147, %v3847
        %3849 = vmatprep.mubr.bf16.mxu0 0
        %3850 = vmatmul.mubr.bf16.gmra.mrb[0].mxu0 %v2190
        %v3851 = vpop.f32.mrb[0].mxu0
        %v3852 = vadd.f32 %v2152, %v3851
        %v3853 = vpop.f32.mrb[0].mxu0
        %v3854 = vadd.f32 %v2152, %v3853
        %v3855 = vpop.f32.mrb[0].mxu0
        %v3856 = vadd.f32 %v2157, %v3855
        %v3857 = vpop.f32.mrb[0].mxu0
        %v3858 = vadd.f32 %v2157, %v3857
        %3859 = vdwg.mxu0
        %3860 = vmatprep.subr.bf16.mxu0 %v3786
        %3861 = vmatpush1.bf16.msra.mxu0 %v3785
        %3862 = vmatprep.subr.bf16.mxu0 0
        %3863 = vmatpush1.bf16.msra.mxu0 0
        %3864 = vmatprep.subr.bf16.mxu0 0
        %3865 = vmatpush1.bf16.msra.mxu0 0
        %3866 = vmatprep.subr.bf16.mxu0 0
        %3867 = vmatpush1.bf16.msra.mxu0 0
        %3868 = vmatprep.subr.bf16.mxu0 0
        %3869 = vmatpush1.bf16.msra.mxu0 0
        %3870 = vmatprep.subr.bf16.mxu0 0
        %3871 = vmatpush1.bf16.msra.mxu0 0
        %3872 = vmatprep.subr.bf16.mxu0 0
        %3873 = vmatpush1.bf16.msra.mxu0 0
        %3874 = vmatprep.subr.bf16.mxu0 0
        %3875 = vmatpush1.bf16.msra.mxu0 0
        %3876 = vmatprep.subr.bf16.mxu0 0
        %3877 = vmatpush1.bf16.msra.mxu0 0
        %3878 = vmatprep.subr.bf16.mxu0 0
        %3879 = vmatpush1.bf16.msra.mxu0 0
        %3880 = vmatprep.subr.bf16.mxu0 0
        %3881 = vmatpush1.bf16.msra.mxu0 0
        %3882 = vmatprep.subr.bf16.mxu0 0
        %3883 = vmatpush1.bf16.msra.mxu0 0
        %3884 = vmatprep.subr.bf16.mxu0 0
        %3885 = vmatpush1.bf16.msra.mxu0 0
        %3886 = vmatprep.subr.bf16.mxu0 0
        %3887 = vmatpush1.bf16.msra.mxu0 0
        %3888 = vmatprep.subr.bf16.mxu0 0
        %3889 = vmatpush1.bf16.msra.mxu0 0
        %3890 = vmatprep.subr.bf16.mxu0 0
        %3891 = vmatpush1.bf16.msra.mxu0 0
        %3892 = vmatprep.mubr.bf16.mxu0 0
        %3893 = vmatmul.mubr.bf16.gmra.mrb[0].mxu0 %v2181
        %v3894 = vpop.f32.mrb[0].mxu0
        %v3895 = vadd.f32 %v2122, %v3894
        %v3896 = vpop.f32.mrb[0].mxu0
        %v3897 = vadd.f32 %v2122, %v3896
        %v3898 = vpop.f32.mrb[0].mxu0
        %v3899 = vadd.f32 %v2127, %v3898
        %v3900 = vpop.f32.mrb[0].mxu0
        %v3901 = vadd.f32 %v2127, %v3900
        %3902 = vmatprep.mubr.bf16.mxu0 0
        %3903 = vmatmul.mubr.bf16.gmra.mrb[0].mxu0 %v2184
        %v3904 = vpop.f32.mrb[0].mxu0
        %v3905 = vadd.f32 %v2132, %v3904
        %v3906 = vpop.f32.mrb[0].mxu0
        %v3907 = vadd.f32 %v2132, %v3906
        %v3908 = vpop.f32.mrb[0].mxu0
        %v3909 = vadd.f32 %v2137, %v3908
        %v3910 = vpop.f32.mrb[0].mxu0
        %v3911 = vadd.f32 %v2137, %v3910
        %3912 = vmatprep.mubr.bf16.mxu0 0
        %3913 = vmatmul.mubr.bf16.gmra.mrb[0].mxu0 %v2187
        %v3914 = vpop.f32.mrb[0].mxu0
        %v3915 = vadd.f32 %v2142, %v3914
        %v3916 = vpop.f32.mrb[0].mxu0
        %v3917 = vadd.f32 %v2142, %v3916
        %v3918 = vpop.f32.mrb[0].mxu0
        %v3919 = vadd.f32 %v2147, %v3918
        %v3920 = vpop.f32.mrb[0].mxu0
        %v3921 = vadd.f32 %v2147, %v3920
        %3922 = vmatprep.mubr.bf16.mxu0 0
        %3923 = vmatmul.mubr.bf16.gmra.mrb[0].mxu0 %v2190
        %v3924 = vpop.f32.mrb[0].mxu0
        %v3925 = vadd.f32 %v2152, %v3924
        %v3926 = vpop.f32.mrb[0].mxu0
        %v3927 = vadd.f32 %v2152, %v3926
        %v3928 = vpop.f32.mrb[0].mxu0
        %v3929 = vadd.f32 %v2157, %v3928
        %v3930 = vpop.f32.mrb[0].mxu0
        %v3931 = vadd.f32 %v2157, %v3930
        %3932 = vdwg.mxu0
        %vm3933 = vcmp.ge.f32.partialorder %v3822, 0.0
        %vm3934 = vcmp.ge.f32.partialorder %v3824, 0.0
        %vm3935 = vcmp.ge.f32.partialorder %v3895, 0.0
        %vm3936 = vcmp.ge.f32.partialorder %v3897, 0.0
        %vm3937 = vcmp.ge.f32.partialorder %v3826, 0.0
        %vm3938 = vcmp.ge.f32.partialorder %v3828, 0.0
        %vm3939 = vcmp.ge.f32.partialorder %v3899, 0.0
        %vm3940 = vcmp.ge.f32.partialorder %v3901, 0.0
        %vm3941 = vcmp.ge.f32.partialorder %v3832, 0.0
        %vm3942 = vcmp.ge.f32.partialorder %v3834, 0.0
        %vm3943 = vcmp.ge.f32.partialorder %v3905, 0.0
        %vm3944 = vcmp.ge.f32.partialorder %v3907, 0.0
        %vm3945 = vcmp.ge.f32.partialorder %v3836, 0.0
        %vm3946 = vcmp.ge.f32.partialorder %v3838, 0.0
        %vm3947 = vcmp.ge.f32.partialorder %v3909, 0.0
        %vm3948 = vcmp.ge.f32.partialorder %v3911, 0.0
        %vm3949 = vcmp.ge.f32.partialorder %v3842, 0.0
        %vm3950 = vcmp.ge.f32.partialorder %v3844, 0.0
        %vm3951 = vcmp.ge.f32.partialorder %v3915, 0.0
        %vm3952 = vcmp.ge.f32.partialorder %v3917, 0.0
        %vm3953 = vcmp.ge.f32.partialorder %v3846, 0.0
        %vm3954 = vcmp.ge.f32.partialorder %v3848, 0.0
        %vm3955 = vcmp.ge.f32.partialorder %v3919, 0.0
        %vm3956 = vcmp.ge.f32.partialorder %v3921, 0.0
        %vm3957 = vcmp.ge.f32.partialorder %v3852, 0.0
        %vm3958 = vcmp.ge.f32.partialorder %v3854, 0.0
        %vm3959 = vcmp.ge.f32.partialorder %v3925, 0.0
        %vm3960 = vcmp.ge.f32.partialorder %v3927, 0.0
        %vm3961 = vcmp.ge.f32.partialorder %v3856, 0.0
        %vm3962 = vcmp.ge.f32.partialorder %v3858, 0.0
        %vm3963 = vcmp.ge.f32.partialorder %v3929, 0.0
        %vm3964 = vcmp.ge.f32.partialorder %v3931, 0.0
        %v3965 = vmul.f32 %v3822, 0.05
        %v3966 = vmul.f32 %v3824, 0.05
        %v3967 = vmul.f32 %v3895, 0.05
        %v3968 = vmul.f32 %v3897, 0.05
        %v3969 = vmul.f32 %v3826, 0.05
        %v3970 = vmul.f32 %v3828, 0.05
        %v3971 = vmul.f32 %v3899, 0.05
        %v3972 = vmul.f32 %v3901, 0.05
        %v3973 = vmul.f32 %v3832, 0.05
        %v3974 = vmul.f32 %v3834, 0.05
        %v3975 = vmul.f32 %v3905, 0.05
        %v3976 = vmul.f32 %v3907, 0.05
        %v3977 = vmul.f32 %v3836, 0.05
        %v3978 = vmul.f32 %v3838, 0.05
        %v3979 = vmul.f32 %v3909, 0.05
        %v3980 = vmul.f32 %v3911, 0.05
        %v3981 = vmul.f32 %v3842, 0.05
        %v3982 = vmul.f32 %v3844, 0.05
        %v3983 = vmul.f32 %v3915, 0.05
        %v3984 = vmul.f32 %v3917, 0.05
        %v3985 = vmul.f32 %v3846, 0.05
        %v3986 = vmul.f32 %v3848, 0.05
        %v3987 = vmul.f32 %v3919, 0.05
        %v3988 = vmul.f32 %v3921, 0.05
        %v3989 = vmul.f32 %v3852, 0.05
        %v3990 = vmul.f32 %v3854, 0.05
        %v3991 = vmul.f32 %v3925, 0.05
        %v3992 = vmul.f32 %v3927, 0.05
        %v3993 = vmul.f32 %v3856, 0.05
        %v3994 = vmul.f32 %v3858, 0.05
        %v3995 = vmul.f32 %v3929, 0.05
        %v3996 = vmul.f32 %v3931, 0.05
        %v3997 = vsel %vm3933, %v3822, %v3965
        %v3998 = vsel %vm3934, %v3824, %v3966
        %v3999 = vsel %vm3935, %v3895, %v3967
        %v4000 = vsel %vm3936, %v3897, %v3968
        %v4001 = vsel %vm3937, %v3826, %v3969
        %v4002 = vsel %vm3938, %v3828, %v3970
        %v4003 = vsel %vm3939, %v3899, %v3971
        %v4004 = vsel %vm3940, %v3901, %v3972
        %v4005 = vsel %vm3941, %v3832, %v3973
        %v4006 = vsel %vm3942, %v3834, %v3974
        %v4007 = vsel %vm3943, %v3905, %v3975
        %v4008 = vsel %vm3944, %v3907, %v3976
        %v4009 = vsel %vm3945, %v3836, %v3977
        %v4010 = vsel %vm3946, %v3838, %v3978
        %v4011 = vsel %vm3947, %v3909, %v3979
        %v4012 = vsel %vm3948, %v3911, %v3980
        %v4013 = vsel %vm3949, %v3842, %v3981
        %v4014 = vsel %vm3950, %v3844, %v3982
        %v4015 = vsel %vm3951, %v3915, %v3983
        %v4016 = vsel %vm3952, %v3917, %v3984
        %v4017 = vsel %vm3953, %v3846, %v3985
        %v4018 = vsel %vm3954, %v3848, %v3986
        %v4019 = vsel %vm3955, %v3919, %v3987
        %v4020 = vsel %vm3956, %v3921, %v3988
        %v4021 = vsel %vm3957, %v3852, %v3989
        %v4022 = vsel %vm3958, %v3854, %v3990
        %v4023 = vsel %vm3959, %v3925, %v3991
        %v4024 = vsel %vm3960, %v3927, %v3992
        %v4025 = vsel %vm3961, %v3856, %v3993
        %v4026 = vsel %vm3962, %v3858, %v3994
        %v4027 = vsel %vm3963, %v3929, %v3995
        %v4028 = vsel %vm3964, %v3931, %v3996
        %v4029 = vpack.c.bf16 %v4001, %v3997
        %v4030 = vpack.c.bf16 %v4002, %v3998
        %v4031 = vpack.c.bf16 %v4003, %v3999
        %v4032 = vpack.c.bf16 %v4004, %v4000
        %v4033 = vpack.c.bf16 %v4009, %v4005
        %v4034 = vpack.c.bf16 %v4010, %v4006
        %v4035 = vpack.c.bf16 %v4011, %v4007
        %v4036 = vpack.c.bf16 %v4012, %v4008
        %v4037 = vpack.c.bf16 %v4017, %v4013
        %v4038 = vpack.c.bf16 %v4018, %v4014
        %v4039 = vpack.c.bf16 %v4019, %v4015
        %v4040 = vpack.c.bf16 %v4020, %v4016
        %v4041 = vpack.c.bf16 %v4025, %v4021
        %v4042 = vpack.c.bf16 %v4026, %v4022
        %v4043 = vpack.c.bf16 %v4027, %v4023
        %v4044 = vpack.c.bf16 %v4028, %v4024
        %4045 = vmatprep.subr.bf16.mxu0 %v4030
        %4046 = vmatpush1.bf16.msra.mxu0 %v4029
        %4047 = vmatprep.subr.bf16.mxu0 %v4034
        %4048 = vmatpush1.bf16.msra.mxu0 %v4033
        %4049 = vmatprep.subr.bf16.mxu0 %v4038
        %4050 = vmatpush1.bf16.msra.mxu0 %v4037
        %4051 = vmatprep.subr.bf16.mxu0 %v4042
        %4052 = vmatpush1.bf16.msra.mxu0 %v4041
        %4053 = vmatprep.subr.bf16.mxu0 0
        %4054 = vmatpush1.bf16.msra.mxu0 0
        %4055 = vmatprep.subr.bf16.mxu0 0
        %4056 = vmatpush1.bf16.msra.mxu0 0
        %4057 = vmatprep.subr.bf16.mxu0 0
        %4058 = vmatpush1.bf16.msra.mxu0 0
        %4059 = vmatprep.subr.bf16.mxu0 0
        %4060 = vmatpush1.bf16.msra.mxu0 0
        %4061 = vmatprep.subr.bf16.mxu0 0
        %4062 = vmatpush1.bf16.msra.mxu0 0
        %4063 = vmatprep.subr.bf16.mxu0 0
        %4064 = vmatpush1.bf16.msra.mxu0 0
        %4065 = vmatprep.subr.bf16.mxu0 0
        %4066 = vmatpush1.bf16.msra.mxu0 0
        %4067 = vmatprep.subr.bf16.mxu0 0
        %4068 = vmatpush1.bf16.msra.mxu0 0
        %4069 = vmatprep.subr.bf16.mxu0 0
        %4070 = vmatpush1.bf16.msra.mxu0 0
        %4071 = vmatprep.subr.bf16.mxu0 0
        %4072 = vmatpush1.bf16.msra.mxu0 0
        %4073 = vmatprep.subr.bf16.mxu0 0
        %4074 = vmatpush1.bf16.msra.mxu0 0
        %4075 = vmatprep.subr.bf16.mxu0 0
        %4076 = vmatpush1.bf16.msra.mxu0 0
        %4077 = vmatprep.mubr.bf16.mxu0 0
        %4078 = vmatmul.mubr.bf16.gmra.mrb[0].mxu0 %v2457
        %v4079 = vpop.f32.mrb[0].mxu0
        %v4080 = vadd.f32 0.0, %v4079
        %v4081 = vpop.f32.mrb[0].mxu0
        %v4082 = vadd.f32 0.0, %v4081
        %v4083 = vpop.f32.mrb[0].mxu0
        %v4084 = vadd.f32 0.0, %v4083
        %v4085 = vpop.f32.mrb[0].mxu0
        %v4086 = vadd.f32 0.0, %v4085
        %4087 = vdwg.mxu0
        %4088 = vmatprep.subr.bf16.mxu0 %v4032
        %4089 = vmatpush1.bf16.msra.mxu0 %v4031
        %4090 = vmatprep.subr.bf16.mxu0 %v4036
        %4091 = vmatpush1.bf16.msra.mxu0 %v4035
        %4092 = vmatprep.subr.bf16.mxu0 %v4040
        %4093 = vmatpush1.bf16.msra.mxu0 %v4039
        %4094 = vmatprep.subr.bf16.mxu0 %v4044
        %4095 = vmatpush1.bf16.msra.mxu0 %v4043
        %4096 = vmatprep.subr.bf16.mxu0 0
        %4097 = vmatpush1.bf16.msra.mxu0 0
        %4098 = vmatprep.subr.bf16.mxu0 0
        %4099 = vmatpush1.bf16.msra.mxu0 0
        %4100 = vmatprep.subr.bf16.mxu0 0
        %4101 = vmatpush1.bf16.msra.mxu0 0
        %4102 = vmatprep.subr.bf16.mxu0 0
        %4103 = vmatpush1.bf16.msra.mxu0 0
        %4104 = vmatprep.subr.bf16.mxu0 0
        %4105 = vmatpush1.bf16.msra.mxu0 0
        %4106 = vmatprep.subr.bf16.mxu0 0
        %4107 = vmatpush1.bf16.msra.mxu0 0
        %4108 = vmatprep.subr.bf16.mxu0 0
        %4109 = vmatpush1.bf16.msra.mxu0 0
        %4110 = vmatprep.subr.bf16.mxu0 0
        %4111 = vmatpush1.bf16.msra.mxu0 0
        %4112 = vmatprep.subr.bf16.mxu0 0
        %4113 = vmatpush1.bf16.msra.mxu0 0
        %4114 = vmatprep.subr.bf16.mxu0 0
        %4115 = vmatpush1.bf16.msra.mxu0 0
        %4116 = vmatprep.subr.bf16.mxu0 0
        %4117 = vmatpush1.bf16.msra.mxu0 0
        %4118 = vmatprep.subr.bf16.mxu0 0
        %4119 = vmatpush1.bf16.msra.mxu0 0
        %4120 = vmatprep.mubr.bf16.mxu0 0
        %4121 = vmatmul.mubr.bf16.gmra.mrb[0].mxu0 %v2457
        %v4122 = vpop.f32.mrb[0].mxu0
        %v4123 = vadd.f32 0.0, %v4122
        %v4124 = vpop.f32.mrb[0].mxu0
        %v4125 = vadd.f32 0.0, %v4124
        %v4126 = vpop.f32.mrb[0].mxu0
        %v4127 = vadd.f32 0.0, %v4126
        %v4128 = vpop.f32.mrb[0].mxu0
        %v4129 = vadd.f32 0.0, %v4128
        %4130 = vdwg.mxu0
        %v4131 = vld [vmem:[%s362 + $0x38] sm:$0xff]
        %v4132 = vld [vmem:[%s362 + $0x40] sm:$0xff]
        %v4133 = vld [vmem:[%s362 + $0x48] sm:$0xff]
        %v4134 = vld [vmem:[%s362 + $0x50] sm:$0xff]
        %v4135 = vld [vmem:[%s362 + $0xa8] sm:$0xff]
        %v4136 = vld [vmem:[%s362 + $0xb0] sm:$0xff]
        %v4137 = vld [vmem:[%s362 + $0xb8] sm:$0xff]
        %v4138 = vld [vmem:[%s362 + $0xc0] sm:$0xff]
        %v4139 = vadd.f32 %v4131, %v4080
        %v4140 = vadd.f32 %v4132, %v4082
        %v4141 = vadd.f32 %v4133, %v4123
        %v4142 = vadd.f32 %v4134, %v4125
        %v4143 = vadd.f32 %v4135, %v4084
        %v4144 = vadd.f32 %v4136, %v4086
        %v4145 = vadd.f32 %v4137, %v4127
        %v4146 = vadd.f32 %v4138, %v4129
        %v4147 = vadd.f32 %v4139, %v2564
        %v4148 = vadd.f32 %v4140, %v2564
        %v4149 = vadd.f32 %v4141, %v2564
        %v4150 = vadd.f32 %v4142, %v2564
        %v4151 = vadd.f32 %v4143, %v2569
        %v4152 = vadd.f32 %v4144, %v2569
        %v4153 = vadd.f32 %v4145, %v2569
        %v4154 = vadd.f32 %v4146, %v2569
        %4155 = vst [vmem:[%s240 + $0x20] sm:$0xff] %v4147
        %4156 = vst [vmem:[%s240 + $0x28] sm:$0xff] %v4148
        %4157 = vst [vmem:[%s240 + $0x30] sm:$0xff] %v4149
        %4158 = vst [vmem:[%s240 + $0x38] sm:$0xff] %v4150
        %4159 = vst [vmem:[%s240 + $0x60] sm:$0xff] %v4151
        %4160 = vst [vmem:[%s240 + $0x68] sm:$0xff] %v4152
        %4161 = vst [vmem:[%s240 + $0x70] sm:$0xff] %v4153
        %4162 = vst [vmem:[%s240 + $0x78] sm:$0xff] %v4154
        %s4163 = sand.u32 %s166, 1
        %s4164 = sand.u32 %s166, 1
        %s4165 = smul.addr %s4164, 128
        %s4166 = scalar_lea.vmem [#allocation4], %s4165
        // Predicated region
        $region121: #{convnext_block.1} parent=43 // pred_check
          %p4167 = pneg %p176
        $region122: #{convnext_block.1} parent=43 // pred_check_branch
          %4169 = sbr.rel (%p4167) target = $region124
        $region123: #{convnext_block.1} parent=43 // pred_region
          %s4170 = smul.u32 8, %s23
          %s4171 = smul.addr %s22, 32
          %s4172 = sadd.s32 %s4170, %s4171
          %s4173 = smul.addr %s4172, 8
          %s4174 = scalar_lea.vmem %s7, %s4173
          // Predicated region
          $region125: #{convnext_block.1} parent=123 // pred_check
            _
          $region126: #{convnext_block.1} parent=123 // pred_check_branch
            %4176 = sbr.rel (0) target = $region128
          $region127: #{convnext_block.1} parent=123 // pred_region
            // Predicated region
            $region129: #{convnext_block.1} parent=127 // pred_check
              _
            $region130: #{convnext_block.1} parent=127 // pred_check_branch
              %4178 = sbr.rel (0) target = $region132
            $region131: #{convnext_block.1} parent=127 // pred_region
              loop: start=0, step=1, limit=1
              $region133: #{convnext_block.1} parent=131 // loop_pre_header
                _
              $region134: #{convnext_block.1} parent=131 // loop_header
                %s4180 = sphi 0, %s4184
                %p4181 = scmp.ge.s32.totalorder %s4180, 1
                %s4185 = sphi %s4166, %s4166
                %s4186 = sphi %s4174, %s4174
              $region135: #{convnext_block.1} parent=131 // loop_header_branch
                %4183 = sbr.rel (%p4181) target = $region139
              $region136: #{convnext_block.1} parent=131 // loop_body
                %v4187 = vld [vmem:[%s4185] sm:$0xff]
                %4188 = vst [vmem:[%s4186] sm:$0xff] %v4187
                %v4189 = vld [vmem:[%s4185 + $0x8] sm:$0xff]
                %4190 = vst [vmem:[%s4186 + $0x8] sm:$0xff] %v4189
                %v4191 = vld [vmem:[%s4185 + $0x10] sm:$0xff]
                %4192 = vst [vmem:[%s4186 + $0x10] sm:$0xff] %v4191
                %v4193 = vld [vmem:[%s4185 + $0x18] sm:$0xff]
                %4194 = vst [vmem:[%s4186 + $0x18] sm:$0xff] %v4193
                %v4195 = vld [vmem:[%s4185 + $0x20] sm:$0xff]
                %4196 = vst [vmem:[%s4186 + $0x20] sm:$0xff] %v4195
                %v4197 = vld [vmem:[%s4185 + $0x28] sm:$0xff]
                %4198 = vst [vmem:[%s4186 + $0x28] sm:$0xff] %v4197
                %v4199 = vld [vmem:[%s4185 + $0x30] sm:$0xff]
                %4200 = vst [vmem:[%s4186 + $0x30] sm:$0xff] %v4199
                %v4201 = vld [vmem:[%s4185 + $0x38] sm:$0xff]
                %4202 = vst [vmem:[%s4186 + $0x38] sm:$0xff] %v4201
                %v4203 = vld [vmem:[%s4185 + $0x40] sm:$0xff]
                %4204 = vst [vmem:[%s4186 + $0x80] sm:$0xff] %v4203
                %v4205 = vld [vmem:[%s4185 + $0x48] sm:$0xff]
                %4206 = vst [vmem:[%s4186 + $0x88] sm:$0xff] %v4205
                %v4207 = vld [vmem:[%s4185 + $0x50] sm:$0xff]
                %4208 = vst [vmem:[%s4186 + $0x90] sm:$0xff] %v4207
                %v4209 = vld [vmem:[%s4185 + $0x58] sm:$0xff]
                %4210 = vst [vmem:[%s4186 + $0x98] sm:$0xff] %v4209
                %v4211 = vld [vmem:[%s4185 + $0x60] sm:$0xff]
                %4212 = vst [vmem:[%s4186 + $0xa0] sm:$0xff] %v4211
                %v4213 = vld [vmem:[%s4185 + $0x68] sm:$0xff]
                %4214 = vst [vmem:[%s4186 + $0xa8] sm:$0xff] %v4213
                %v4215 = vld [vmem:[%s4185 + $0x70] sm:$0xff]
                %4216 = vst [vmem:[%s4186 + $0xb0] sm:$0xff] %v4215
                %v4217 = vld [vmem:[%s4185 + $0x78] sm:$0xff]
                %4218 = vst [vmem:[%s4186 + $0xb8] sm:$0xff] %v4217
              $region137: #{convnext_block.1} parent=131 // loop_footer
                %s4184 = sadd.s32 1, %s4180
              $region138: #{convnext_block.1} parent=131 // loop_footer_branch
                %4179 = sbr.rel target = $region134
              $region139: #{convnext_block.1} parent=131 // loop_exit
                _
            $region132: #{convnext_block.1} parent=127 // pred_fallthru
              _
            // Predicated region
            $region140: #{convnext_block.1} parent=127 // pred_check
              _
            $region141: #{convnext_block.1} parent=127 // pred_check_branch
              %4220 = sbr.rel target = $region143
            $region142: #{convnext_block.1} parent=127 // pred_region
              _
            $region143: #{convnext_block.1} parent=127 // pred_fallthru
              _
          $region128: #{convnext_block.1} parent=123 // pred_fallthru
            _
          %4221 = vnop
        $region124: #{convnext_block.1} parent=43 // pred_fallthru
          _
      $region44: #{convnext_block.1} parent=5 // pred_fallthru
        _
      %p4222 = scmp.le.s32.totalorder 2, %s13
      // Predicated region
      $region144: #{convnext_block.1} parent=5 // pred_check
        %p4223 = pneg %p4222
      $region145: #{convnext_block.1} parent=5 // pred_check_branch
        %4225 = sbr.rel (%p4223) target = $region147
      $region146: #{convnext_block.1} parent=5 // pred_region
        %s4226 = ssub.s32 %s13, 2
        // Predicated region
        $region148: #{convnext_block.1} parent=146 // pred_check
          %p4227 = pneg %p182
        $region149: #{convnext_block.1} parent=146 // pred_check_branch
          %4229 = sbr.rel (%p4227) target = $region151
        $region150: #{convnext_block.1} parent=146 // pred_region
          %s4230 = sand.u32 %s167, 1
          %s4231 = sand.u32 %s167, 1
          %s4232 = smul.addr %s4231, 128
          %s4233 = scalar_lea.vmem [#allocation4], %s4232
        $region151: #{convnext_block.1} parent=146 // pred_fallthru
          _
      $region147: #{convnext_block.1} parent=5 // pred_fallthru
        _
    $region6: #{convnext_block.1} parent=1 // loop_footer
      %s17 = sadd.s32 1, %s13
    $region7: #{convnext_block.1} parent=1 // loop_footer_branch
      %12 = sbr.rel target = $region3
    $region8: #{convnext_block.1} parent=1 // loop_exit
      _
  %4234 = vsyncmov [#allocation3]
  %s4235 = vpop.sfrf %4234
  %p4236 = scmp.eq.s32.totalorder %s4235, 0
  %p4237 = pneg %p4236
  %4239 = shalt.err (%p4237)
  %s4240 = scalar_lea.sflag [#allocation3], 1
  %4241 = vsyncmov %s4240
  %s4242 = vpop.sfrf %4241
  %p4243 = scmp.eq.s32.totalorder %s4242, 0
  %p4244 = pneg %p4243
  %4246 = shalt.err (%p4244)

</llo_original>
